<compile_context>
chip_gen: v7x
topology: tpu7x:2x2x1
jax: 0.10.0
libtpu: 0.0.40
codegen_flags: <defaults>
</compile_context>

<pallas_src>
import functools
import math

import jax
import jax.numpy as jnp
from jax import lax
from jax.experimental import pallas as pl
from jax.experimental.pallas import tpu as pltpu

LN_EPS = 1e-5                 # torch.nn.LayerNorm default
MATMUL_DTYPE = jnp.float32    # set to jnp.bfloat16 on v6e/v7x for more MXU throughput


def _round_up(n, m):
    return ((n + m - 1) // m) * m


# ----------------------------- kernel -----------------------------------------


def _encoder_block_kernel(x_ref, wqkv_ref, wo_ref, bo_ref,
                          ln1g_ref, ln1b_ref, w1_ref, b1_ref,
                          w2_ref, b2_ref, ln2g_ref, ln2b_ref,
                          o_ref, *, h, dkp, d_model):
    """One fused encoder block for a single batch element.

    x_ref/o_ref : (S, Dp) tile (batch dim squeezed); pad lanes [D:Dp) are zero.
    wqkv        : (Dp, 3*h*dkp) block-diagonal, lane-padded, pre-transposed q/k/v
                  weights (1/sqrt(dk) folded into the q blocks).
    wo          : (h*dkp, Dp) lane-padded pre-transposed output projection, bo: (1, Dp).
    w1          : (Dp, Hp) pre-transposed FFN weight, b1: (1, Hp).
    w2          : (Hp, Dp) pre-transposed FFN weight, b2: (1, Dp).
    ln*g / ln*b : (1, Dp) LayerNorm affine params (zero in pad lanes).
    """
    f32 = jnp.float32
    x = x_ref[...]                                     # (S, Dp) f32
    Dp = x.shape[-1]

    # Lane mask for the (possibly) padded model dim; hoisted once per body.
    lane = lax.broadcasted_iota(jnp.int32, (1, Dp), 1)
    dmask = (lane < d_model).astype(f32)
    inv_d = 1.0 / float(d_model)

    def mm(a, b_ref_or_arr):
        b = b_ref_or_arr[...] if hasattr(b_ref_or_arr, "at") else b_ref_or_arr
        return jnp.dot(a.astype(MATMUL_DTYPE), b.astype(MATMUL_DTYPE),
                       preferred_element_type=f32)

    # --- fused, lane-aligned Q/K/V projection: ONE (S,Dp)@(Dp,3*h*dkp) matmul ---
    qkv = mm(x, wqkv_ref)                              # (S, 3*h*dkp)

    # --- per-head attention; every slice starts on a 128-lane boundary -----------
    ctx_parts = []
    for hh in range(h):
        q_h = qkv[:, hh * dkp:(hh + 1) * dkp]                       # (S, dkp)
        k_h = qkv[:, (h + hh) * dkp:(h + hh + 1) * dkp]
        v_h = qkv[:, (2 * h + hh) * dkp:(2 * h + hh + 1) * dkp]

        # energy = q_h @ k_h^T without materializing the transpose; pad lanes are
        # zero in both operands so the padded contraction is exact.
        energy = lax.dot_general(q_h.astype(MATMUL_DTYPE), k_h.astype(MATMUL_DTYPE),
                                 (((1,), (1,)), ((), ())),
                                 preferred_element_type=f32)        # (S, S)

        m = jnp.max(energy, axis=-1, keepdims=True)
        p = jnp.exp(energy - m)
        l = jnp.sum(p, axis=-1, keepdims=True)
        attn = p * pl.reciprocal(l)        # exact reciprocal (approx=False) for parity

        ctx_parts.append(mm(attn, v_h))                             # (S, dkp)

    # 128-aligned lane concat of per-head contexts -> one big output projection.
    ctx = jnp.concatenate(ctx_parts, axis=-1)                       # (S, h*dkp)
    attn_out = mm(ctx, wo_ref) + bo_ref[...]                        # (S, Dp)

    def layernorm(y, g, b):
        # y has exact zeros in pad lanes; stats use divisor d_model + lane mask so
        # the result matches the unpadded reference bit-for-bit (up to sum order).
        mu = jnp.sum(y, axis=-1, keepdims=True) * inv_d
        c = (y - mu) * dmask
        var = jnp.sum(c * c, axis=-1, keepdims=True) * inv_d
        return c * lax.rsqrt(var + LN_EPS) * g + b

    # --- residual + LayerNorm 1 ---
    x1 = layernorm(attn_out + x, ln1g_ref[...], ln1b_ref[...])

    # --- feed-forward network (ReLU MLP), lane-dense padded hidden dim -----------
    hdn = jnp.maximum(mm(x1, w1_ref) + b1_ref[...], 0.0)
    ffn = mm(hdn, w2_ref) + b2_ref[...]

    # --- residual + LayerNorm 2 ---
    out = layernorm(x1 + ffn, ln2g_ref[...], ln2b_ref[...])
    o_ref[...] = out.astype(o_ref.dtype)


# ----------------------------- parameter preparation (one-time) ----------------


def _prepare_layer(p, *, h, d_model, dk, dkp, d_pad):
    """Build kernel-ready, lane-padded weights for one encoder block (run once)."""
    f32 = jnp.float32
    hidden = p["w1"].shape[0]
    h_pad = _round_up(hidden, 128)
    inv_sqrt_dk = 1.0 / math.sqrt(dk)

    def head_blocks(w, scale):
        # Block-diagonal (d_pad, h*dkp) expansion of the shared per-head (dk,dk)
        # weight, pre-transposed so the kernel computes x_h @ W^T per head.
        blk = jnp.zeros((d_pad, h * dkp), f32)
        wt = w.T.astype(f32) * scale
        for hh in range(h):
            blk = blk.at[hh * dk:(hh + 1) * dk, hh * dkp:hh * dkp + dk].set(wt)
        return blk

    # TODO(synk): for large h the block-diagonal expansion wastes ~h x projection
    # FLOPs; evaluate an (S*h, dk) sublane head layout instead (fine for small h).
    w_qkv = jnp.concatenate([head_blocks(p["wq"], inv_sqrt_dk),
                             head_blocks(p["wk"], 1.0),
                             head_blocks(p["wv"], 1.0)], axis=1)    # (d_pad, 3*h*dkp)

    wo_t = p["wo"].T.astype(f32)                                    # (D, D)
    wo_p = jnp.zeros((h * dkp, d_pad), f32)
    for hh in range(h):
        wo_p = wo_p.at[hh * dkp:hh * dkp + dk, :d_model].set(
            wo_t[hh * dk:(hh + 1) * dk, :])

    def pad_row(v, n):
        return jnp.zeros((1, n), f32).at[0, :v.shape[0]].set(v.astype(f32))

    def pad_mat(a, r, c):
        return jnp.zeros((r, c), f32).at[:a.shape[0], :a.shape[1]].set(a.astype(f32))

    return {
        "w_qkv": w_qkv.astype(MATMUL_DTYPE),
        "wo": wo_p.astype(MATMUL_DTYPE),
        "bo": pad_row(p["bo"], d_pad),
        "ln1_g": pad_row(p["ln1_g"], d_pad),
        "ln1_b": pad_row(p["ln1_b"], d_pad),
        "w1": pad_mat(p["w1"].T, d_pad, h_pad).astype(MATMUL_DTYPE),
        "b1": pad_row(p["b1"], h_pad),
        "w2": pad_mat(p["w2"].T, h_pad, d_pad).astype(MATMUL_DTYPE),
        "b2": pad_row(p["b2"], d_pad),
        "ln2_g": pad_row(p["ln2_g"], d_pad),
        "ln2_b": pad_row(p["ln2_b"], d_pad),
    }


def prepare_encoder_params(params, *, h):
    """One-time weight prep (hoisted out of the per-forward path)."""
    d_model = params["tok_emb"].shape[1]
    assert d_model % h == 0
    dk = d_model // h
    dkp = _round_up(dk, 128)
    d_pad = _round_up(d_model, 128)
    layers = [_prepare_layer(p, h=h, d_model=d_model, dk=dk, dkp=dkp, d_pad=d_pad)
              for p in params["layers"]]
    return {
        "tok_emb": params["tok_emb"],
        "pos_emb": params["pos_emb"],
        "layers": layers,
        "meta": dict(h=h, d_model=d_model, dk=dk, dkp=dkp, d_pad=d_pad),
    }


# ----------------------------- wrappers ----------------------------------------


def encoder_block(x, lp, *, h, dkp, d_model):
    """One EncoderBlock forward on lane-padded activations x: (B, S, Dp)."""
    B, S, Dp = x.shape

    args = (x, lp["w_qkv"], lp["wo"], lp["bo"], lp["ln1_g"], lp["ln1_b"],
            lp["w1"], lp["b1"], lp["w2"], lp["b2"], lp["ln2_g"], lp["ln2_b"])

    x_spec = pl.BlockSpec((None, S, Dp), lambda b: (b, 0, 0))

    def weight_spec(arr):
        return pl.BlockSpec(arr.shape, lambda b, _nd=arr.ndim: (0,) * _nd)

    in_specs = [x_spec] + [weight_spec(a) for a in args[1:]]

    return pl.pallas_call(
        functools.partial(_encoder_block_kernel, h=h, dkp=dkp, d_model=d_model),
        out_shape=jax.ShapeDtypeStruct((B, S, Dp), x.dtype),
        grid=(B,),
        in_specs=in_specs,
        out_specs=x_spec,
        compiler_params=pltpu.CompilerParams(
            dimension_semantics=("parallel",),
            vmem_limit_bytes=32 * 1024 * 1024),
    )(*args)


def encoder_forward(tokens, prepared):
    """Full Encoder forward: embedding + positional encoding, then N fused blocks."""
    meta = prepared["meta"]
    h, d_model, dkp, d_pad = meta["h"], meta["d_model"], meta["dkp"], meta["d_pad"]
    B, S = tokens.shape
    # Embedding + positional lookup (XLA gather; see TODO at top). Dropout = identity.
    x = prepared["tok_emb"][tokens] + prepared["pos_emb"][:S][None, :, :]
    # Pad the model dim ONCE; every layer stays lane-dense (Dp multiple of 128).
    x = jnp.pad(x, ((0, 0), (0, 0), (0, d_pad - d_model)))
    for lp in prepared["layers"]:
        x = encoder_block(x, lp, h=h, dkp=dkp, d_model=d_model)
    return x[..., :d_model]


# ----------------------------- reference (pure JAX) ----------------------------


def _layernorm_ref(x, g, b, eps=LN_EPS):
    mu = jnp.mean(x, axis=-1, keepdims=True)
    var = jnp.mean((x - mu) ** 2, axis=-1, keepdims=True)
    return (x - mu) / jnp.sqrt(var + eps) * g + b


def _encoder_block_ref(x, p, *, h):
    B, S, D = x.shape
    dk = D // h
    q = x.reshape(B, S, h, dk) @ p["wq"].T
    k = x.reshape(B, S, h, dk) @ p["wk"].T
    v = x.reshape(B, S, h, dk) @ p["wv"].T
    energy = jnp.einsum("abcd,aecd->acbe", q, k) / jnp.sqrt(jnp.float32(dk))
    attn = jax.nn.softmax(energy, axis=-1)
    ctx = jnp.einsum("abcd,adbf->acbf", attn, v).reshape(B, S, D)
    a = ctx @ p["wo"].T + p["bo"]
    x1 = _layernorm_ref(a + x, p["ln1_g"], p["ln1_b"])
    f = jnp.maximum(x1 @ p["w1"].T + p["b1"], 0.0) @ p["w2"].T + p["b2"]
    return _layernorm_ref(x1 + f, p["ln2_g"], p["ln2_b"])


def _encoder_ref(tokens, params, *, h):
    B, S = tokens.shape
    x = params["tok_emb"][tokens] + params["pos_emb"][:S][None, :, :]
    for p in params["layers"]:
        x = _encoder_block_ref(x, p, h=h)
    return x


# ----------------------------- main --------------------------------------------


def _init_layer(key, dmodel, h, expand):
    dk = dmodel // h
    hidden = dmodel * expand
    ks = jax.random.split(key, 13)

    def u(k, shape, fan_in):
        lim = 1.0 / jnp.sqrt(jnp.float32(fan_in))
        return jax.random.uniform(k, shape, jnp.float32, -lim, lim)

    return {
        "wq": u(ks[0], (dk, dk), dk),
        "wk": u(ks[1], (dk, dk), dk),
        "wv": u(ks[2], (dk, dk), dk),
        "wo": u(ks[3], (dmodel, dmodel), dmodel),
        "bo": u(ks[4], (dmodel,), dmodel),
        "w1": u(ks[5], (hidden, dmodel), dmodel),
        "b1": u(ks[6], (hidden,), dmodel),
        "w2": u(ks[7], (dmodel, hidden), hidden),
        "b2": u(ks[8], (dmodel,), hidden),
        "ln1_g": 1.0 + 0.1 * jax.random.normal(ks[9], (dmodel,), jnp.float32),
        "ln1_b": 0.1 * jax.random.normal(ks[10], (dmodel,), jnp.float32),
        "ln2_g": 1.0 + 0.1 * jax.random.normal(ks[11], (dmodel,), jnp.float32),
        "ln2_b": 0.1 * jax.random.normal(ks[12], (dmodel,), jnp.float32),
    }


if __name__ == "__main__":
    B, S = 2, 8
    DMODEL, H, EXPAND, NLAYERS = 32, 4, 4, 2
    VOCAB, MAXLEN = 50, 16

    key = jax.random.PRNGKey(0)
    k_tok, k_emb, k_pos, *k_layers = jax.random.split(key, 3 + NLAYERS)

    params = {
        "tok_emb": jax.random.normal(k_emb, (VOCAB, DMODEL), jnp.float32),
        "pos_emb": jax.random.normal(k_pos, (MAXLEN, DMODEL), jnp.float32),
        "layers": [_init_layer(k, DMODEL, H, EXPAND) for k in k_layers],
    }

    tokens = jax.random.randint(k_tok, (B, S), 0, VOCAB)

    # One-time parameter preparation (hoisted out of the forward path).
    prepared = jax.block_until_ready(prepare_encoder_params(params, h=H))

    fwd = jax.jit(lambda toks: encoder_forward(toks, prepared))
    out = jax.block_until_ready(fwd(tokens))

    ref = _encoder_ref(tokens, params, h=H)
    assert out.shape == (B, S, DMODEL)
    err = float(jnp.max(jnp.abs(out - ref)))
    assert jnp.allclose(out, ref, atol=1e-4, rtol=1e-4), err

    print("KERNEL_OK")
</pallas_src>

<mosaic_0001>
module attributes {stable_mosaic.version = 11 : i64} {
  func.func @_encoder_block_kernel(%arg0: i32, %arg1: memref<1x8x128xf32, #tpu.memory_space<vmem>>, %arg2: memref<128x1536xf32, #tpu.memory_space<vmem>>, %arg3: memref<512x128xf32, #tpu.memory_space<vmem>>, %arg4: memref<1x128xf32, #tpu.memory_space<vmem>>, %arg5: memref<1x128xf32, #tpu.memory_space<vmem>>, %arg6: memref<1x128xf32, #tpu.memory_space<vmem>>, %arg7: memref<128x128xf32, #tpu.memory_space<vmem>>, %arg8: memref<1x128xf32, #tpu.memory_space<vmem>>, %arg9: memref<128x128xf32, #tpu.memory_space<vmem>>, %arg10: memref<1x128xf32, #tpu.memory_space<vmem>>, %arg11: memref<1x128xf32, #tpu.memory_space<vmem>>, %arg12: memref<1x128xf32, #tpu.memory_space<vmem>>, %arg13: memref<1x8x128xf32, #tpu.memory_space<vmem>>) attributes {dimension_semantics = [#tpu.dimension_semantics<parallel>], iteration_bounds = array<i64: 2>, scalar_prefetch = 0 : i64, scratch_operands = 0 : i64, tpu.core_type = #tpu.core_type<tc>, window_params = [{transform_indices = @transform_0, window_bounds = array<i64: 1, 8, 128>}, {pipeline_mode = #tpu.pipeline_mode<synchronous>, transform_indices = @transform_1, window_bounds = array<i64: 128, 1536>}, {pipeline_mode = #tpu.pipeline_mode<synchronous>, transform_indices = @transform_2, window_bounds = array<i64: 512, 128>}, {pipeline_mode = #tpu.pipeline_mode<synchronous>, transform_indices = @transform_3, window_bounds = array<i64: 1, 128>}, {pipeline_mode = #tpu.pipeline_mode<synchronous>, transform_indices = @transform_4, window_bounds = array<i64: 1, 128>}, {pipeline_mode = #tpu.pipeline_mode<synchronous>, transform_indices = @transform_5, window_bounds = array<i64: 1, 128>}, {pipeline_mode = #tpu.pipeline_mode<synchronous>, transform_indices = @transform_6, window_bounds = array<i64: 128, 128>}, {pipeline_mode = #tpu.pipeline_mode<synchronous>, transform_indices = @transform_7, window_bounds = array<i64: 1, 128>}, {pipeline_mode = #tpu.pipeline_mode<synchronous>, transform_indices = @transform_8, window_bounds = array<i64: 128, 128>}, {pipeline_mode = #tpu.pipeline_mode<synchronous>, transform_indices = @transform_9, window_bounds = array<i64: 1, 128>}, {pipeline_mode = #tpu.pipeline_mode<synchronous>, transform_indices = @transform_10, window_bounds = array<i64: 1, 128>}, {pipeline_mode = #tpu.pipeline_mode<synchronous>, transform_indices = @transform_11, window_bounds = array<i64: 1, 128>}, {transform_indices = @transform_12, window_bounds = array<i64: 1, 8, 128>}]} {
    %c0 = arith.constant 0 : index
    %c0_0 = arith.constant 0 : index
    %c0_1 = arith.constant 0 : index
    %0 = vector.load %arg1[%c0, %c0_0, %c0_1] : memref<1x8x128xf32, #tpu.memory_space<vmem>>, vector<1x8x128xf32>
    %1 = vector.shape_cast %0 : vector<1x8x128xf32> to vector<8x128xf32>
    %2 = tpu.iota {dimensions = array<i32: 1>} : vector<1x128xi32>
    %c32_i32 = arith.constant 32 : i32
    %3 = vector.broadcast %c32_i32 : i32 to vector<1x128xi32>
    %4 = arith.cmpi slt, %2, %3 : vector<1x128xi32>
    %5 = arith.extui %4 : vector<1x128xi1> to vector<1x128xi32>
    %6 = arith.sitofp %5 : vector<1x128xi32> to vector<1x128xf32>
    %c0_2 = arith.constant 0 : index
    %c0_3 = arith.constant 0 : index
    %7 = vector.load %arg2[%c0_2, %c0_3] : memref<128x1536xf32, #tpu.memory_space<vmem>>, vector<128x1536xf32>
    %cst = arith.constant dense<0.000000e+00> : vector<8x1536xf32>
    %8 = tpu.matmul %1, %7, %cst {dimension_numbers = #tpu.dot_dimension_numbers<[1], [0], [0], [1], [0, 0, 1, 1], [], []>} : vector<8x128xf32>, vector<128x1536xf32>, vector<8x1536xf32> -> vector<8x1536xf32>
    %9 = vector.extract_strided_slice %8 {offsets = [0, 0], sizes = [8, 128], strides = [1, 1]} : vector<8x1536xf32> to vector<8x128xf32>
    %10 = vector.extract_strided_slice %8 {offsets = [0, 512], sizes = [8, 128], strides = [1, 1]} : vector<8x1536xf32> to vector<8x128xf32>
    %11 = vector.extract_strided_slice %8 {offsets = [0, 1024], sizes = [8, 128], strides = [1, 1]} : vector<8x1536xf32> to vector<8x128xf32>
    %cst_4 = arith.constant dense<0.000000e+00> : vector<8x8xf32>
    %12 = tpu.matmul %9, %10, %cst_4 {dimension_numbers = #tpu.dot_dimension_numbers<[1], [1], [0], [0], [0, 0, 1, 0], [], []>} : vector<8x128xf32>, vector<8x128xf32>, vector<8x8xf32> -> vector<8x8xf32>
    %cst_5 = arith.constant dense<0xFF800000> : vector<8xf32>
    %13 = vector.multi_reduction <maximumf>, %12, %cst_5 [1] : vector<8x8xf32> to vector<8xf32>
    %14 = vector.shape_cast %13 : vector<8xf32> to vector<8x1xf32>
    %15 = vector.broadcast %14 : vector<8x1xf32> to vector<8x8xf32>
    %16 = arith.subf %12, %15 : vector<8x8xf32>
    %17 = math.exp %16 : vector<8x8xf32>
    %cst_6 = arith.constant dense<0.000000e+00> : vector<8xf32>
    %18 = vector.multi_reduction <add>, %17, %cst_6 [1] : vector<8x8xf32> to vector<8xf32>
    %19 = vector.shape_cast %18 : vector<8xf32> to vector<8x1xf32>
    %20 = tpu.reciprocal %19 : vector<8x1xf32> -> vector<8x1xf32>
    %21 = vector.broadcast %20 : vector<8x1xf32> to vector<8x8xf32>
    %22 = arith.mulf %17, %21 : vector<8x8xf32>
    %cst_7 = arith.constant dense<0.000000e+00> : vector<8x128xf32>
    %23 = tpu.matmul %22, %11, %cst_7 {dimension_numbers = #tpu.dot_dimension_numbers<[1], [0], [0], [1], [0, 0, 1, 1], [], []>} : vector<8x8xf32>, vector<8x128xf32>, vector<8x128xf32> -> vector<8x128xf32>
    %24 = vector.extract_strided_slice %8 {offsets = [0, 128], sizes = [8, 128], strides = [1, 1]} : vector<8x1536xf32> to vector<8x128xf32>
    %25 = vector.extract_strided_slice %8 {offsets = [0, 640], sizes = [8, 128], strides = [1, 1]} : vector<8x1536xf32> to vector<8x128xf32>
    %26 = vector.extract_strided_slice %8 {offsets = [0, 1152], sizes = [8, 128], strides = [1, 1]} : vector<8x1536xf32> to vector<8x128xf32>
    %cst_8 = arith.constant dense<0.000000e+00> : vector<8x8xf32>
    %27 = tpu.matmul %24, %25, %cst_8 {dimension_numbers = #tpu.dot_dimension_numbers<[1], [1], [0], [0], [0, 0, 1, 0], [], []>} : vector<8x128xf32>, vector<8x128xf32>, vector<8x8xf32> -> vector<8x8xf32>
    %cst_9 = arith.constant dense<0xFF800000> : vector<8xf32>
    %28 = vector.multi_reduction <maximumf>, %27, %cst_9 [1] : vector<8x8xf32> to vector<8xf32>
    %29 = vector.shape_cast %28 : vector<8xf32> to vector<8x1xf32>
    %30 = vector.broadcast %29 : vector<8x1xf32> to vector<8x8xf32>
    %31 = arith.subf %27, %30 : vector<8x8xf32>
    %32 = math.exp %31 : vector<8x8xf32>
    %cst_10 = arith.constant dense<0.000000e+00> : vector<8xf32>
    %33 = vector.multi_reduction <add>, %32, %cst_10 [1] : vector<8x8xf32> to vector<8xf32>
    %34 = vector.shape_cast %33 : vector<8xf32> to vector<8x1xf32>
    %35 = tpu.reciprocal %34 : vector<8x1xf32> -> vector<8x1xf32>
    %36 = vector.broadcast %35 : vector<8x1xf32> to vector<8x8xf32>
    %37 = arith.mulf %32, %36 : vector<8x8xf32>
    %cst_11 = arith.constant dense<0.000000e+00> : vector<8x128xf32>
    %38 = tpu.matmul %37, %26, %cst_11 {dimension_numbers = #tpu.dot_dimension_numbers<[1], [0], [0], [1], [0, 0, 1, 1], [], []>} : vector<8x8xf32>, vector<8x128xf32>, vector<8x128xf32> -> vector<8x128xf32>
    %39 = vector.extract_strided_slice %8 {offsets = [0, 256], sizes = [8, 128], strides = [1, 1]} : vector<8x1536xf32> to vector<8x128xf32>
    %40 = vector.extract_strided_slice %8 {offsets = [0, 768], sizes = [8, 128], strides = [1, 1]} : vector<8x1536xf32> to vector<8x128xf32>
    %41 = vector.extract_strided_slice %8 {offsets = [0, 1280], sizes = [8, 128], strides = [1, 1]} : vector<8x1536xf32> to vector<8x128xf32>
    %cst_12 = arith.constant dense<0.000000e+00> : vector<8x8xf32>
    %42 = tpu.matmul %39, %40, %cst_12 {dimension_numbers = #tpu.dot_dimension_numbers<[1], [1], [0], [0], [0, 0, 1, 0], [], []>} : vector<8x128xf32>, vector<8x128xf32>, vector<8x8xf32> -> vector<8x8xf32>
    %cst_13 = arith.constant dense<0xFF800000> : vector<8xf32>
    %43 = vector.multi_reduction <maximumf>, %42, %cst_13 [1] : vector<8x8xf32> to vector<8xf32>
    %44 = vector.shape_cast %43 : vector<8xf32> to vector<8x1xf32>
    %45 = vector.broadcast %44 : vector<8x1xf32> to vector<8x8xf32>
    %46 = arith.subf %42, %45 : vector<8x8xf32>
    %47 = math.exp %46 : vector<8x8xf32>
    %cst_14 = arith.constant dense<0.000000e+00> : vector<8xf32>
    %48 = vector.multi_reduction <add>, %47, %cst_14 [1] : vector<8x8xf32> to vector<8xf32>
    %49 = vector.shape_cast %48 : vector<8xf32> to vector<8x1xf32>
    %50 = tpu.reciprocal %49 : vector<8x1xf32> -> vector<8x1xf32>
    %51 = vector.broadcast %50 : vector<8x1xf32> to vector<8x8xf32>
    %52 = arith.mulf %47, %51 : vector<8x8xf32>
    %cst_15 = arith.constant dense<0.000000e+00> : vector<8x128xf32>
    %53 = tpu.matmul %52, %41, %cst_15 {dimension_numbers = #tpu.dot_dimension_numbers<[1], [0], [0], [1], [0, 0, 1, 1], [], []>} : vector<8x8xf32>, vector<8x128xf32>, vector<8x128xf32> -> vector<8x128xf32>
    %54 = vector.extract_strided_slice %8 {offsets = [0, 384], sizes = [8, 128], strides = [1, 1]} : vector<8x1536xf32> to vector<8x128xf32>
    %55 = vector.extract_strided_slice %8 {offsets = [0, 896], sizes = [8, 128], strides = [1, 1]} : vector<8x1536xf32> to vector<8x128xf32>
    %56 = vector.extract_strided_slice %8 {offsets = [0, 1408], sizes = [8, 128], strides = [1, 1]} : vector<8x1536xf32> to vector<8x128xf32>
    %cst_16 = arith.constant dense<0.000000e+00> : vector<8x8xf32>
    %57 = tpu.matmul %54, %55, %cst_16 {dimension_numbers = #tpu.dot_dimension_numbers<[1], [1], [0], [0], [0, 0, 1, 0], [], []>} : vector<8x128xf32>, vector<8x128xf32>, vector<8x8xf32> -> vector<8x8xf32>
    %cst_17 = arith.constant dense<0xFF800000> : vector<8xf32>
    %58 = vector.multi_reduction <maximumf>, %57, %cst_17 [1] : vector<8x8xf32> to vector<8xf32>
    %59 = vector.shape_cast %58 : vector<8xf32> to vector<8x1xf32>
    %60 = vector.broadcast %59 : vector<8x1xf32> to vector<8x8xf32>
    %61 = arith.subf %57, %60 : vector<8x8xf32>
    %62 = math.exp %61 : vector<8x8xf32>
    %cst_18 = arith.constant dense<0.000000e+00> : vector<8xf32>
    %63 = vector.multi_reduction <add>, %62, %cst_18 [1] : vector<8x8xf32> to vector<8xf32>
    %64 = vector.shape_cast %63 : vector<8xf32> to vector<8x1xf32>
    %65 = tpu.reciprocal %64 : vector<8x1xf32> -> vector<8x1xf32>
    %66 = vector.broadcast %65 : vector<8x1xf32> to vector<8x8xf32>
    %67 = arith.mulf %62, %66 : vector<8x8xf32>
    %cst_19 = arith.constant dense<0.000000e+00> : vector<8x128xf32>
    %68 = tpu.matmul %67, %56, %cst_19 {dimension_numbers = #tpu.dot_dimension_numbers<[1], [0], [0], [1], [0, 0, 1, 1], [], []>} : vector<8x8xf32>, vector<8x128xf32>, vector<8x128xf32> -> vector<8x128xf32>
    %69 = tpu.concatenate %23, %38, %53, %68 in 1 : vector<8x128xf32>, vector<8x128xf32>, vector<8x128xf32>, vector<8x128xf32> -> vector<8x512xf32>
    %c0_20 = arith.constant 0 : index
    %c0_21 = arith.constant 0 : index
    %70 = vector.load %arg3[%c0_20, %c0_21] : memref<512x128xf32, #tpu.memory_space<vmem>>, vector<512x128xf32>
    %cst_22 = arith.constant dense<0.000000e+00> : vector<8x128xf32>
    %71 = tpu.matmul %69, %70, %cst_22 {dimension_numbers = #tpu.dot_dimension_numbers<[1], [0], [0], [1], [0, 0, 1, 1], [], []>} : vector<8x512xf32>, vector<512x128xf32>, vector<8x128xf32> -> vector<8x128xf32>
    %c0_23 = arith.constant 0 : index
    %c0_24 = arith.constant 0 : index
    %72 = vector.load %arg4[%c0_23, %c0_24] : memref<1x128xf32, #tpu.memory_space<vmem>>, vector<1x128xf32>
    %73 = vector.broadcast %72 : vector<1x128xf32> to vector<8x128xf32>
    %74 = arith.addf %71, %73 : vector<8x128xf32>
    %75 = arith.addf %74, %1 : vector<8x128xf32>
    %c0_25 = arith.constant 0 : index
    %c0_26 = arith.constant 0 : index
    %76 = vector.load %arg5[%c0_25, %c0_26] : memref<1x128xf32, #tpu.memory_space<vmem>>, vector<1x128xf32>
    %c0_27 = arith.constant 0 : index
    %c0_28 = arith.constant 0 : index
    %77 = vector.load %arg6[%c0_27, %c0_28] : memref<1x128xf32, #tpu.memory_space<vmem>>, vector<1x128xf32>
    %cst_29 = arith.constant dense<0.000000e+00> : vector<8xf32>
    %78 = vector.multi_reduction <add>, %75, %cst_29 [1] : vector<8x128xf32> to vector<8xf32>
    %79 = vector.shape_cast %78 : vector<8xf32> to vector<8x1xf32>
    %cst_30 = arith.constant 3.125000e-02 : f32
    %80 = vector.broadcast %cst_30 : f32 to vector<8x1xf32>
    %81 = arith.mulf %79, %80 : vector<8x1xf32>
    %82 = vector.broadcast %81 : vector<8x1xf32> to vector<8x128xf32>
    %83 = arith.subf %75, %82 : vector<8x128xf32>
    %84 = vector.broadcast %6 : vector<1x128xf32> to vector<8x128xf32>
    %85 = arith.mulf %83, %84 : vector<8x128xf32>
    %86 = arith.mulf %85, %85 : vector<8x128xf32>
    %cst_31 = arith.constant dense<0.000000e+00> : vector<8xf32>
    %87 = vector.multi_reduction <add>, %86, %cst_31 [1] : vector<8x128xf32> to vector<8xf32>
    %88 = vector.shape_cast %87 : vector<8xf32> to vector<8x1xf32>
    %cst_32 = arith.constant 3.125000e-02 : f32
    %89 = vector.broadcast %cst_32 : f32 to vector<8x1xf32>
    %90 = arith.mulf %88, %89 : vector<8x1xf32>
    %cst_33 = arith.constant 9.99999974E-6 : f32
    %91 = vector.broadcast %cst_33 : f32 to vector<8x1xf32>
    %92 = arith.addf %90, %91 : vector<8x1xf32>
    %93 = math.rsqrt %92 : vector<8x1xf32>
    %94 = vector.broadcast %93 : vector<8x1xf32> to vector<8x128xf32>
    %95 = arith.mulf %85, %94 : vector<8x128xf32>
    %96 = vector.broadcast %76 : vector<1x128xf32> to vector<8x128xf32>
    %97 = arith.mulf %95, %96 : vector<8x128xf32>
    %98 = vector.broadcast %77 : vector<1x128xf32> to vector<8x128xf32>
    %99 = arith.addf %97, %98 : vector<8x128xf32>
    %c0_34 = arith.constant 0 : index
    %c0_35 = arith.constant 0 : index
    %100 = vector.load %arg7[%c0_34, %c0_35] : memref<128x128xf32, #tpu.memory_space<vmem>>, vector<128x128xf32>
    %cst_36 = arith.constant dense<0.000000e+00> : vector<8x128xf32>
    %101 = tpu.matmul %99, %100, %cst_36 {dimension_numbers = #tpu.dot_dimension_numbers<[1], [0], [0], [1], [0, 0, 1, 1], [], []>} : vector<8x128xf32>, vector<128x128xf32>, vector<8x128xf32> -> vector<8x128xf32>
    %c0_37 = arith.constant 0 : index
    %c0_38 = arith.constant 0 : index
    %102 = vector.load %arg8[%c0_37, %c0_38] : memref<1x128xf32, #tpu.memory_space<vmem>>, vector<1x128xf32>
    %103 = vector.broadcast %102 : vector<1x128xf32> to vector<8x128xf32>
    %104 = arith.addf %101, %103 : vector<8x128xf32>
    %cst_39 = arith.constant 0.000000e+00 : f32
    %105 = vector.broadcast %cst_39 : f32 to vector<8x128xf32>
    %106 = arith.maximumf %104, %105 : vector<8x128xf32>
    %c0_40 = arith.constant 0 : index
    %c0_41 = arith.constant 0 : index
    %107 = vector.load %arg9[%c0_40, %c0_41] : memref<128x128xf32, #tpu.memory_space<vmem>>, vector<128x128xf32>
    %cst_42 = arith.constant dense<0.000000e+00> : vector<8x128xf32>
    %108 = tpu.matmul %106, %107, %cst_42 {dimension_numbers = #tpu.dot_dimension_numbers<[1], [0], [0], [1], [0, 0, 1, 1], [], []>} : vector<8x128xf32>, vector<128x128xf32>, vector<8x128xf32> -> vector<8x128xf32>
    %c0_43 = arith.constant 0 : index
    %c0_44 = arith.constant 0 : index
    %109 = vector.load %arg10[%c0_43, %c0_44] : memref<1x128xf32, #tpu.memory_space<vmem>>, vector<1x128xf32>
    %110 = vector.broadcast %109 : vector<1x128xf32> to vector<8x128xf32>
    %111 = arith.addf %108, %110 : vector<8x128xf32>
    %112 = arith.addf %99, %111 : vector<8x128xf32>
    %c0_45 = arith.constant 0 : index
    %c0_46 = arith.constant 0 : index
    %113 = vector.load %arg11[%c0_45, %c0_46] : memref<1x128xf32, #tpu.memory_space<vmem>>, vector<1x128xf32>
    %c0_47 = arith.constant 0 : index
    %c0_48 = arith.constant 0 : index
    %114 = vector.load %arg12[%c0_47, %c0_48] : memref<1x128xf32, #tpu.memory_space<vmem>>, vector<1x128xf32>
    %cst_49 = arith.constant dense<0.000000e+00> : vector<8xf32>
    %115 = vector.multi_reduction <add>, %112, %cst_49 [1] : vector<8x128xf32> to vector<8xf32>
    %116 = vector.shape_cast %115 : vector<8xf32> to vector<8x1xf32>
    %cst_50 = arith.constant 3.125000e-02 : f32
    %117 = vector.broadcast %cst_50 : f32 to vector<8x1xf32>
    %118 = arith.mulf %116, %117 : vector<8x1xf32>
    %119 = vector.broadcast %118 : vector<8x1xf32> to vector<8x128xf32>
    %120 = arith.subf %112, %119 : vector<8x128xf32>
    %121 = vector.broadcast %6 : vector<1x128xf32> to vector<8x128xf32>
    %122 = arith.mulf %120, %121 : vector<8x128xf32>
    %123 = arith.mulf %122, %122 : vector<8x128xf32>
    %cst_51 = arith.constant dense<0.000000e+00> : vector<8xf32>
    %124 = vector.multi_reduction <add>, %123, %cst_51 [1] : vector<8x128xf32> to vector<8xf32>
    %125 = vector.shape_cast %124 : vector<8xf32> to vector<8x1xf32>
    %cst_52 = arith.constant 3.125000e-02 : f32
    %126 = vector.broadcast %cst_52 : f32 to vector<8x1xf32>
    %127 = arith.mulf %125, %126 : vector<8x1xf32>
    %cst_53 = arith.constant 9.99999974E-6 : f32
    %128 = vector.broadcast %cst_53 : f32 to vector<8x1xf32>
    %129 = arith.addf %127, %128 : vector<8x1xf32>
    %130 = math.rsqrt %129 : vector<8x1xf32>
    %131 = vector.broadcast %130 : vector<8x1xf32> to vector<8x128xf32>
    %132 = arith.mulf %122, %131 : vector<8x128xf32>
    %133 = vector.broadcast %113 : vector<1x128xf32> to vector<8x128xf32>
    %134 = arith.mulf %132, %133 : vector<8x128xf32>
    %135 = vector.broadcast %114 : vector<1x128xf32> to vector<8x128xf32>
    %136 = arith.addf %134, %135 : vector<8x128xf32>
    %c0_54 = arith.constant 0 : index
    %c0_55 = arith.constant 0 : index
    %c0_56 = arith.constant 0 : index
    %137 = vector.load %arg13[%c0_54, %c0_55, %c0_56] : memref<1x8x128xf32, #tpu.memory_space<vmem>>, vector<1x8x128xf32>
    %138 = vector.shape_cast %137 : vector<1x8x128xf32> to vector<8x128xf32>
    %139 = vector.shape_cast %136 : vector<8x128xf32> to vector<1x8x128xf32>
    tpu.vector_store %arg13[%c0_54, %c0_55, %c0_56], %139 {strides = array<i32>} : memref<1x8x128xf32, #tpu.memory_space<vmem>>, vector<1x8x128xf32>,
    return
  }
  func.func @transform_0(%arg0: i32) -> (i32, i32, i32) {
    %c0_i32 = arith.constant 0 : i32
    %c0_i32_0 = arith.constant 0 : i32
    %c0_i32_1 = arith.constant 0 : i32
    return %arg0, %c0_i32, %c0_i32_0 : i32, i32, i32
  }
  func.func @transform_1(%arg0: i32) -> (i32, i32) {
    %c0_i32 = arith.constant 0 : i32
    %c0_i32_0 = arith.constant 0 : i32
    %c0_i32_1 = arith.constant 0 : i32
    return %c0_i32, %c0_i32_0 : i32, i32
  }
  func.func @transform_2(%arg0: i32) -> (i32, i32) {
    %c0_i32 = arith.constant 0 : i32
    %c0_i32_0 = arith.constant 0 : i32
    %c0_i32_1 = arith.constant 0 : i32
    return %c0_i32, %c0_i32_0 : i32, i32
  }
  func.func @transform_3(%arg0: i32) -> (i32, i32) {
    %c0_i32 = arith.constant 0 : i32
    %c0_i32_0 = arith.constant 0 : i32
    %c0_i32_1 = arith.constant 0 : i32
    return %c0_i32, %c0_i32_0 : i32, i32
  }
  func.func @transform_4(%arg0: i32) -> (i32, i32) {
    %c0_i32 = arith.constant 0 : i32
    %c0_i32_0 = arith.constant 0 : i32
    %c0_i32_1 = arith.constant 0 : i32
    return %c0_i32, %c0_i32_0 : i32, i32
  }
  func.func @transform_5(%arg0: i32) -> (i32, i32) {
    %c0_i32 = arith.constant 0 : i32
    %c0_i32_0 = arith.constant 0 : i32
    %c0_i32_1 = arith.constant 0 : i32
    return %c0_i32, %c0_i32_0 : i32, i32
  }
  func.func @transform_6(%arg0: i32) -> (i32, i32) {
    %c0_i32 = arith.constant 0 : i32
    %c0_i32_0 = arith.constant 0 : i32
    %c0_i32_1 = arith.constant 0 : i32
    return %c0_i32, %c0_i32_0 : i32, i32
  }
  func.func @transform_7(%arg0: i32) -> (i32, i32) {
    %c0_i32 = arith.constant 0 : i32
    %c0_i32_0 = arith.constant 0 : i32
    %c0_i32_1 = arith.constant 0 : i32
    return %c0_i32, %c0_i32_0 : i32, i32
  }
  func.func @transform_8(%arg0: i32) -> (i32, i32) {
    %c0_i32 = arith.constant 0 : i32
    %c0_i32_0 = arith.constant 0 : i32
    %c0_i32_1 = arith.constant 0 : i32
    return %c0_i32, %c0_i32_0 : i32, i32
  }
  func.func @transform_9(%arg0: i32) -> (i32, i32) {
    %c0_i32 = arith.constant 0 : i32
    %c0_i32_0 = arith.constant 0 : i32
    %c0_i32_1 = arith.constant 0 : i32
    return %c0_i32, %c0_i32_0 : i32, i32
  }
  func.func @transform_10(%arg0: i32) -> (i32, i32) {
    %c0_i32 = arith.constant 0 : i32
    %c0_i32_0 = arith.constant 0 : i32
    %c0_i32_1 = arith.constant 0 : i32
    return %c0_i32, %c0_i32_0 : i32, i32
  }
  func.func @transform_11(%arg0: i32) -> (i32, i32) {
    %c0_i32 = arith.constant 0 : i32
    %c0_i32_0 = arith.constant 0 : i32
    %c0_i32_1 = arith.constant 0 : i32
    return %c0_i32, %c0_i32_0 : i32, i32
  }
  func.func @transform_12(%arg0: i32) -> (i32, i32, i32) {
    %c0_i32 = arith.constant 0 : i32
    %c0_i32_0 = arith.constant 0 : i32
    %c0_i32_1 = arith.constant 0 : i32
    return %arg0, %c0_i32, %c0_i32_0 : i32, i32, i32
  }
}

module attributes {stable_mosaic.version = 11 : i64} {
  func.func @_encoder_block_kernel(%arg0: i32, %arg1: memref<1x8x128xf32, #tpu.memory_space<vmem>>, %arg2: memref<128x1536xf32, #tpu.memory_space<vmem>>, %arg3: memref<512x128xf32, #tpu.memory_space<vmem>>, %arg4: memref<1x128xf32, #tpu.memory_space<vmem>>, %arg5: memref<1x128xf32, #tpu.memory_space<vmem>>, %arg6: memref<1x128xf32, #tpu.memory_space<vmem>>, %arg7: memref<128x128xf32, #tpu.memory_space<vmem>>, %arg8: memref<1x128xf32, #tpu.memory_space<vmem>>, %arg9: memref<128x128xf32, #tpu.memory_space<vmem>>, %arg10: memref<1x128xf32, #tpu.memory_space<vmem>>, %arg11: memref<1x128xf32, #tpu.memory_space<vmem>>, %arg12: memref<1x128xf32, #tpu.memory_space<vmem>>, %arg13: memref<1x8x128xf32, #tpu.memory_space<vmem>>) attributes {dimension_semantics = [#tpu.dimension_semantics<parallel>], iteration_bounds = array<i64: 2>, scalar_prefetch = 0 : i64, scratch_operands = 0 : i64, tpu.core_type = #tpu.core_type<tc>, window_params = [{transform_indices = @transform_0, window_bounds = array<i64: 1, 8, 128>}, {pipeline_mode = #tpu.pipeline_mode<synchronous>, transform_indices = @transform_1, window_bounds = array<i64: 128, 1536>}, {pipeline_mode = #tpu.pipeline_mode<synchronous>, transform_indices = @transform_2, window_bounds = array<i64: 512, 128>}, {pipeline_mode = #tpu.pipeline_mode<synchronous>, transform_indices = @transform_3, window_bounds = array<i64: 1, 128>}, {pipeline_mode = #tpu.pipeline_mode<synchronous>, transform_indices = @transform_4, window_bounds = array<i64: 1, 128>}, {pipeline_mode = #tpu.pipeline_mode<synchronous>, transform_indices = @transform_5, window_bounds = array<i64: 1, 128>}, {pipeline_mode = #tpu.pipeline_mode<synchronous>, transform_indices = @transform_6, window_bounds = array<i64: 128, 128>}, {pipeline_mode = #tpu.pipeline_mode<synchronous>, transform_indices = @transform_7, window_bounds = array<i64: 1, 128>}, {pipeline_mode = #tpu.pipeline_mode<synchronous>, transform_indices = @transform_8, window_bounds = array<i64: 128, 128>}, {pipeline_mode = #tpu.pipeline_mode<synchronous>, transform_indices = @transform_9, window_bounds = array<i64: 1, 128>}, {pipeline_mode = #tpu.pipeline_mode<synchronous>, transform_indices = @transform_10, window_bounds = array<i64: 1, 128>}, {pipeline_mode = #tpu.pipeline_mode<synchronous>, transform_indices = @transform_11, window_bounds = array<i64: 1, 128>}, {transform_indices = @transform_12, window_bounds = array<i64: 1, 8, 128>}]} {
    %c0 = arith.constant 0 : index
    %c0_0 = arith.constant 0 : index
    %c0_1 = arith.constant 0 : index
    %0 = vector.load %arg1[%c0, %c0_0, %c0_1] : memref<1x8x128xf32, #tpu.memory_space<vmem>>, vector<1x8x128xf32>
    %1 = vector.shape_cast %0 : vector<1x8x128xf32> to vector<8x128xf32>
    %2 = tpu.iota {dimensions = array<i32: 1>} : vector<1x128xi32>
    %c32_i32 = arith.constant 32 : i32
    %3 = vector.broadcast %c32_i32 : i32 to vector<1x128xi32>
    %4 = arith.cmpi slt, %2, %3 : vector<1x128xi32>
    %5 = arith.extui %4 : vector<1x128xi1> to vector<1x128xi32>
    %6 = arith.sitofp %5 : vector<1x128xi32> to vector<1x128xf32>
    %c0_2 = arith.constant 0 : index
    %c0_3 = arith.constant 0 : index
    %7 = vector.load %arg2[%c0_2, %c0_3] : memref<128x1536xf32, #tpu.memory_space<vmem>>, vector<128x1536xf32>
    %cst = arith.constant dense<0.000000e+00> : vector<8x1536xf32>
    %8 = tpu.matmul %1, %7, %cst {dimension_numbers = #tpu.dot_dimension_numbers<[1], [0], [0], [1], [0, 0, 1, 1], [], []>} : vector<8x128xf32>, vector<128x1536xf32>, vector<8x1536xf32> -> vector<8x1536xf32>
    %9 = vector.extract_strided_slice %8 {offsets = [0, 0], sizes = [8, 128], strides = [1, 1]} : vector<8x1536xf32> to vector<8x128xf32>
    %10 = vector.extract_strided_slice %8 {offsets = [0, 512], sizes = [8, 128], strides = [1, 1]} : vector<8x1536xf32> to vector<8x128xf32>
    %11 = vector.extract_strided_slice %8 {offsets = [0, 1024], sizes = [8, 128], strides = [1, 1]} : vector<8x1536xf32> to vector<8x128xf32>
    %cst_4 = arith.constant dense<0.000000e+00> : vector<8x8xf32>
    %12 = tpu.matmul %9, %10, %cst_4 {dimension_numbers = #tpu.dot_dimension_numbers<[1], [1], [0], [0], [0, 0, 1, 0], [], []>} : vector<8x128xf32>, vector<8x128xf32>, vector<8x8xf32> -> vector<8x8xf32>
    %cst_5 = arith.constant dense<0xFF800000> : vector<8xf32>
    %13 = vector.multi_reduction <maximumf>, %12, %cst_5 [1] : vector<8x8xf32> to vector<8xf32>
    %14 = vector.shape_cast %13 : vector<8xf32> to vector<8x1xf32>
    %15 = vector.broadcast %14 : vector<8x1xf32> to vector<8x8xf32>
    %16 = arith.subf %12, %15 : vector<8x8xf32>
    %17 = math.exp %16 : vector<8x8xf32>
    %cst_6 = arith.constant dense<0.000000e+00> : vector<8xf32>
    %18 = vector.multi_reduction <add>, %17, %cst_6 [1] : vector<8x8xf32> to vector<8xf32>
    %19 = vector.shape_cast %18 : vector<8xf32> to vector<8x1xf32>
    %20 = tpu.reciprocal %19 : vector<8x1xf32> -> vector<8x1xf32>
    %21 = vector.broadcast %20 : vector<8x1xf32> to vector<8x8xf32>
    %22 = arith.mulf %17, %21 : vector<8x8xf32>
    %cst_7 = arith.constant dense<0.000000e+00> : vector<8x128xf32>
    %23 = tpu.matmul %22, %11, %cst_7 {dimension_numbers = #tpu.dot_dimension_numbers<[1], [0], [0], [1], [0, 0, 1, 1], [], []>} : vector<8x8xf32>, vector<8x128xf32>, vector<8x128xf32> -> vector<8x128xf32>
    %24 = vector.extract_strided_slice %8 {offsets = [0, 128], sizes = [8, 128], strides = [1, 1]} : vector<8x1536xf32> to vector<8x128xf32>
    %25 = vector.extract_strided_slice %8 {offsets = [0, 640], sizes = [8, 128], strides = [1, 1]} : vector<8x1536xf32> to vector<8x128xf32>
    %26 = vector.extract_strided_slice %8 {offsets = [0, 1152], sizes = [8, 128], strides = [1, 1]} : vector<8x1536xf32> to vector<8x128xf32>
    %cst_8 = arith.constant dense<0.000000e+00> : vector<8x8xf32>
    %27 = tpu.matmul %24, %25, %cst_8 {dimension_numbers = #tpu.dot_dimension_numbers<[1], [1], [0], [0], [0, 0, 1, 0], [], []>} : vector<8x128xf32>, vector<8x128xf32>, vector<8x8xf32> -> vector<8x8xf32>
    %cst_9 = arith.constant dense<0xFF800000> : vector<8xf32>
    %28 = vector.multi_reduction <maximumf>, %27, %cst_9 [1] : vector<8x8xf32> to vector<8xf32>
    %29 = vector.shape_cast %28 : vector<8xf32> to vector<8x1xf32>
    %30 = vector.broadcast %29 : vector<8x1xf32> to vector<8x8xf32>
    %31 = arith.subf %27, %30 : vector<8x8xf32>
    %32 = math.exp %31 : vector<8x8xf32>
    %cst_10 = arith.constant dense<0.000000e+00> : vector<8xf32>
    %33 = vector.multi_reduction <add>, %32, %cst_10 [1] : vector<8x8xf32> to vector<8xf32>
    %34 = vector.shape_cast %33 : vector<8xf32> to vector<8x1xf32>
    %35 = tpu.reciprocal %34 : vector<8x1xf32> -> vector<8x1xf32>
    %36 = vector.broadcast %35 : vector<8x1xf32> to vector<8x8xf32>
    %37 = arith.mulf %32, %36 : vector<8x8xf32>
    %cst_11 = arith.constant dense<0.000000e+00> : vector<8x128xf32>
    %38 = tpu.matmul %37, %26, %cst_11 {dimension_numbers = #tpu.dot_dimension_numbers<[1], [0], [0], [1], [0, 0, 1, 1], [], []>} : vector<8x8xf32>, vector<8x128xf32>, vector<8x128xf32> -> vector<8x128xf32>
    %39 = vector.extract_strided_slice %8 {offsets = [0, 256], sizes = [8, 128], strides = [1, 1]} : vector<8x1536xf32> to vector<8x128xf32>
    %40 = vector.extract_strided_slice %8 {offsets = [0, 768], sizes = [8, 128], strides = [1, 1]} : vector<8x1536xf32> to vector<8x128xf32>
    %41 = vector.extract_strided_slice %8 {offsets = [0, 1280], sizes = [8, 128], strides = [1, 1]} : vector<8x1536xf32> to vector<8x128xf32>
    %cst_12 = arith.constant dense<0.000000e+00> : vector<8x8xf32>
    %42 = tpu.matmul %39, %40, %cst_12 {dimension_numbers = #tpu.dot_dimension_numbers<[1], [1], [0], [0], [0, 0, 1, 0], [], []>} : vector<8x128xf32>, vector<8x128xf32>, vector<8x8xf32> -> vector<8x8xf32>
    %cst_13 = arith.constant dense<0xFF800000> : vector<8xf32>
    %43 = vector.multi_reduction <maximumf>, %42, %cst_13 [1] : vector<8x8xf32> to vector<8xf32>
    %44 = vector.shape_cast %43 : vector<8xf32> to vector<8x1xf32>
    %45 = vector.broadcast %44 : vector<8x1xf32> to vector<8x8xf32>
    %46 = arith.subf %42, %45 : vector<8x8xf32>
    %47 = math.exp %46 : vector<8x8xf32>
    %cst_14 = arith.constant dense<0.000000e+00> : vector<8xf32>
    %48 = vector.multi_reduction <add>, %47, %cst_14 [1] : vector<8x8xf32> to vector<8xf32>
    %49 = vector.shape_cast %48 : vector<8xf32> to vector<8x1xf32>
    %50 = tpu.reciprocal %49 : vector<8x1xf32> -> vector<8x1xf32>
    %51 = vector.broadcast %50 : vector<8x1xf32> to vector<8x8xf32>
    %52 = arith.mulf %47, %51 : vector<8x8xf32>
    %cst_15 = arith.constant dense<0.000000e+00> : vector<8x128xf32>
    %53 = tpu.matmul %52, %41, %cst_15 {dimension_numbers = #tpu.dot_dimension_numbers<[1], [0], [0], [1], [0, 0, 1, 1], [], []>} : vector<8x8xf32>, vector<8x128xf32>, vector<8x128xf32> -> vector<8x128xf32>
    %54 = vector.extract_strided_slice %8 {offsets = [0, 384], sizes = [8, 128], strides = [1, 1]} : vector<8x1536xf32> to vector<8x128xf32>
    %55 = vector.extract_strided_slice %8 {offsets = [0, 896], sizes = [8, 128], strides = [1, 1]} : vector<8x1536xf32> to vector<8x128xf32>
    %56 = vector.extract_strided_slice %8 {offsets = [0, 1408], sizes = [8, 128], strides = [1, 1]} : vector<8x1536xf32> to vector<8x128xf32>
    %cst_16 = arith.constant dense<0.000000e+00> : vector<8x8xf32>
    %57 = tpu.matmul %54, %55, %cst_16 {dimension_numbers = #tpu.dot_dimension_numbers<[1], [1], [0], [0], [0, 0, 1, 0], [], []>} : vector<8x128xf32>, vector<8x128xf32>, vector<8x8xf32> -> vector<8x8xf32>
    %cst_17 = arith.constant dense<0xFF800000> : vector<8xf32>
    %58 = vector.multi_reduction <maximumf>, %57, %cst_17 [1] : vector<8x8xf32> to vector<8xf32>
    %59 = vector.shape_cast %58 : vector<8xf32> to vector<8x1xf32>
    %60 = vector.broadcast %59 : vector<8x1xf32> to vector<8x8xf32>
    %61 = arith.subf %57, %60 : vector<8x8xf32>
    %62 = math.exp %61 : vector<8x8xf32>
    %cst_18 = arith.constant dense<0.000000e+00> : vector<8xf32>
    %63 = vector.multi_reduction <add>, %62, %cst_18 [1] : vector<8x8xf32> to vector<8xf32>
    %64 = vector.shape_cast %63 : vector<8xf32> to vector<8x1xf32>
    %65 = tpu.reciprocal %64 : vector<8x1xf32> -> vector<8x1xf32>
    %66 = vector.broadcast %65 : vector<8x1xf32> to vector<8x8xf32>
    %67 = arith.mulf %62, %66 : vector<8x8xf32>
    %cst_19 = arith.constant dense<0.000000e+00> : vector<8x128xf32>
    %68 = tpu.matmul %67, %56, %cst_19 {dimension_numbers = #tpu.dot_dimension_numbers<[1], [0], [0], [1], [0, 0, 1, 1], [], []>} : vector<8x8xf32>, vector<8x128xf32>, vector<8x128xf32> -> vector<8x128xf32>
    %69 = tpu.concatenate %23, %38, %53, %68 in 1 : vector<8x128xf32>, vector<8x128xf32>, vector<8x128xf32>, vector<8x128xf32> -> vector<8x512xf32>
    %c0_20 = arith.constant 0 : index
    %c0_21 = arith.constant 0 : index
    %70 = vector.load %arg3[%c0_20, %c0_21] : memref<512x128xf32, #tpu.memory_space<vmem>>, vector<512x128xf32>
    %cst_22 = arith.constant dense<0.000000e+00> : vector<8x128xf32>
    %71 = tpu.matmul %69, %70, %cst_22 {dimension_numbers = #tpu.dot_dimension_numbers<[1], [0], [0], [1], [0, 0, 1, 1], [], []>} : vector<8x512xf32>, vector<512x128xf32>, vector<8x128xf32> -> vector<8x128xf32>
    %c0_23 = arith.constant 0 : index
    %c0_24 = arith.constant 0 : index
    %72 = vector.load %arg4[%c0_23, %c0_24] : memref<1x128xf32, #tpu.memory_space<vmem>>, vector<1x128xf32>
    %73 = vector.broadcast %72 : vector<1x128xf32> to vector<8x128xf32>
    %74 = arith.addf %71, %73 : vector<8x128xf32>
    %75 = arith.addf %74, %1 : vector<8x128xf32>
    %c0_25 = arith.constant 0 : index
    %c0_26 = arith.constant 0 : index
    %76 = vector.load %arg5[%c0_25, %c0_26] : memref<1x128xf32, #tpu.memory_space<vmem>>, vector<1x128xf32>
    %c0_27 = arith.constant 0 : index
    %c0_28 = arith.constant 0 : index
    %77 = vector.load %arg6[%c0_27, %c0_28] : memref<1x128xf32, #tpu.memory_space<vmem>>, vector<1x128xf32>
    %cst_29 = arith.constant dense<0.000000e+00> : vector<8xf32>
    %78 = vector.multi_reduction <add>, %75, %cst_29 [1] : vector<8x128xf32> to vector<8xf32>
    %79 = vector.shape_cast %78 : vector<8xf32> to vector<8x1xf32>
    %cst_30 = arith.constant 3.125000e-02 : f32
    %80 = vector.broadcast %cst_30 : f32 to vector<8x1xf32>
    %81 = arith.mulf %79, %80 : vector<8x1xf32>
    %82 = vector.broadcast %81 : vector<8x1xf32> to vector<8x128xf32>
    %83 = arith.subf %75, %82 : vector<8x128xf32>
    %84 = vector.broadcast %6 : vector<1x128xf32> to vector<8x128xf32>
    %85 = arith.mulf %83, %84 : vector<8x128xf32>
    %86 = arith.mulf %85, %85 : vector<8x128xf32>
    %cst_31 = arith.constant dense<0.000000e+00> : vector<8xf32>
    %87 = vector.multi_reduction <add>, %86, %cst_31 [1] : vector<8x128xf32> to vector<8xf32>
    %88 = vector.shape_cast %87 : vector<8xf32> to vector<8x1xf32>
    %cst_32 = arith.constant 3.125000e-02 : f32
    %89 = vector.broadcast %cst_32 : f32 to vector<8x1xf32>
    %90 = arith.mulf %88, %89 : vector<8x1xf32>
    %cst_33 = arith.constant 9.99999974E-6 : f32
    %91 = vector.broadcast %cst_33 : f32 to vector<8x1xf32>
    %92 = arith.addf %90, %91 : vector<8x1xf32>
    %93 = math.rsqrt %92 : vector<8x1xf32>
    %94 = vector.broadcast %93 : vector<8x1xf32> to vector<8x128xf32>
    %95 = arith.mulf %85, %94 : vector<8x128xf32>
    %96 = vector.broadcast %76 : vector<1x128xf32> to vector<8x128xf32>
    %97 = arith.mulf %95, %96 : vector<8x128xf32>
    %98 = vector.broadcast %77 : vector<1x128xf32> to vector<8x128xf32>
    %99 = arith.addf %97, %98 : vector<8x128xf32>
    %c0_34 = arith.constant 0 : index
    %c0_35 = arith.constant 0 : index
    %100 = vector.load %arg7[%c0_34, %c0_35] : memref<128x128xf32, #tpu.memory_space<vmem>>, vector<128x128xf32>
    %cst_36 = arith.constant dense<0.000000e+00> : vector<8x128xf32>
    %101 = tpu.matmul %99, %100, %cst_36 {dimension_numbers = #tpu.dot_dimension_numbers<[1], [0], [0], [1], [0, 0, 1, 1], [], []>} : vector<8x128xf32>, vector<128x128xf32>, vector<8x128xf32> -> vector<8x128xf32>
    %c0_37 = arith.constant 0 : index
    %c0_38 = arith.constant 0 : index
    %102 = vector.load %arg8[%c0_37, %c0_38] : memref<1x128xf32, #tpu.memory_space<vmem>>, vector<1x128xf32>
    %103 = vector.broadcast %102 : vector<1x128xf32> to vector<8x128xf32>
    %104 = arith.addf %101, %103 : vector<8x128xf32>
    %cst_39 = arith.constant 0.000000e+00 : f32
    %105 = vector.broadcast %cst_39 : f32 to vector<8x128xf32>
    %106 = arith.maximumf %104, %105 : vector<8x128xf32>
    %c0_40 = arith.constant 0 : index
    %c0_41 = arith.constant 0 : index
    %107 = vector.load %arg9[%c0_40, %c0_41] : memref<128x128xf32, #tpu.memory_space<vmem>>, vector<128x128xf32>
    %cst_42 = arith.constant dense<0.000000e+00> : vector<8x128xf32>
    %108 = tpu.matmul %106, %107, %cst_42 {dimension_numbers = #tpu.dot_dimension_numbers<[1], [0], [0], [1], [0, 0, 1, 1], [], []>} : vector<8x128xf32>, vector<128x128xf32>, vector<8x128xf32> -> vector<8x128xf32>
    %c0_43 = arith.constant 0 : index
    %c0_44 = arith.constant 0 : index
    %109 = vector.load %arg10[%c0_43, %c0_44] : memref<1x128xf32, #tpu.memory_space<vmem>>, vector<1x128xf32>
    %110 = vector.broadcast %109 : vector<1x128xf32> to vector<8x128xf32>
    %111 = arith.addf %108, %110 : vector<8x128xf32>
    %112 = arith.addf %99, %111 : vector<8x128xf32>
    %c0_45 = arith.constant 0 : index
    %c0_46 = arith.constant 0 : index
    %113 = vector.load %arg11[%c0_45, %c0_46] : memref<1x128xf32, #tpu.memory_space<vmem>>, vector<1x128xf32>
    %c0_47 = arith.constant 0 : index
    %c0_48 = arith.constant 0 : index
    %114 = vector.load %arg12[%c0_47, %c0_48] : memref<1x128xf32, #tpu.memory_space<vmem>>, vector<1x128xf32>
    %cst_49 = arith.constant dense<0.000000e+00> : vector<8xf32>
    %115 = vector.multi_reduction <add>, %112, %cst_49 [1] : vector<8x128xf32> to vector<8xf32>
    %116 = vector.shape_cast %115 : vector<8xf32> to vector<8x1xf32>
    %cst_50 = arith.constant 3.125000e-02 : f32
    %117 = vector.broadcast %cst_50 : f32 to vector<8x1xf32>
    %118 = arith.mulf %116, %117 : vector<8x1xf32>
    %119 = vector.broadcast %118 : vector<8x1xf32> to vector<8x128xf32>
    %120 = arith.subf %112, %119 : vector<8x128xf32>
    %121 = vector.broadcast %6 : vector<1x128xf32> to vector<8x128xf32>
    %122 = arith.mulf %120, %121 : vector<8x128xf32>
    %123 = arith.mulf %122, %122 : vector<8x128xf32>
    %cst_51 = arith.constant dense<0.000000e+00> : vector<8xf32>
    %124 = vector.multi_reduction <add>, %123, %cst_51 [1] : vector<8x128xf32> to vector<8xf32>
    %125 = vector.shape_cast %124 : vector<8xf32> to vector<8x1xf32>
    %cst_52 = arith.constant 3.125000e-02 : f32
    %126 = vector.broadcast %cst_52 : f32 to vector<8x1xf32>
    %127 = arith.mulf %125, %126 : vector<8x1xf32>
    %cst_53 = arith.constant 9.99999974E-6 : f32
    %128 = vector.broadcast %cst_53 : f32 to vector<8x1xf32>
    %129 = arith.addf %127, %128 : vector<8x1xf32>
    %130 = math.rsqrt %129 : vector<8x1xf32>
    %131 = vector.broadcast %130 : vector<8x1xf32> to vector<8x128xf32>
    %132 = arith.mulf %122, %131 : vector<8x128xf32>
    %133 = vector.broadcast %113 : vector<1x128xf32> to vector<8x128xf32>
    %134 = arith.mulf %132, %133 : vector<8x128xf32>
    %135 = vector.broadcast %114 : vector<1x128xf32> to vector<8x128xf32>
    %136 = arith.addf %134, %135 : vector<8x128xf32>
    %c0_54 = arith.constant 0 : index
    %c0_55 = arith.constant 0 : index
    %c0_56 = arith.constant 0 : index
    %137 = vector.load %arg13[%c0_54, %c0_55, %c0_56] : memref<1x8x128xf32, #tpu.memory_space<vmem>>, vector<1x8x128xf32>
    %138 = vector.shape_cast %137 : vector<1x8x128xf32> to vector<8x128xf32>
    %139 = vector.shape_cast %136 : vector<8x128xf32> to vector<1x8x128xf32>
    tpu.vector_store %arg13[%c0_54, %c0_55, %c0_56], %139 {strides = array<i32>} : memref<1x8x128xf32, #tpu.memory_space<vmem>>, vector<1x8x128xf32>,
    return
  }
  func.func @transform_0(%arg0: i32) -> (i32, i32, i32) {
    %c0_i32 = arith.constant 0 : i32
    %c0_i32_0 = arith.constant 0 : i32
    %c0_i32_1 = arith.constant 0 : i32
    return %arg0, %c0_i32, %c0_i32_0 : i32, i32, i32
  }
  func.func @transform_1(%arg0: i32) -> (i32, i32) {
    %c0_i32 = arith.constant 0 : i32
    %c0_i32_0 = arith.constant 0 : i32
    %c0_i32_1 = arith.constant 0 : i32
    return %c0_i32, %c0_i32_0 : i32, i32
  }
  func.func @transform_2(%arg0: i32) -> (i32, i32) {
    %c0_i32 = arith.constant 0 : i32
    %c0_i32_0 = arith.constant 0 : i32
    %c0_i32_1 = arith.constant 0 : i32
    return %c0_i32, %c0_i32_0 : i32, i32
  }
  func.func @transform_3(%arg0: i32) -> (i32, i32) {
    %c0_i32 = arith.constant 0 : i32
    %c0_i32_0 = arith.constant 0 : i32
    %c0_i32_1 = arith.constant 0 : i32
    return %c0_i32, %c0_i32_0 : i32, i32
  }
  func.func @transform_4(%arg0: i32) -> (i32, i32) {
    %c0_i32 = arith.constant 0 : i32
    %c0_i32_0 = arith.constant 0 : i32
    %c0_i32_1 = arith.constant 0 : i32
    return %c0_i32, %c0_i32_0 : i32, i32
  }
  func.func @transform_5(%arg0: i32) -> (i32, i32) {
    %c0_i32 = arith.constant 0 : i32
    %c0_i32_0 = arith.constant 0 : i32
    %c0_i32_1 = arith.constant 0 : i32
    return %c0_i32, %c0_i32_0 : i32, i32
  }
  func.func @transform_6(%arg0: i32) -> (i32, i32) {
    %c0_i32 = arith.constant 0 : i32
    %c0_i32_0 = arith.constant 0 : i32
    %c0_i32_1 = arith.constant 0 : i32
    return %c0_i32, %c0_i32_0 : i32, i32
  }
  func.func @transform_7(%arg0: i32) -> (i32, i32) {
    %c0_i32 = arith.constant 0 : i32
    %c0_i32_0 = arith.constant 0 : i32
    %c0_i32_1 = arith.constant 0 : i32
    return %c0_i32, %c0_i32_0 : i32, i32
  }
  func.func @transform_8(%arg0: i32) -> (i32, i32) {
    %c0_i32 = arith.constant 0 : i32
    %c0_i32_0 = arith.constant 0 : i32
    %c0_i32_1 = arith.constant 0 : i32
    return %c0_i32, %c0_i32_0 : i32, i32
  }
  func.func @transform_9(%arg0: i32) -> (i32, i32) {
    %c0_i32 = arith.constant 0 : i32
    %c0_i32_0 = arith.constant 0 : i32
    %c0_i32_1 = arith.constant 0 : i32
    return %c0_i32, %c0_i32_0 : i32, i32
  }
  func.func @transform_10(%arg0: i32) -> (i32, i32) {
    %c0_i32 = arith.constant 0 : i32
    %c0_i32_0 = arith.constant 0 : i32
    %c0_i32_1 = arith.constant 0 : i32
    return %c0_i32, %c0_i32_0 : i32, i32
  }
  func.func @transform_11(%arg0: i32) -> (i32, i32) {
    %c0_i32 = arith.constant 0 : i32
    %c0_i32_0 = arith.constant 0 : i32
    %c0_i32_1 = arith.constant 0 : i32
    return %c0_i32, %c0_i32_0 : i32, i32
  }
  func.func @transform_12(%arg0: i32) -> (i32, i32, i32) {
    %c0_i32 = arith.constant 0 : i32
    %c0_i32_0 = arith.constant 0 : i32
    %c0_i32_1 = arith.constant 0 : i32
    return %arg0, %c0_i32, %c0_i32_0 : i32, i32, i32
  }
}

</mosaic_0001>

<llo_original>
// kernel: _lambda_.3
$region0: #{_lambda_.3}
  #allocation0 [shape = 'u32[]', space=smem, size = 0x4, offset = 0x4, fixed_abs, tag = 'smem constant byte address 0x4 - core index']
  #allocation1 [shape = 'u32[144,128]{1,0:T(1,128)}', space=vmem, size = 0x12000, scoped, tag = 'internal scratch']
  %s0 = inlined_call_operand.vmem [shape: f32[2,8,128], index: 0, kind: input, shape index: {}]
  %s1 = inlined_call_operand.vmem [shape: f32[128,1536], index: 1, kind: input, shape index: {}]
  %s2 = inlined_call_operand.vmem [shape: f32[512,128], index: 2, kind: input, shape index: {}]
  %s3 = inlined_call_operand.vmem [shape: f32[1,128], index: 3, kind: input, shape index: {}]
  %s4 = inlined_call_operand.vmem [shape: f32[1,128], index: 4, kind: input, shape index: {}]
  %s5 = inlined_call_operand.vmem [shape: f32[1,128], index: 5, kind: input, shape index: {}]
  %s6 = inlined_call_operand.vmem [shape: f32[128,128], index: 6, kind: input, shape index: {}]
  %s7 = inlined_call_operand.vmem [shape: f32[1,128], index: 7, kind: input, shape index: {}]
  %s8 = inlined_call_operand.vmem [shape: f32[128,128], index: 8, kind: input, shape index: {}]
  %s9 = inlined_call_operand.vmem [shape: f32[1,128], index: 9, kind: input, shape index: {}]
  %s10 = inlined_call_operand.vmem [shape: f32[1,128], index: 10, kind: input, shape index: {}]
  %s11 = inlined_call_operand.vmem [shape: f32[1,128], index: 11, kind: input, shape index: {}]
  %s12 = inlined_call_operand.hbm [shape: f32[2,8,128], index: 12, kind: output, shape index: {}]
  %s13 = sld [smem:[#allocation0]]
  $region81: #{_lambda_.3} parent=0
    _
  %s15 = ssub.s32 1, %s13
  %s16 = scalar_select 0, %s15, %s13
  $region1: #{_lambda_.3} parent=0
    #allocation2 [shape = 'u8[8192]{0}', space=vmem, size = 0x2000, scoped, tag = 'output window, operand 0']
    #allocation3 [shape = 's32[2]{0}', space=sflag, size = 0x8, scoped, tag = 'scoped memory for _lambda_.3']
    %17 = vsyncpa [#allocation3], 0
    %s18 = scalar_lea.sflag [#allocation3], 1
    %19 = vsyncpa %s18, 0
    loop: start=0, step=1, limit=4
    $region2: #{_lambda_.3} parent=1 // loop_pre_header
      _
    $region3: #{_lambda_.3} parent=1 // loop_header
      %s21 = sphi 0, %s25
      %p22 = scmp.ge.s32.totalorder %s21, 4
      %s31 = sphi 0, %s33
      %s34 = sphi 0, %s31
      %s35 = sphi 0, %s34
      %s51 = sphi 0, %s35
      %s55 = sphi 0, %s55
      %s57 = sphi 0, %s55
      %s58 = sphi 0, %s57
      %s72 = sphi 0, %s58
      %s76 = sphi 0, %s76
      %s78 = sphi 0, %s76
      %s79 = sphi 0, %s78
      %s93 = sphi 0, %s79
      %s97 = sphi 0, %s97
      %s99 = sphi 0, %s97
      %s100 = sphi 0, %s99
      %s114 = sphi 0, %s100
      %s118 = sphi 0, %s118
      %s120 = sphi 0, %s118
      %s121 = sphi 0, %s120
      %s135 = sphi 0, %s121
      %s139 = sphi 0, %s139
      %s141 = sphi 0, %s139
      %s142 = sphi 0, %s141
      %s156 = sphi 0, %s142
      %s160 = sphi 0, %s160
      %s162 = sphi 0, %s160
      %s163 = sphi 0, %s162
      %s177 = sphi 0, %s163
      %s181 = sphi 0, %s181
      %s183 = sphi 0, %s181
      %s184 = sphi 0, %s183
      %s198 = sphi 0, %s184
      %s202 = sphi 0, %s202
      %s204 = sphi 0, %s202
      %s205 = sphi 0, %s204
      %s219 = sphi 0, %s205
      %s223 = sphi 0, %s223
      %s225 = sphi 0, %s223
      %s226 = sphi 0, %s225
      %s240 = sphi 0, %s226
      %s244 = sphi 0, %s244
      %s246 = sphi 0, %s244
      %s247 = sphi 0, %s246
      %s261 = sphi 0, %s247
      %s265 = sphi 0, %s265
      %s267 = sphi 0, %s265
      %s268 = sphi 0, %s267
      %s282 = sphi 0, %s268
      %s288 = sphi 0, %s290
      %s291 = sphi 0, %s288
      %s292 = sphi 0, %s291
      %s308 = sphi 0, %s292
    $region4: #{_lambda_.3} parent=1 // loop_header_branch
      %24 = sbr.rel (%p22) target = $region8
    $region5: #{_lambda_.3} parent=1 // loop_body
      %s26 = ssub.s32 %s21, 1
      %s27 = ssub.s32 %s21, 2
      %s28 = sadd.s32 %s21, 1
      %s29 = ssub.s32 %s21, %s28
      %p30 = scmp.eq.s32.totalorder %s29, 0
      %s32 = sadd.s32 %s31, 1
      %s33 = scalar_select %p30, %s31, %s32
      %p36 = pneg %p30
      %p37 = scmp.eq.s32.totalorder %s21, 1
      %p38 = por %p36, %p37
      %p39 = scmp.ne.s32.totalorder %s31, %s34
      %p40 = scmp.eq.s32.totalorder %s21, 0
      %p41 = por %p39, %p40
      %p42 = scmp.ne.s32.totalorder %s31, %s34
      %p43 = scmp.eq.s32.totalorder %s26, 1
      %p44 = por %p42, %p43
      %p45 = scmp.ne.s32.totalorder %s34, %s35
      %p46 = scmp.eq.s32.totalorder %s26, 0
      %p47 = por %p45, %p46
      %p48 = scmp.ne.s32.totalorder %s34, %s35
      %p49 = scmp.eq.s32.totalorder %s27, 1
      %p50 = por %p48, %p49
      %p52 = scmp.ne.s32.totalorder %s35, %s51
      %p53 = scmp.eq.s32.totalorder %s27, 0
      %p54 = por %p52, %p53
      %s56 = sadd.s32 %s55, 1
      %p59 = scmp.eq.s32.totalorder %s21, 1
      %p60 = scmp.ne.s32.totalorder %s55, %s57
      %p61 = scmp.eq.s32.totalorder %s21, 0
      %p62 = por %p60, %p61
      %p63 = scmp.ne.s32.totalorder %s55, %s57
      %p64 = scmp.eq.s32.totalorder %s26, 1
      %p65 = por %p63, %p64
      %p66 = scmp.ne.s32.totalorder %s57, %s58
      %p67 = scmp.eq.s32.totalorder %s26, 0
      %p68 = por %p66, %p67
      %p69 = scmp.ne.s32.totalorder %s57, %s58
      %p70 = scmp.eq.s32.totalorder %s27, 1
      %p71 = por %p69, %p70
      %p73 = scmp.ne.s32.totalorder %s58, %s72
      %p74 = scmp.eq.s32.totalorder %s27, 0
      %p75 = por %p73, %p74
      %s77 = sadd.s32 %s76, 1
      %p80 = scmp.eq.s32.totalorder %s21, 1
      %p81 = scmp.ne.s32.totalorder %s76, %s78
      %p82 = scmp.eq.s32.totalorder %s21, 0
      %p83 = por %p81, %p82
      %p84 = scmp.ne.s32.totalorder %s76, %s78
      %p85 = scmp.eq.s32.totalorder %s26, 1
      %p86 = por %p84, %p85
      %p87 = scmp.ne.s32.totalorder %s78, %s79
      %p88 = scmp.eq.s32.totalorder %s26, 0
      %p89 = por %p87, %p88
      %p90 = scmp.ne.s32.totalorder %s78, %s79
      %p91 = scmp.eq.s32.totalorder %s27, 1
      %p92 = por %p90, %p91
      %p94 = scmp.ne.s32.totalorder %s79, %s93
      %p95 = scmp.eq.s32.totalorder %s27, 0
      %p96 = por %p94, %p95
      %s98 = sadd.s32 %s97, 1
      %p101 = scmp.eq.s32.totalorder %s21, 1
      %p102 = scmp.ne.s32.totalorder %s97, %s99
      %p103 = scmp.eq.s32.totalorder %s21, 0
      %p104 = por %p102, %p103
      %p105 = scmp.ne.s32.totalorder %s97, %s99
      %p106 = scmp.eq.s32.totalorder %s26, 1
      %p107 = por %p105, %p106
      %p108 = scmp.ne.s32.totalorder %s99, %s100
      %p109 = scmp.eq.s32.totalorder %s26, 0
      %p110 = por %p108, %p109
      %p111 = scmp.ne.s32.totalorder %s99, %s100
      %p112 = scmp.eq.s32.totalorder %s27, 1
      %p113 = por %p111, %p112
      %p115 = scmp.ne.s32.totalorder %s100, %s114
      %p116 = scmp.eq.s32.totalorder %s27, 0
      %p117 = por %p115, %p116
      %s119 = sadd.s32 %s118, 1
      %p122 = scmp.eq.s32.totalorder %s21, 1
      %p123 = scmp.ne.s32.totalorder %s118, %s120
      %p124 = scmp.eq.s32.totalorder %s21, 0
      %p125 = por %p123, %p124
      %p126 = scmp.ne.s32.totalorder %s118, %s120
      %p127 = scmp.eq.s32.totalorder %s26, 1
      %p128 = por %p126, %p127
      %p129 = scmp.ne.s32.totalorder %s120, %s121
      %p130 = scmp.eq.s32.totalorder %s26, 0
      %p131 = por %p129, %p130
      %p132 = scmp.ne.s32.totalorder %s120, %s121
      %p133 = scmp.eq.s32.totalorder %s27, 1
      %p134 = por %p132, %p133
      %p136 = scmp.ne.s32.totalorder %s121, %s135
      %p137 = scmp.eq.s32.totalorder %s27, 0
      %p138 = por %p136, %p137
      %s140 = sadd.s32 %s139, 1
      %p143 = scmp.eq.s32.totalorder %s21, 1
      %p144 = scmp.ne.s32.totalorder %s139, %s141
      %p145 = scmp.eq.s32.totalorder %s21, 0
      %p146 = por %p144, %p145
      %p147 = scmp.ne.s32.totalorder %s139, %s141
      %p148 = scmp.eq.s32.totalorder %s26, 1
      %p149 = por %p147, %p148
      %p150 = scmp.ne.s32.totalorder %s141, %s142
      %p151 = scmp.eq.s32.totalorder %s26, 0
      %p152 = por %p150, %p151
      %p153 = scmp.ne.s32.totalorder %s141, %s142
      %p154 = scmp.eq.s32.totalorder %s27, 1
      %p155 = por %p153, %p154
      %p157 = scmp.ne.s32.totalorder %s142, %s156
      %p158 = scmp.eq.s32.totalorder %s27, 0
      %p159 = por %p157, %p158
      %s161 = sadd.s32 %s160, 1
      %p164 = scmp.eq.s32.totalorder %s21, 1
      %p165 = scmp.ne.s32.totalorder %s160, %s162
      %p166 = scmp.eq.s32.totalorder %s21, 0
      %p167 = por %p165, %p166
      %p168 = scmp.ne.s32.totalorder %s160, %s162
      %p169 = scmp.eq.s32.totalorder %s26, 1
      %p170 = por %p168, %p169
      %p171 = scmp.ne.s32.totalorder %s162, %s163
      %p172 = scmp.eq.s32.totalorder %s26, 0
      %p173 = por %p171, %p172
      %p174 = scmp.ne.s32.totalorder %s162, %s163
      %p175 = scmp.eq.s32.totalorder %s27, 1
      %p176 = por %p174, %p175
      %p178 = scmp.ne.s32.totalorder %s163, %s177
      %p179 = scmp.eq.s32.totalorder %s27, 0
      %p180 = por %p178, %p179
      %s182 = sadd.s32 %s181, 1
      %p185 = scmp.eq.s32.totalorder %s21, 1
      %p186 = scmp.ne.s32.totalorder %s181, %s183
      %p187 = scmp.eq.s32.totalorder %s21, 0
      %p188 = por %p186, %p187
      %p189 = scmp.ne.s32.totalorder %s181, %s183
      %p190 = scmp.eq.s32.totalorder %s26, 1
      %p191 = por %p189, %p190
      %p192 = scmp.ne.s32.totalorder %s183, %s184
      %p193 = scmp.eq.s32.totalorder %s26, 0
      %p194 = por %p192, %p193
      %p195 = scmp.ne.s32.totalorder %s183, %s184
      %p196 = scmp.eq.s32.totalorder %s27, 1
      %p197 = por %p195, %p196
      %p199 = scmp.ne.s32.totalorder %s184, %s198
      %p200 = scmp.eq.s32.totalorder %s27, 0
      %p201 = por %p199, %p200
      %s203 = sadd.s32 %s202, 1
      %p206 = scmp.eq.s32.totalorder %s21, 1
      %p207 = scmp.ne.s32.totalorder %s202, %s204
      %p208 = scmp.eq.s32.totalorder %s21, 0
      %p209 = por %p207, %p208
      %p210 = scmp.ne.s32.totalorder %s202, %s204
      %p211 = scmp.eq.s32.totalorder %s26, 1
      %p212 = por %p210, %p211
      %p213 = scmp.ne.s32.totalorder %s204, %s205
      %p214 = scmp.eq.s32.totalorder %s26, 0
      %p215 = por %p213, %p214
      %p216 = scmp.ne.s32.totalorder %s204, %s205
      %p217 = scmp.eq.s32.totalorder %s27, 1
      %p218 = por %p216, %p217
      %p220 = scmp.ne.s32.totalorder %s205, %s219
      %p221 = scmp.eq.s32.totalorder %s27, 0
      %p222 = por %p220, %p221
      %s224 = sadd.s32 %s223, 1
      %p227 = scmp.eq.s32.totalorder %s21, 1
      %p228 = scmp.ne.s32.totalorder %s223, %s225
      %p229 = scmp.eq.s32.totalorder %s21, 0
      %p230 = por %p228, %p229
      %p231 = scmp.ne.s32.totalorder %s223, %s225
      %p232 = scmp.eq.s32.totalorder %s26, 1
      %p233 = por %p231, %p232
      %p234 = scmp.ne.s32.totalorder %s225, %s226
      %p235 = scmp.eq.s32.totalorder %s26, 0
      %p236 = por %p234, %p235
      %p237 = scmp.ne.s32.totalorder %s225, %s226
      %p238 = scmp.eq.s32.totalorder %s27, 1
      %p239 = por %p237, %p238
      %p241 = scmp.ne.s32.totalorder %s226, %s240
      %p242 = scmp.eq.s32.totalorder %s27, 0
      %p243 = por %p241, %p242
      %s245 = sadd.s32 %s244, 1
      %p248 = scmp.eq.s32.totalorder %s21, 1
      %p249 = scmp.ne.s32.totalorder %s244, %s246
      %p250 = scmp.eq.s32.totalorder %s21, 0
      %p251 = por %p249, %p250
      %p252 = scmp.ne.s32.totalorder %s244, %s246
      %p253 = scmp.eq.s32.totalorder %s26, 1
      %p254 = por %p252, %p253
      %p255 = scmp.ne.s32.totalorder %s246, %s247
      %p256 = scmp.eq.s32.totalorder %s26, 0
      %p257 = por %p255, %p256
      %p258 = scmp.ne.s32.totalorder %s246, %s247
      %p259 = scmp.eq.s32.totalorder %s27, 1
      %p260 = por %p258, %p259
      %p262 = scmp.ne.s32.totalorder %s247, %s261
      %p263 = scmp.eq.s32.totalorder %s27, 0
      %p264 = por %p262, %p263
      %s266 = sadd.s32 %s265, 1
      %p269 = scmp.eq.s32.totalorder %s21, 1
      %p270 = scmp.ne.s32.totalorder %s265, %s267
      %p271 = scmp.eq.s32.totalorder %s21, 0
      %p272 = por %p270, %p271
      %p273 = scmp.ne.s32.totalorder %s265, %s267
      %p274 = scmp.eq.s32.totalorder %s26, 1
      %p275 = por %p273, %p274
      %p276 = scmp.ne.s32.totalorder %s267, %s268
      %p277 = scmp.eq.s32.totalorder %s26, 0
      %p278 = por %p276, %p277
      %p279 = scmp.ne.s32.totalorder %s267, %s268
      %p280 = scmp.eq.s32.totalorder %s27, 1
      %p281 = por %p279, %p280
      %p283 = scmp.ne.s32.totalorder %s268, %s282
      %p284 = scmp.eq.s32.totalorder %s27, 0
      %p285 = por %p283, %p284
      %s286 = ssub.s32 %s21, %s28
      %p287 = scmp.eq.s32.totalorder %s286, 0
      %s289 = sadd.s32 %s288, 1
      %s290 = scalar_select %p287, %s288, %s289
      %p293 = pneg %p287
      %p294 = scmp.eq.s32.totalorder %s21, 1
      %p295 = por %p293, %p294
      %p296 = scmp.ne.s32.totalorder %s288, %s291
      %p297 = scmp.eq.s32.totalorder %s21, 0
      %p298 = por %p296, %p297
      %p299 = scmp.ne.s32.totalorder %s288, %s291
      %p300 = scmp.eq.s32.totalorder %s26, 1
      %p301 = por %p299, %p300
      %p302 = scmp.ne.s32.totalorder %s291, %s292
      %p303 = scmp.eq.s32.totalorder %s26, 0
      %p304 = por %p302, %p303
      %p305 = scmp.ne.s32.totalorder %s291, %s292
      %p306 = scmp.eq.s32.totalorder %s27, 1
      %p307 = por %p305, %p306
      %p309 = scmp.ne.s32.totalorder %s292, %s308
      %p310 = scmp.eq.s32.totalorder %s27, 0
      %p311 = por %p309, %p310
      %p312 = scmp.le.s32.totalorder 1, %s21
      %p313 = scmp.lt.s32.totalorder %s21, 3
      %p314 = pnand %p312, %p313
      %p315 = pneg %p314
      // Predicated region
      $region9: #{_lambda_.3} parent=5 // pred_check
        _
      $region10: #{_lambda_.3} parent=5 // pred_check_branch
        %317 = sbr.rel (%p314) target = $region12
      $region11: #{_lambda_.3} parent=5 // pred_region
        %s318 = ssub.s32 %s21, 1
        // Predicated region
        $region13: #{_lambda_.3} parent=11 // pred_check
          %p319 = pneg %p68
        $region14: #{_lambda_.3} parent=11 // pred_check_branch
          %321 = sbr.rel (%p319) target = $region16
        $region15: #{_lambda_.3} parent=11 // pred_region
          _
        $region16: #{_lambda_.3} parent=11 // pred_fallthru
          _
        // Predicated region
        $region17: #{_lambda_.3} parent=11 // pred_check
          %p322 = pneg %p89
        $region18: #{_lambda_.3} parent=11 // pred_check_branch
          %324 = sbr.rel (%p322) target = $region20
        $region19: #{_lambda_.3} parent=11 // pred_region
          _
        $region20: #{_lambda_.3} parent=11 // pred_fallthru
          _
        // Predicated region
        $region21: #{_lambda_.3} parent=11 // pred_check
          %p325 = pneg %p110
        $region22: #{_lambda_.3} parent=11 // pred_check_branch
          %327 = sbr.rel (%p325) target = $region24
        $region23: #{_lambda_.3} parent=11 // pred_region
          _
        $region24: #{_lambda_.3} parent=11 // pred_fallthru
          _
        // Predicated region
        $region25: #{_lambda_.3} parent=11 // pred_check
          %p328 = pneg %p131
        $region26: #{_lambda_.3} parent=11 // pred_check_branch
          %330 = sbr.rel (%p328) target = $region28
        $region27: #{_lambda_.3} parent=11 // pred_region
          _
        $region28: #{_lambda_.3} parent=11 // pred_fallthru
          _
        // Predicated region
        $region29: #{_lambda_.3} parent=11 // pred_check
          %p331 = pneg %p152
        $region30: #{_lambda_.3} parent=11 // pred_check_branch
          %333 = sbr.rel (%p331) target = $region32
        $region31: #{_lambda_.3} parent=11 // pred_region
          _
        $region32: #{_lambda_.3} parent=11 // pred_fallthru
          _
        // Predicated region
        $region33: #{_lambda_.3} parent=11 // pred_check
          %p334 = pneg %p173
        $region34: #{_lambda_.3} parent=11 // pred_check_branch
          %336 = sbr.rel (%p334) target = $region36
        $region35: #{_lambda_.3} parent=11 // pred_region
          _
        $region36: #{_lambda_.3} parent=11 // pred_fallthru
          _
        // Predicated region
        $region37: #{_lambda_.3} parent=11 // pred_check
          %p337 = pneg %p194
        $region38: #{_lambda_.3} parent=11 // pred_check_branch
          %339 = sbr.rel (%p337) target = $region40
        $region39: #{_lambda_.3} parent=11 // pred_region
          _
        $region40: #{_lambda_.3} parent=11 // pred_fallthru
          _
        // Predicated region
        $region41: #{_lambda_.3} parent=11 // pred_check
          %p340 = pneg %p215
        $region42: #{_lambda_.3} parent=11 // pred_check_branch
          %342 = sbr.rel (%p340) target = $region44
        $region43: #{_lambda_.3} parent=11 // pred_region
          _
        $region44: #{_lambda_.3} parent=11 // pred_fallthru
          _
        // Predicated region
        $region45: #{_lambda_.3} parent=11 // pred_check
          %p343 = pneg %p236
        $region46: #{_lambda_.3} parent=11 // pred_check_branch
          %345 = sbr.rel (%p343) target = $region48
        $region47: #{_lambda_.3} parent=11 // pred_region
          _
        $region48: #{_lambda_.3} parent=11 // pred_fallthru
          _
        // Predicated region
        $region49: #{_lambda_.3} parent=11 // pred_check
          %p346 = pneg %p257
        $region50: #{_lambda_.3} parent=11 // pred_check_branch
          %348 = sbr.rel (%p346) target = $region52
        $region51: #{_lambda_.3} parent=11 // pred_region
          _
        $region52: #{_lambda_.3} parent=11 // pred_fallthru
          _
        // Predicated region
        $region53: #{_lambda_.3} parent=11 // pred_check
          %p349 = pneg %p278
        $region54: #{_lambda_.3} parent=11 // pred_check_branch
          %351 = sbr.rel (%p349) target = $region56
        $region55: #{_lambda_.3} parent=11 // pred_region
          _
        $region56: #{_lambda_.3} parent=11 // pred_fallthru
          _
      $region12: #{_lambda_.3} parent=5 // pred_fallthru
        _
      %p352 = scmp.lt.s32.totalorder %s21, 2
      // Predicated region
      $region57: #{_lambda_.3} parent=5 // pred_check
        %p353 = pneg %p352
      $region58: #{_lambda_.3} parent=5 // pred_check_branch
        %355 = sbr.rel (%p353) target = $region60
      $region59: #{_lambda_.3} parent=5 // pred_region
        // Predicated region
        $region61: #{_lambda_.3} parent=59 // pred_check
          %p356 = pneg %p41
        $region62: #{_lambda_.3} parent=59 // pred_check_branch
          %358 = sbr.rel (%p356) target = $region64
        $region63: #{_lambda_.3} parent=59 // pred_region
          %p359 = scmp.lt.s32.totalorder %s21, 1
          %s360 = scalar_select %p359, %s21, 1
          %s361 = smul.addr %s360, 8
          %s362 = scalar_lea.vmem %s0, %s361
        $region64: #{_lambda_.3} parent=59 // pred_fallthru
          _
      $region60: #{_lambda_.3} parent=5 // pred_fallthru
        _
      %p363 = scmp.le.s32.totalorder 1, %s21
      %p364 = scmp.lt.s32.totalorder %s21, 3
      %p365 = pnand %p363, %p364
      %p366 = pneg %p365
      // Predicated region
      $region65: #{_lambda_.3} parent=5 // pred_check
        _
      $region66: #{_lambda_.3} parent=5 // pred_check_branch
        %368 = sbr.rel (%p365) target = $region68
      $region67: #{_lambda_.3} parent=5 // pred_region
        %s369 = ssub.s32 %s21, 1
        %p370 = scmp.lt.s32.totalorder %s26, 1
        %s371 = scalar_select %p370, %s26, 1
        %s372 = smul.addr %s371, 8
        %s373 = scalar_lea.vmem %s0, %s372
        %p374 = pneg %p47
        %p375 = pneg %p44
        %p376 = pneg %p68
        %p377 = pneg %p65
        %p378 = pneg %p89
        %p379 = pneg %p86
        %p380 = pneg %p110
        %p381 = pneg %p107
        %p382 = pneg %p131
        %p383 = pneg %p128
        %p384 = pneg %p152
        %p385 = pneg %p149
        %p386 = pneg %p173
        %p387 = pneg %p170
        %p388 = pneg %p194
        %p389 = pneg %p191
        %p390 = pneg %p215
        %p391 = pneg %p212
        %p392 = pneg %p236
        %p393 = pneg %p233
        %p394 = pneg %p257
        %p395 = pneg %p254
        %p396 = pneg %p278
        %p397 = pneg %p275
        %p398 = pneg %p304
        %p399 = pneg %p301
        %s400 = sand.u32 %s291, 1
        %s401 = scalar_lea.sflag [#allocation3], %s400
        %s402 = sand.u32 %s291, 1
        %s403 = smul.addr %s402, 8
        %s404 = scalar_lea.vmem [#allocation2], %s403
        %p405 = scmp.lt.s32.totalorder %s26, 1
        %s406 = scalar_select %p405, %s26, 1
        %s407 = smul.addr %s406, 8
        %s408 = scalar_lea.vmem %s0, %s407
        %v409 = vld [vmem:[%s408] sm:$0xff]
        %v410 = vlaneseq
        %v411 = vand.u32 %v410, 127
        %vm412 = vcmp.lt.s32.totalorder %v411, 32
        %v413 = vsel %vm412, 1, 0
        %v414 = vcvt.s32.f32 %v413
        %v415 = vld [vmem:[%s1] sm:$0xff]
        %v416 = vld [vmem:[%s1 + $0x8] sm:$0xff]
        %v417 = vld [vmem:[%s1 + $0x10] sm:$0xff]
        %v418 = vld [vmem:[%s1 + $0x18] sm:$0xff]
        %v419 = vld [vmem:[%s1 + $0x20] sm:$0xff]
        %v420 = vld [vmem:[%s1 + $0x28] sm:$0xff]
        %v421 = vld [vmem:[%s1 + $0x30] sm:$0xff]
        %v422 = vld [vmem:[%s1 + $0x38] sm:$0xff]
        %v423 = vld [vmem:[%s1 + $0x40] sm:$0xff]
        %v424 = vld [vmem:[%s1 + $0x48] sm:$0xff]
        %v425 = vld [vmem:[%s1 + $0x50] sm:$0xff]
        %v426 = vld [vmem:[%s1 + $0x58] sm:$0xff]
        %v427 = vld [vmem:[%s1 + $0x60] sm:$0xff]
        %v428 = vld [vmem:[%s1 + $0x68] sm:$0xff]
        %v429 = vld [vmem:[%s1 + $0x70] sm:$0xff]
        %v430 = vld [vmem:[%s1 + $0x78] sm:$0xff]
        %v431 = vld [vmem:[%s1 + $0x80] sm:$0xff]
        %v432 = vld [vmem:[%s1 + $0x88] sm:$0xff]
        %v433 = vld [vmem:[%s1 + $0x90] sm:$0xff]
        %v434 = vld [vmem:[%s1 + $0x98] sm:$0xff]
        %v435 = vld [vmem:[%s1 + $0xa0] sm:$0xff]
        %v436 = vld [vmem:[%s1 + $0xa8] sm:$0xff]
        %v437 = vld [vmem:[%s1 + $0xb0] sm:$0xff]
        %v438 = vld [vmem:[%s1 + $0xb8] sm:$0xff]
        %v439 = vld [vmem:[%s1 + $0xc0] sm:$0xff]
        %v440 = vld [vmem:[%s1 + $0xc8] sm:$0xff]
        %v441 = vld [vmem:[%s1 + $0xd0] sm:$0xff]
        %v442 = vld [vmem:[%s1 + $0xd8] sm:$0xff]
        %v443 = vld [vmem:[%s1 + $0xe0] sm:$0xff]
        %v444 = vld [vmem:[%s1 + $0xe8] sm:$0xff]
        %v445 = vld [vmem:[%s1 + $0xf0] sm:$0xff]
        %v446 = vld [vmem:[%s1 + $0xf8] sm:$0xff]
        %v447 = vld [vmem:[%s1 + $0x100] sm:$0xff]
        %v448 = vld [vmem:[%s1 + $0x108] sm:$0xff]
        %v449 = vld [vmem:[%s1 + $0x110] sm:$0xff]
        %v450 = vld [vmem:[%s1 + $0x118] sm:$0xff]
        %v451 = vld [vmem:[%s1 + $0x120] sm:$0xff]
        %v452 = vld [vmem:[%s1 + $0x128] sm:$0xff]
        %v453 = vld [vmem:[%s1 + $0x130] sm:$0xff]
        %v454 = vld [vmem:[%s1 + $0x138] sm:$0xff]
        %v455 = vld [vmem:[%s1 + $0x140] sm:$0xff]
        %v456 = vld [vmem:[%s1 + $0x148] sm:$0xff]
        %v457 = vld [vmem:[%s1 + $0x150] sm:$0xff]
        %v458 = vld [vmem:[%s1 + $0x158] sm:$0xff]
        %v459 = vld [vmem:[%s1 + $0x160] sm:$0xff]
        %v460 = vld [vmem:[%s1 + $0x168] sm:$0xff]
        %v461 = vld [vmem:[%s1 + $0x170] sm:$0xff]
        %v462 = vld [vmem:[%s1 + $0x178] sm:$0xff]
        %v463 = vld [vmem:[%s1 + $0x180] sm:$0xff]
        %v464 = vld [vmem:[%s1 + $0x188] sm:$0xff]
        %v465 = vld [vmem:[%s1 + $0x190] sm:$0xff]
        %v466 = vld [vmem:[%s1 + $0x198] sm:$0xff]
        %v467 = vld [vmem:[%s1 + $0x1a0] sm:$0xff]
        %v468 = vld [vmem:[%s1 + $0x1a8] sm:$0xff]
        %v469 = vld [vmem:[%s1 + $0x1b0] sm:$0xff]
        %v470 = vld [vmem:[%s1 + $0x1b8] sm:$0xff]
        %v471 = vld [vmem:[%s1 + $0x1c0] sm:$0xff]
        %v472 = vld [vmem:[%s1 + $0x1c8] sm:$0xff]
        %v473 = vld [vmem:[%s1 + $0x1d0] sm:$0xff]
        %v474 = vld [vmem:[%s1 + $0x1d8] sm:$0xff]
        %v475 = vld [vmem:[%s1 + $0x1e0] sm:$0xff]
        %v476 = vld [vmem:[%s1 + $0x1e8] sm:$0xff]
        %v477 = vld [vmem:[%s1 + $0x1f0] sm:$0xff]
        %v478 = vld [vmem:[%s1 + $0x1f8] sm:$0xff]
        %v479 = vld [vmem:[%s1 + $0x200] sm:$0xff]
        %v480 = vld [vmem:[%s1 + $0x208] sm:$0xff]
        %v481 = vld [vmem:[%s1 + $0x210] sm:$0xff]
        %v482 = vld [vmem:[%s1 + $0x218] sm:$0xff]
        %v483 = vld [vmem:[%s1 + $0x220] sm:$0xff]
        %v484 = vld [vmem:[%s1 + $0x228] sm:$0xff]
        %v485 = vld [vmem:[%s1 + $0x230] sm:$0xff]
        %v486 = vld [vmem:[%s1 + $0x238] sm:$0xff]
        %v487 = vld [vmem:[%s1 + $0x240] sm:$0xff]
        %v488 = vld [vmem:[%s1 + $0x248] sm:$0xff]
        %v489 = vld [vmem:[%s1 + $0x250] sm:$0xff]
        %v490 = vld [vmem:[%s1 + $0x258] sm:$0xff]
        %v491 = vld [vmem:[%s1 + $0x260] sm:$0xff]
        %v492 = vld [vmem:[%s1 + $0x268] sm:$0xff]
        %v493 = vld [vmem:[%s1 + $0x270] sm:$0xff]
        %v494 = vld [vmem:[%s1 + $0x278] sm:$0xff]
        %v495 = vld [vmem:[%s1 + $0x280] sm:$0xff]
        %v496 = vld [vmem:[%s1 + $0x288] sm:$0xff]
        %v497 = vld [vmem:[%s1 + $0x290] sm:$0xff]
        %v498 = vld [vmem:[%s1 + $0x298] sm:$0xff]
        %v499 = vld [vmem:[%s1 + $0x2a0] sm:$0xff]
        %v500 = vld [vmem:[%s1 + $0x2a8] sm:$0xff]
        %v501 = vld [vmem:[%s1 + $0x2b0] sm:$0xff]
        %v502 = vld [vmem:[%s1 + $0x2b8] sm:$0xff]
        %v503 = vld [vmem:[%s1 + $0x2c0] sm:$0xff]
        %v504 = vld [vmem:[%s1 + $0x2c8] sm:$0xff]
        %v505 = vld [vmem:[%s1 + $0x2d0] sm:$0xff]
        %v506 = vld [vmem:[%s1 + $0x2d8] sm:$0xff]
        %v507 = vld [vmem:[%s1 + $0x2e0] sm:$0xff]
        %v508 = vld [vmem:[%s1 + $0x2e8] sm:$0xff]
        %v509 = vld [vmem:[%s1 + $0x2f0] sm:$0xff]
        %v510 = vld [vmem:[%s1 + $0x2f8] sm:$0xff]
        %v511 = vld [vmem:[%s1 + $0x300] sm:$0xff]
        %v512 = vld [vmem:[%s1 + $0x308] sm:$0xff]
        %v513 = vld [vmem:[%s1 + $0x310] sm:$0xff]
        %v514 = vld [vmem:[%s1 + $0x318] sm:$0xff]
        %v515 = vld [vmem:[%s1 + $0x320] sm:$0xff]
        %v516 = vld [vmem:[%s1 + $0x328] sm:$0xff]
        %v517 = vld [vmem:[%s1 + $0x330] sm:$0xff]
        %v518 = vld [vmem:[%s1 + $0x338] sm:$0xff]
        %v519 = vld [vmem:[%s1 + $0x340] sm:$0xff]
        %v520 = vld [vmem:[%s1 + $0x348] sm:$0xff]
        %v521 = vld [vmem:[%s1 + $0x350] sm:$0xff]
        %v522 = vld [vmem:[%s1 + $0x358] sm:$0xff]
        %v523 = vld [vmem:[%s1 + $0x360] sm:$0xff]
        %v524 = vld [vmem:[%s1 + $0x368] sm:$0xff]
        %v525 = vld [vmem:[%s1 + $0x370] sm:$0xff]
        %v526 = vld [vmem:[%s1 + $0x378] sm:$0xff]
        %v527 = vld [vmem:[%s1 + $0x380] sm:$0xff]
        %v528 = vld [vmem:[%s1 + $0x388] sm:$0xff]
        %v529 = vld [vmem:[%s1 + $0x390] sm:$0xff]
        %v530 = vld [vmem:[%s1 + $0x398] sm:$0xff]
        %v531 = vld [vmem:[%s1 + $0x3a0] sm:$0xff]
        %v532 = vld [vmem:[%s1 + $0x3a8] sm:$0xff]
        %v533 = vld [vmem:[%s1 + $0x3b0] sm:$0xff]
        %v534 = vld [vmem:[%s1 + $0x3b8] sm:$0xff]
        %v535 = vld [vmem:[%s1 + $0x3c0] sm:$0xff]
        %v536 = vld [vmem:[%s1 + $0x3c8] sm:$0xff]
        %v537 = vld [vmem:[%s1 + $0x3d0] sm:$0xff]
        %v538 = vld [vmem:[%s1 + $0x3d8] sm:$0xff]
        %v539 = vld [vmem:[%s1 + $0x3e0] sm:$0xff]
        %v540 = vld [vmem:[%s1 + $0x3e8] sm:$0xff]
        %v541 = vld [vmem:[%s1 + $0x3f0] sm:$0xff]
        %v542 = vld [vmem:[%s1 + $0x3f8] sm:$0xff]
        %v543 = vld [vmem:[%s1 + $0x400] sm:$0xff]
        %v544 = vld [vmem:[%s1 + $0x408] sm:$0xff]
        %v545 = vld [vmem:[%s1 + $0x410] sm:$0xff]
        %v546 = vld [vmem:[%s1 + $0x418] sm:$0xff]
        %v547 = vld [vmem:[%s1 + $0x420] sm:$0xff]
        %v548 = vld [vmem:[%s1 + $0x428] sm:$0xff]
        %v549 = vld [vmem:[%s1 + $0x430] sm:$0xff]
        %v550 = vld [vmem:[%s1 + $0x438] sm:$0xff]
        %v551 = vld [vmem:[%s1 + $0x440] sm:$0xff]
        %v552 = vld [vmem:[%s1 + $0x448] sm:$0xff]
        %v553 = vld [vmem:[%s1 + $0x450] sm:$0xff]
        %v554 = vld [vmem:[%s1 + $0x458] sm:$0xff]
        %v555 = vld [vmem:[%s1 + $0x460] sm:$0xff]
        %v556 = vld [vmem:[%s1 + $0x468] sm:$0xff]
        %v557 = vld [vmem:[%s1 + $0x470] sm:$0xff]
        %v558 = vld [vmem:[%s1 + $0x478] sm:$0xff]
        %v559 = vld [vmem:[%s1 + $0x480] sm:$0xff]
        %v560 = vld [vmem:[%s1 + $0x488] sm:$0xff]
        %v561 = vld [vmem:[%s1 + $0x490] sm:$0xff]
        %v562 = vld [vmem:[%s1 + $0x498] sm:$0xff]
        %v563 = vld [vmem:[%s1 + $0x4a0] sm:$0xff]
        %v564 = vld [vmem:[%s1 + $0x4a8] sm:$0xff]
        %v565 = vld [vmem:[%s1 + $0x4b0] sm:$0xff]
        %v566 = vld [vmem:[%s1 + $0x4b8] sm:$0xff]
        %v567 = vld [vmem:[%s1 + $0x4c0] sm:$0xff]
        %v568 = vld [vmem:[%s1 + $0x4c8] sm:$0xff]
        %v569 = vld [vmem:[%s1 + $0x4d0] sm:$0xff]
        %v570 = vld [vmem:[%s1 + $0x4d8] sm:$0xff]
        %v571 = vld [vmem:[%s1 + $0x4e0] sm:$0xff]
        %v572 = vld [vmem:[%s1 + $0x4e8] sm:$0xff]
        %v573 = vld [vmem:[%s1 + $0x4f0] sm:$0xff]
        %v574 = vld [vmem:[%s1 + $0x4f8] sm:$0xff]
        %v575 = vld [vmem:[%s1 + $0x500] sm:$0xff]
        %v576 = vld [vmem:[%s1 + $0x508] sm:$0xff]
        %v577 = vld [vmem:[%s1 + $0x510] sm:$0xff]
        %v578 = vld [vmem:[%s1 + $0x518] sm:$0xff]
        %v579 = vld [vmem:[%s1 + $0x520] sm:$0xff]
        %v580 = vld [vmem:[%s1 + $0x528] sm:$0xff]
        %v581 = vld [vmem:[%s1 + $0x530] sm:$0xff]
        %v582 = vld [vmem:[%s1 + $0x538] sm:$0xff]
        %v583 = vld [vmem:[%s1 + $0x540] sm:$0xff]
        %v584 = vld [vmem:[%s1 + $0x548] sm:$0xff]
        %v585 = vld [vmem:[%s1 + $0x550] sm:$0xff]
        %v586 = vld [vmem:[%s1 + $0x558] sm:$0xff]
        %v587 = vld [vmem:[%s1 + $0x560] sm:$0xff]
        %v588 = vld [vmem:[%s1 + $0x568] sm:$0xff]
        %v589 = vld [vmem:[%s1 + $0x570] sm:$0xff]
        %v590 = vld [vmem:[%s1 + $0x578] sm:$0xff]
        %v591 = vld [vmem:[%s1 + $0x580] sm:$0xff]
        %v592 = vld [vmem:[%s1 + $0x588] sm:$0xff]
        %v593 = vld [vmem:[%s1 + $0x590] sm:$0xff]
        %v594 = vld [vmem:[%s1 + $0x598] sm:$0xff]
        %v595 = vld [vmem:[%s1 + $0x5a0] sm:$0xff]
        %v596 = vld [vmem:[%s1 + $0x5a8] sm:$0xff]
        %v597 = vld [vmem:[%s1 + $0x5b0] sm:$0xff]
        %v598 = vld [vmem:[%s1 + $0x5b8] sm:$0xff]
        %v599 = vld [vmem:[%s1 + $0x5c0] sm:$0xff]
        %v600 = vld [vmem:[%s1 + $0x5c8] sm:$0xff]
        %v601 = vld [vmem:[%s1 + $0x5d0] sm:$0xff]
        %v602 = vld [vmem:[%s1 + $0x5d8] sm:$0xff]
        %v603 = vld [vmem:[%s1 + $0x5e0] sm:$0xff]
        %v604 = vld [vmem:[%s1 + $0x5e8] sm:$0xff]
        %v605 = vld [vmem:[%s1 + $0x5f0] sm:$0xff]
        %v606 = vld [vmem:[%s1 + $0x5f8] sm:$0xff]
        %607 = vmatprep.subr.mxu0 %v416
        %608 = vmatpush1.msra.mxu0 %v415
        %609 = vmatprep.subr.mxu0 %v428
        %610 = vmatpush1.msra.mxu0 %v427
        %611 = vmatprep.subr.mxu0 %v440
        %612 = vmatpush1.msra.mxu0 %v439
        %613 = vmatprep.subr.mxu0 %v452
        %614 = vmatpush1.msra.mxu0 %v451
        %615 = vmatprep.subr.mxu0 %v464
        %616 = vmatpush1.msra.mxu0 %v463
        %617 = vmatprep.subr.mxu0 %v476
        %618 = vmatpush1.msra.mxu0 %v475
        %619 = vmatprep.subr.mxu0 %v488
        %620 = vmatpush1.msra.mxu0 %v487
        %621 = vmatprep.subr.mxu0 %v500
        %622 = vmatpush1.msra.mxu0 %v499
        %623 = vmatprep.subr.mxu0 %v512
        %624 = vmatpush1.msra.mxu0 %v511
        %625 = vmatprep.subr.mxu0 %v524
        %626 = vmatpush1.msra.mxu0 %v523
        %627 = vmatprep.subr.mxu0 %v536
        %628 = vmatpush1.msra.mxu0 %v535
        %629 = vmatprep.subr.mxu0 %v548
        %630 = vmatpush1.msra.mxu0 %v547
        %631 = vmatprep.subr.mxu0 %v560
        %632 = vmatpush1.msra.mxu0 %v559
        %633 = vmatprep.subr.mxu0 %v572
        %634 = vmatpush1.msra.mxu0 %v571
        %635 = vmatprep.subr.mxu0 %v584
        %636 = vmatpush1.msra.mxu0 %v583
        %637 = vmatprep.subr.mxu0 %v596
        %638 = vmatpush1.msra.mxu0 %v595
        %639 = vmatprep.subr.mxu0 0.0
        %640 = vmatpush1.msra.mxu0 0.0
        %641 = vmatprep.subr.mxu0 0.0
        %642 = vmatpush1.msra.mxu0 0.0
        %643 = vmatprep.subr.mxu0 0.0
        %644 = vmatpush1.msra.mxu0 0.0
        %645 = vmatprep.subr.mxu0 0.0
        %646 = vmatpush1.msra.mxu0 0.0
        %647 = vmatprep.subr.mxu0 0.0
        %648 = vmatpush1.msra.mxu0 0.0
        %649 = vmatprep.subr.mxu0 0.0
        %650 = vmatpush1.msra.mxu0 0.0
        %651 = vmatprep.subr.mxu0 0.0
        %652 = vmatpush1.msra.mxu0 0.0
        %653 = vmatprep.subr.mxu0 0.0
        %654 = vmatpush1.msra.mxu0 0.0
        %655 = vmatprep.subr.mxu0 0.0
        %656 = vmatpush1.msra.mxu0 0.0
        %657 = vmatprep.subr.mxu0 0.0
        %658 = vmatpush1.msra.mxu0 0.0
        %659 = vmatprep.subr.mxu0 0.0
        %660 = vmatpush1.msra.mxu0 0.0
        %661 = vmatprep.subr.mxu0 0.0
        %662 = vmatpush1.msra.mxu0 0.0
        %663 = vmatprep.subr.mxu0 0.0
        %664 = vmatpush1.msra.mxu0 0.0
        %665 = vmatprep.subr.mxu0 0.0
        %666 = vmatpush1.msra.mxu0 0.0
        %667 = vmatprep.subr.mxu0 0.0
        %668 = vmatpush1.msra.mxu0 0.0
        %669 = vmatprep.subr.mxu0 0.0
        %670 = vmatpush1.msra.mxu0 0.0
        %671 = vmatprep.mubr.f32.mxu0 0.0
        %672 = vmatmul.mubr.f32.gmra.mrb[0].mxu0 %v409
        %v673 = vpop.f32.mrb[0].mxu0
        %v674 = vadd.f32 0.0, %v673
        %v675 = vpop.f32.mrb[0].mxu0
        %v676 = vadd.f32 0.0, %v675
        %677 = vdwg.mxu0
        %678 = vmatprep.subr.mxu0 %v418
        %679 = vmatpush1.msra.mxu0 %v417
        %680 = vmatprep.subr.mxu0 %v430
        %681 = vmatpush1.msra.mxu0 %v429
        %682 = vmatprep.subr.mxu0 %v442
        %683 = vmatpush1.msra.mxu0 %v441
        %684 = vmatprep.subr.mxu0 %v454
        %685 = vmatpush1.msra.mxu0 %v453
        %686 = vmatprep.subr.mxu0 %v466
        %687 = vmatpush1.msra.mxu0 %v465
        %688 = vmatprep.subr.mxu0 %v478
        %689 = vmatpush1.msra.mxu0 %v477
        %690 = vmatprep.subr.mxu0 %v490
        %691 = vmatpush1.msra.mxu0 %v489
        %692 = vmatprep.subr.mxu0 %v502
        %693 = vmatpush1.msra.mxu0 %v501
        %694 = vmatprep.subr.mxu0 %v514
        %695 = vmatpush1.msra.mxu0 %v513
        %696 = vmatprep.subr.mxu0 %v526
        %697 = vmatpush1.msra.mxu0 %v525
        %698 = vmatprep.subr.mxu0 %v538
        %699 = vmatpush1.msra.mxu0 %v537
        %700 = vmatprep.subr.mxu0 %v550
        %701 = vmatpush1.msra.mxu0 %v549
        %702 = vmatprep.subr.mxu0 %v562
        %703 = vmatpush1.msra.mxu0 %v561
        %704 = vmatprep.subr.mxu0 %v574
        %705 = vmatpush1.msra.mxu0 %v573
        %706 = vmatprep.subr.mxu0 %v586
        %707 = vmatpush1.msra.mxu0 %v585
        %708 = vmatprep.subr.mxu0 %v598
        %709 = vmatpush1.msra.mxu0 %v597
        %710 = vmatprep.subr.mxu0 0.0
        %711 = vmatpush1.msra.mxu0 0.0
        %712 = vmatprep.subr.mxu0 0.0
        %713 = vmatpush1.msra.mxu0 0.0
        %714 = vmatprep.subr.mxu0 0.0
        %715 = vmatpush1.msra.mxu0 0.0
        %716 = vmatprep.subr.mxu0 0.0
        %717 = vmatpush1.msra.mxu0 0.0
        %718 = vmatprep.subr.mxu0 0.0
        %719 = vmatpush1.msra.mxu0 0.0
        %720 = vmatprep.subr.mxu0 0.0
        %721 = vmatpush1.msra.mxu0 0.0
        %722 = vmatprep.subr.mxu0 0.0
        %723 = vmatpush1.msra.mxu0 0.0
        %724 = vmatprep.subr.mxu0 0.0
        %725 = vmatpush1.msra.mxu0 0.0
        %726 = vmatprep.subr.mxu0 0.0
        %727 = vmatpush1.msra.mxu0 0.0
        %728 = vmatprep.subr.mxu0 0.0
        %729 = vmatpush1.msra.mxu0 0.0
        %730 = vmatprep.subr.mxu0 0.0
        %731 = vmatpush1.msra.mxu0 0.0
        %732 = vmatprep.subr.mxu0 0.0
        %733 = vmatpush1.msra.mxu0 0.0
        %734 = vmatprep.subr.mxu0 0.0
        %735 = vmatpush1.msra.mxu0 0.0
        %736 = vmatprep.subr.mxu0 0.0
        %737 = vmatpush1.msra.mxu0 0.0
        %738 = vmatprep.subr.mxu0 0.0
        %739 = vmatpush1.msra.mxu0 0.0
        %740 = vmatprep.subr.mxu0 0.0
        %741 = vmatpush1.msra.mxu0 0.0
        %742 = vmatprep.mubr.f32.mxu0 0.0
        %743 = vmatmul.mubr.f32.gmra.mrb[0].mxu0 %v409
        %v744 = vpop.f32.mrb[0].mxu0
        %v745 = vadd.f32 0.0, %v744
        %v746 = vpop.f32.mrb[0].mxu0
        %v747 = vadd.f32 0.0, %v746
        %748 = vdwg.mxu0
        %749 = vmatprep.subr.mxu0 %v420
        %750 = vmatpush1.msra.mxu0 %v419
        %751 = vmatprep.subr.mxu0 %v432
        %752 = vmatpush1.msra.mxu0 %v431
        %753 = vmatprep.subr.mxu0 %v444
        %754 = vmatpush1.msra.mxu0 %v443
        %755 = vmatprep.subr.mxu0 %v456
        %756 = vmatpush1.msra.mxu0 %v455
        %757 = vmatprep.subr.mxu0 %v468
        %758 = vmatpush1.msra.mxu0 %v467
        %759 = vmatprep.subr.mxu0 %v480
        %760 = vmatpush1.msra.mxu0 %v479
        %761 = vmatprep.subr.mxu0 %v492
        %762 = vmatpush1.msra.mxu0 %v491
        %763 = vmatprep.subr.mxu0 %v504
        %764 = vmatpush1.msra.mxu0 %v503
        %765 = vmatprep.subr.mxu0 %v516
        %766 = vmatpush1.msra.mxu0 %v515
        %767 = vmatprep.subr.mxu0 %v528
        %768 = vmatpush1.msra.mxu0 %v527
        %769 = vmatprep.subr.mxu0 %v540
        %770 = vmatpush1.msra.mxu0 %v539
        %771 = vmatprep.subr.mxu0 %v552
        %772 = vmatpush1.msra.mxu0 %v551
        %773 = vmatprep.subr.mxu0 %v564
        %774 = vmatpush1.msra.mxu0 %v563
        %775 = vmatprep.subr.mxu0 %v576
        %776 = vmatpush1.msra.mxu0 %v575
        %777 = vmatprep.subr.mxu0 %v588
        %778 = vmatpush1.msra.mxu0 %v587
        %779 = vmatprep.subr.mxu0 %v600
        %780 = vmatpush1.msra.mxu0 %v599
        %781 = vmatprep.subr.mxu0 0.0
        %782 = vmatpush1.msra.mxu0 0.0
        %783 = vmatprep.subr.mxu0 0.0
        %784 = vmatpush1.msra.mxu0 0.0
        %785 = vmatprep.subr.mxu0 0.0
        %786 = vmatpush1.msra.mxu0 0.0
        %787 = vmatprep.subr.mxu0 0.0
        %788 = vmatpush1.msra.mxu0 0.0
        %789 = vmatprep.subr.mxu0 0.0
        %790 = vmatpush1.msra.mxu0 0.0
        %791 = vmatprep.subr.mxu0 0.0
        %792 = vmatpush1.msra.mxu0 0.0
        %793 = vmatprep.subr.mxu0 0.0
        %794 = vmatpush1.msra.mxu0 0.0
        %795 = vmatprep.subr.mxu0 0.0
        %796 = vmatpush1.msra.mxu0 0.0
        %797 = vmatprep.subr.mxu0 0.0
        %798 = vmatpush1.msra.mxu0 0.0
        %799 = vmatprep.subr.mxu0 0.0
        %800 = vmatpush1.msra.mxu0 0.0
        %801 = vmatprep.subr.mxu0 0.0
        %802 = vmatpush1.msra.mxu0 0.0
        %803 = vmatprep.subr.mxu0 0.0
        %804 = vmatpush1.msra.mxu0 0.0
        %805 = vmatprep.subr.mxu0 0.0
        %806 = vmatpush1.msra.mxu0 0.0
        %807 = vmatprep.subr.mxu0 0.0
        %808 = vmatpush1.msra.mxu0 0.0
        %809 = vmatprep.subr.mxu0 0.0
        %810 = vmatpush1.msra.mxu0 0.0
        %811 = vmatprep.subr.mxu0 0.0
        %812 = vmatpush1.msra.mxu0 0.0
        %813 = vmatprep.mubr.f32.mxu0 0.0
        %814 = vmatmul.mubr.f32.gmra.mrb[0].mxu0 %v409
        %v815 = vpop.f32.mrb[0].mxu0
        %v816 = vadd.f32 0.0, %v815
        %v817 = vpop.f32.mrb[0].mxu0
        %v818 = vadd.f32 0.0, %v817
        %819 = vdwg.mxu0
        %820 = vmatprep.subr.mxu0 %v422
        %821 = vmatpush1.msra.mxu0 %v421
        %822 = vmatprep.subr.mxu0 %v434
        %823 = vmatpush1.msra.mxu0 %v433
        %824 = vmatprep.subr.mxu0 %v446
        %825 = vmatpush1.msra.mxu0 %v445
        %826 = vmatprep.subr.mxu0 %v458
        %827 = vmatpush1.msra.mxu0 %v457
        %828 = vmatprep.subr.mxu0 %v470
        %829 = vmatpush1.msra.mxu0 %v469
        %830 = vmatprep.subr.mxu0 %v482
        %831 = vmatpush1.msra.mxu0 %v481
        %832 = vmatprep.subr.mxu0 %v494
        %833 = vmatpush1.msra.mxu0 %v493
        %834 = vmatprep.subr.mxu0 %v506
        %835 = vmatpush1.msra.mxu0 %v505
        %836 = vmatprep.subr.mxu0 %v518
        %837 = vmatpush1.msra.mxu0 %v517
        %838 = vmatprep.subr.mxu0 %v530
        %839 = vmatpush1.msra.mxu0 %v529
        %840 = vmatprep.subr.mxu0 %v542
        %841 = vmatpush1.msra.mxu0 %v541
        %842 = vmatprep.subr.mxu0 %v554
        %843 = vmatpush1.msra.mxu0 %v553
        %844 = vmatprep.subr.mxu0 %v566
        %845 = vmatpush1.msra.mxu0 %v565
        %846 = vmatprep.subr.mxu0 %v578
        %847 = vmatpush1.msra.mxu0 %v577
        %848 = vmatprep.subr.mxu0 %v590
        %849 = vmatpush1.msra.mxu0 %v589
        %850 = vmatprep.subr.mxu0 %v602
        %851 = vmatpush1.msra.mxu0 %v601
        %852 = vmatprep.subr.mxu0 0.0
        %853 = vmatpush1.msra.mxu0 0.0
        %854 = vmatprep.subr.mxu0 0.0
        %855 = vmatpush1.msra.mxu0 0.0
        %856 = vmatprep.subr.mxu0 0.0
        %857 = vmatpush1.msra.mxu0 0.0
        %858 = vmatprep.subr.mxu0 0.0
        %859 = vmatpush1.msra.mxu0 0.0
        %860 = vmatprep.subr.mxu0 0.0
        %861 = vmatpush1.msra.mxu0 0.0
        %862 = vmatprep.subr.mxu0 0.0
        %863 = vmatpush1.msra.mxu0 0.0
        %864 = vmatprep.subr.mxu0 0.0
        %865 = vmatpush1.msra.mxu0 0.0
        %866 = vmatprep.subr.mxu0 0.0
        %867 = vmatpush1.msra.mxu0 0.0
        %868 = vmatprep.subr.mxu0 0.0
        %869 = vmatpush1.msra.mxu0 0.0
        %870 = vmatprep.subr.mxu0 0.0
        %871 = vmatpush1.msra.mxu0 0.0
        %872 = vmatprep.subr.mxu0 0.0
        %873 = vmatpush1.msra.mxu0 0.0
        %874 = vmatprep.subr.mxu0 0.0
        %875 = vmatpush1.msra.mxu0 0.0
        %876 = vmatprep.subr.mxu0 0.0
        %877 = vmatpush1.msra.mxu0 0.0
        %878 = vmatprep.subr.mxu0 0.0
        %879 = vmatpush1.msra.mxu0 0.0
        %880 = vmatprep.subr.mxu0 0.0
        %881 = vmatpush1.msra.mxu0 0.0
        %882 = vmatprep.subr.mxu0 0.0
        %883 = vmatpush1.msra.mxu0 0.0
        %884 = vmatprep.mubr.f32.mxu0 0.0
        %885 = vmatmul.mubr.f32.gmra.mrb[0].mxu0 %v409
        %v886 = vpop.f32.mrb[0].mxu0
        %v887 = vadd.f32 0.0, %v886
        %v888 = vpop.f32.mrb[0].mxu0
        %v889 = vadd.f32 0.0, %v888
        %890 = vdwg.mxu0
        %891 = vmatprep.subr.mxu0 %v424
        %892 = vmatpush1.msra.mxu0 %v423
        %893 = vmatprep.subr.mxu0 %v436
        %894 = vmatpush1.msra.mxu0 %v435
        %895 = vmatprep.subr.mxu0 %v448
        %896 = vmatpush1.msra.mxu0 %v447
        %897 = vmatprep.subr.mxu0 %v460
        %898 = vmatpush1.msra.mxu0 %v459
        %899 = vmatprep.subr.mxu0 %v472
        %900 = vmatpush1.msra.mxu0 %v471
        %901 = vmatprep.subr.mxu0 %v484
        %902 = vmatpush1.msra.mxu0 %v483
        %903 = vmatprep.subr.mxu0 %v496
        %904 = vmatpush1.msra.mxu0 %v495
        %905 = vmatprep.subr.mxu0 %v508
        %906 = vmatpush1.msra.mxu0 %v507
        %907 = vmatprep.subr.mxu0 %v520
        %908 = vmatpush1.msra.mxu0 %v519
        %909 = vmatprep.subr.mxu0 %v532
        %910 = vmatpush1.msra.mxu0 %v531
        %911 = vmatprep.subr.mxu0 %v544
        %912 = vmatpush1.msra.mxu0 %v543
        %913 = vmatprep.subr.mxu0 %v556
        %914 = vmatpush1.msra.mxu0 %v555
        %915 = vmatprep.subr.mxu0 %v568
        %916 = vmatpush1.msra.mxu0 %v567
        %917 = vmatprep.subr.mxu0 %v580
        %918 = vmatpush1.msra.mxu0 %v579
        %919 = vmatprep.subr.mxu0 %v592
        %920 = vmatpush1.msra.mxu0 %v591
        %921 = vmatprep.subr.mxu0 %v604
        %922 = vmatpush1.msra.mxu0 %v603
        %923 = vmatprep.subr.mxu0 0.0
        %924 = vmatpush1.msra.mxu0 0.0
        %925 = vmatprep.subr.mxu0 0.0
        %926 = vmatpush1.msra.mxu0 0.0
        %927 = vmatprep.subr.mxu0 0.0
        %928 = vmatpush1.msra.mxu0 0.0
        %929 = vmatprep.subr.mxu0 0.0
        %930 = vmatpush1.msra.mxu0 0.0
        %931 = vmatprep.subr.mxu0 0.0
        %932 = vmatpush1.msra.mxu0 0.0
        %933 = vmatprep.subr.mxu0 0.0
        %934 = vmatpush1.msra.mxu0 0.0
        %935 = vmatprep.subr.mxu0 0.0
        %936 = vmatpush1.msra.mxu0 0.0
        %937 = vmatprep.subr.mxu0 0.0
        %938 = vmatpush1.msra.mxu0 0.0
        %939 = vmatprep.subr.mxu0 0.0
        %940 = vmatpush1.msra.mxu0 0.0
        %941 = vmatprep.subr.mxu0 0.0
        %942 = vmatpush1.msra.mxu0 0.0
        %943 = vmatprep.subr.mxu0 0.0
        %944 = vmatpush1.msra.mxu0 0.0
        %945 = vmatprep.subr.mxu0 0.0
        %946 = vmatpush1.msra.mxu0 0.0
        %947 = vmatprep.subr.mxu0 0.0
        %948 = vmatpush1.msra.mxu0 0.0
        %949 = vmatprep.subr.mxu0 0.0
        %950 = vmatpush1.msra.mxu0 0.0
        %951 = vmatprep.subr.mxu0 0.0
        %952 = vmatpush1.msra.mxu0 0.0
        %953 = vmatprep.subr.mxu0 0.0
        %954 = vmatpush1.msra.mxu0 0.0
        %955 = vmatprep.mubr.f32.mxu0 0.0
        %956 = vmatmul.mubr.f32.gmra.mrb[0].mxu0 %v409
        %v957 = vpop.f32.mrb[0].mxu0
        %v958 = vadd.f32 0.0, %v957
        %v959 = vpop.f32.mrb[0].mxu0
        %v960 = vadd.f32 0.0, %v959
        %961 = vdwg.mxu0
        %962 = vmatprep.subr.mxu0 %v426
        %963 = vmatpush1.msra.mxu0 %v425
        %964 = vmatprep.subr.mxu0 %v438
        %965 = vmatpush1.msra.mxu0 %v437
        %966 = vmatprep.subr.mxu0 %v450
        %967 = vmatpush1.msra.mxu0 %v449
        %968 = vmatprep.subr.mxu0 %v462
        %969 = vmatpush1.msra.mxu0 %v461
        %970 = vmatprep.subr.mxu0 %v474
        %971 = vmatpush1.msra.mxu0 %v473
        %972 = vmatprep.subr.mxu0 %v486
        %973 = vmatpush1.msra.mxu0 %v485
        %974 = vmatprep.subr.mxu0 %v498
        %975 = vmatpush1.msra.mxu0 %v497
        %976 = vmatprep.subr.mxu0 %v510
        %977 = vmatpush1.msra.mxu0 %v509
        %978 = vmatprep.subr.mxu0 %v522
        %979 = vmatpush1.msra.mxu0 %v521
        %980 = vmatprep.subr.mxu0 %v534
        %981 = vmatpush1.msra.mxu0 %v533
        %982 = vmatprep.subr.mxu0 %v546
        %983 = vmatpush1.msra.mxu0 %v545
        %984 = vmatprep.subr.mxu0 %v558
        %985 = vmatpush1.msra.mxu0 %v557
        %986 = vmatprep.subr.mxu0 %v570
        %987 = vmatpush1.msra.mxu0 %v569
        %988 = vmatprep.subr.mxu0 %v582
        %989 = vmatpush1.msra.mxu0 %v581
        %990 = vmatprep.subr.mxu0 %v594
        %991 = vmatpush1.msra.mxu0 %v593
        %992 = vmatprep.subr.mxu0 %v606
        %993 = vmatpush1.msra.mxu0 %v605
        %994 = vmatprep.subr.mxu0 0.0
        %995 = vmatpush1.msra.mxu0 0.0
        %996 = vmatprep.subr.mxu0 0.0
        %997 = vmatpush1.msra.mxu0 0.0
        %998 = vmatprep.subr.mxu0 0.0
        %999 = vmatpush1.msra.mxu0 0.0
        %1000 = vmatprep.subr.mxu0 0.0
        %1001 = vmatpush1.msra.mxu0 0.0
        %1002 = vmatprep.subr.mxu0 0.0
        %1003 = vmatpush1.msra.mxu0 0.0
        %1004 = vmatprep.subr.mxu0 0.0
        %1005 = vmatpush1.msra.mxu0 0.0
        %1006 = vmatprep.subr.mxu0 0.0
        %1007 = vmatpush1.msra.mxu0 0.0
        %1008 = vmatprep.subr.mxu0 0.0
        %1009 = vmatpush1.msra.mxu0 0.0
        %1010 = vmatprep.subr.mxu0 0.0
        %1011 = vmatpush1.msra.mxu0 0.0
        %1012 = vmatprep.subr.mxu0 0.0
        %1013 = vmatpush1.msra.mxu0 0.0
        %1014 = vmatprep.subr.mxu0 0.0
        %1015 = vmatpush1.msra.mxu0 0.0
        %1016 = vmatprep.subr.mxu0 0.0
        %1017 = vmatpush1.msra.mxu0 0.0
        %1018 = vmatprep.subr.mxu0 0.0
        %1019 = vmatpush1.msra.mxu0 0.0
        %1020 = vmatprep.subr.mxu0 0.0
        %1021 = vmatpush1.msra.mxu0 0.0
        %1022 = vmatprep.subr.mxu0 0.0
        %1023 = vmatpush1.msra.mxu0 0.0
        %1024 = vmatprep.subr.mxu0 0.0
        %1025 = vmatpush1.msra.mxu0 0.0
        %1026 = vmatprep.mubr.f32.mxu0 0.0
        %1027 = vmatmul.mubr.f32.gmra.mrb[0].mxu0 %v409
        %v1028 = vpop.f32.mrb[0].mxu0
        %v1029 = vadd.f32 0.0, %v1028
        %v1030 = vpop.f32.mrb[0].mxu0
        %v1031 = vadd.f32 0.0, %v1030
        %1032 = vdwg.mxu0
        %1033 = vmatprep.subr.mxu0 0.0
        %1034 = vmatpush1.xpose.msra.mxu0 %v816
        %1035 = vmatprep.subr.mxu0 0.0
        %1036 = vmatpush1.xpose.msra.mxu0 0.0
        %1037 = vmatprep.subr.mxu0 0.0
        %1038 = vmatpush1.xpose.msra.mxu0 0.0
        %1039 = vmatprep.subr.mxu0 0.0
        %1040 = vmatpush1.xpose.msra.mxu0 0.0
        %1041 = vmatprep.subr.mxu0 0.0
        %1042 = vmatpush1.xpose.msra.mxu0 0.0
        %1043 = vmatprep.subr.mxu0 0.0
        %1044 = vmatpush1.xpose.msra.mxu0 0.0
        %1045 = vmatprep.subr.mxu0 0.0
        %1046 = vmatpush1.xpose.msra.mxu0 0.0
        %1047 = vmatprep.subr.mxu0 0.0
        %1048 = vmatpush1.xpose.msra.mxu0 0.0
        %1049 = vmatprep.subr.mxu0 0.0
        %1050 = vmatpush1.xpose.msra.mxu0 0.0
        %1051 = vmatprep.subr.mxu0 0.0
        %1052 = vmatpush1.xpose.msra.mxu0 0.0
        %1053 = vmatprep.subr.mxu0 0.0
        %1054 = vmatpush1.xpose.msra.mxu0 0.0
        %1055 = vmatprep.subr.mxu0 0.0
        %1056 = vmatpush1.xpose.msra.mxu0 0.0
        %1057 = vmatprep.subr.mxu0 0.0
        %1058 = vmatpush1.xpose.msra.mxu0 0.0
        %1059 = vmatprep.subr.mxu0 0.0
        %1060 = vmatpush1.xpose.msra.mxu0 0.0
        %1061 = vmatprep.subr.mxu0 0.0
        %1062 = vmatpush1.xpose.msra.mxu0 0.0
        %1063 = vmatprep.subr.mxu0 0.0
        %1064 = vmatpush1.xpose.msra.mxu0 0.0
        %1065 = vmatprep.subr.mxu0 0.0
        %1066 = vmatpush1.xpose.msra.mxu0 0.0
        %1067 = vmatprep.subr.mxu0 0.0
        %1068 = vmatpush1.xpose.msra.mxu0 0.0
        %1069 = vmatprep.subr.mxu0 0.0
        %1070 = vmatpush1.xpose.msra.mxu0 0.0
        %1071 = vmatprep.subr.mxu0 0.0
        %1072 = vmatpush1.xpose.msra.mxu0 0.0
        %1073 = vmatprep.subr.mxu0 0.0
        %1074 = vmatpush1.xpose.msra.mxu0 0.0
        %1075 = vmatprep.subr.mxu0 0.0
        %1076 = vmatpush1.xpose.msra.mxu0 0.0
        %1077 = vmatprep.subr.mxu0 0.0
        %1078 = vmatpush1.xpose.msra.mxu0 0.0
        %1079 = vmatprep.subr.mxu0 0.0
        %1080 = vmatpush1.xpose.msra.mxu0 0.0
        %1081 = vmatprep.subr.mxu0 0.0
        %1082 = vmatpush1.xpose.msra.mxu0 0.0
        %1083 = vmatprep.subr.mxu0 0.0
        %1084 = vmatpush1.xpose.msra.mxu0 0.0
        %1085 = vmatprep.subr.mxu0 0.0
        %1086 = vmatpush1.xpose.msra.mxu0 0.0
        %1087 = vmatprep.subr.mxu0 0.0
        %1088 = vmatpush1.xpose.msra.mxu0 0.0
        %1089 = vmatprep.subr.mxu0 0.0
        %1090 = vmatpush1.xpose.msra.mxu0 0.0
        %1091 = vmatprep.subr.mxu0 0.0
        %1092 = vmatpush1.xpose.msra.mxu0 0.0
        %1093 = vmatprep.subr.mxu0 0.0
        %1094 = vmatpush1.xpose.msra.mxu0 0.0
        %1095 = vmatprep.subr.mxu0 0.0
        %1096 = vmatpush1.xpose.msra.mxu0 0.0
        %1097 = vmatprep.mubr.f32.mxu0 0.0
        %1098 = vmatmul.mubr.f32.gmra.mrb[0].mxu0 %v674
        %v1099 = vpop.f32.mrb[0].mxu0
        %v1100 = vadd.f32 0.0, %v1099
        %v1101 = vpop.f32.mrb[0].mxu0
        %1102 = vdwg.mxu0
        %vm1103 = vcmask 64512
        %v1104 = vsel %vm1103, %v1100, -inf
        %1105 = vmax.xlane.f32.xlu0 %v1104
        %v1106 = vpop.xlane.xlu0 %1105
        %v1107 = vsub.f32 %v1100, %v1106
        %v1108 = vmul.f32 %v1107, 1.442695
        %v1109 = vpow.pop %v1108
        %v1110 = vsel %vm1103, %v1109, 0.0
        %1111 = vadd.xlane.f32.xlu0 %v1110
        %v1112 = vpop.xlane.xlu0 %1111
        %v1113 = vrcp.pop %v1112
        %v1114 = vmul.f32 %v1109, %v1113
        %v1116 = vsel %vm1103, %v1114, 0
        %1118 = vmatprep.subr.mxu0 0.0
        %1119 = vmatpush1.msra.mxu0 %v958
        %1120 = vmatprep.subr.mxu0 0.0
        %1121 = vmatpush1.msra.mxu0 0.0
        %1122 = vmatprep.subr.mxu0 0.0
        %1123 = vmatpush1.msra.mxu0 0.0
        %1124 = vmatprep.subr.mxu0 0.0
        %1125 = vmatpush1.msra.mxu0 0.0
        %1126 = vmatprep.subr.mxu0 0.0
        %1127 = vmatpush1.msra.mxu0 0.0
        %1128 = vmatprep.subr.mxu0 0.0
        %1129 = vmatpush1.msra.mxu0 0.0
        %1130 = vmatprep.subr.mxu0 0.0
        %1131 = vmatpush1.msra.mxu0 0.0
        %1132 = vmatprep.subr.mxu0 0.0
        %1133 = vmatpush1.msra.mxu0 0.0
        %1134 = vmatprep.subr.mxu0 0.0
        %1135 = vmatpush1.msra.mxu0 0.0
        %1136 = vmatprep.subr.mxu0 0.0
        %1137 = vmatpush1.msra.mxu0 0.0
        %1138 = vmatprep.subr.mxu0 0.0
        %1139 = vmatpush1.msra.mxu0 0.0
        %1140 = vmatprep.subr.mxu0 0.0
        %1141 = vmatpush1.msra.mxu0 0.0
        %1142 = vmatprep.subr.mxu0 0.0
        %1143 = vmatpush1.msra.mxu0 0.0
        %1144 = vmatprep.subr.mxu0 0.0
        %1145 = vmatpush1.msra.mxu0 0.0
        %1146 = vmatprep.subr.mxu0 0.0
        %1147 = vmatpush1.msra.mxu0 0.0
        %1148 = vmatprep.subr.mxu0 0.0
        %1149 = vmatpush1.msra.mxu0 0.0
        %1150 = vmatprep.subr.mxu0 0.0
        %1151 = vmatpush1.msra.mxu0 0.0
        %1152 = vmatprep.subr.mxu0 0.0
        %1153 = vmatpush1.msra.mxu0 0.0
        %1154 = vmatprep.subr.mxu0 0.0
        %1155 = vmatpush1.msra.mxu0 0.0
        %1156 = vmatprep.subr.mxu0 0.0
        %1157 = vmatpush1.msra.mxu0 0.0
        %1158 = vmatprep.subr.mxu0 0.0
        %1159 = vmatpush1.msra.mxu0 0.0
        %1160 = vmatprep.subr.mxu0 0.0
        %1161 = vmatpush1.msra.mxu0 0.0
        %1162 = vmatprep.subr.mxu0 0.0
        %1163 = vmatpush1.msra.mxu0 0.0
        %1164 = vmatprep.subr.mxu0 0.0
        %1165 = vmatpush1.msra.mxu0 0.0
        %1166 = vmatprep.subr.mxu0 0.0
        %1167 = vmatpush1.msra.mxu0 0.0
        %1168 = vmatprep.subr.mxu0 0.0
        %1169 = vmatpush1.msra.mxu0 0.0
        %1170 = vmatprep.subr.mxu0 0.0
        %1171 = vmatpush1.msra.mxu0 0.0
        %1172 = vmatprep.subr.mxu0 0.0
        %1173 = vmatpush1.msra.mxu0 0.0
        %1174 = vmatprep.subr.mxu0 0.0
        %1175 = vmatpush1.msra.mxu0 0.0
        %1176 = vmatprep.subr.mxu0 0.0
        %1177 = vmatpush1.msra.mxu0 0.0
        %1178 = vmatprep.subr.mxu0 0.0
        %1179 = vmatpush1.msra.mxu0 0.0
        %1180 = vmatprep.subr.mxu0 0.0
        %1181 = vmatpush1.msra.mxu0 0.0
        %1182 = vmatprep.mubr.f32.mxu0 0.0
        %1183 = vmatmul.mubr.f32.gmra.mrb[0].mxu0 %v1116
        %v1184 = vpop.f32.mrb[0].mxu0
        %v1185 = vadd.f32 0.0, %v1184
        %v1186 = vpop.f32.mrb[0].mxu0
        %1187 = vdwg.mxu0
        %1188 = vmatprep.subr.mxu0 0.0
        %1189 = vmatpush1.xpose.msra.mxu0 %v818
        %1190 = vmatprep.subr.mxu0 0.0
        %1191 = vmatpush1.xpose.msra.mxu0 0.0
        %1192 = vmatprep.subr.mxu0 0.0
        %1193 = vmatpush1.xpose.msra.mxu0 0.0
        %1194 = vmatprep.subr.mxu0 0.0
        %1195 = vmatpush1.xpose.msra.mxu0 0.0
        %1196 = vmatprep.subr.mxu0 0.0
        %1197 = vmatpush1.xpose.msra.mxu0 0.0
        %1198 = vmatprep.subr.mxu0 0.0
        %1199 = vmatpush1.xpose.msra.mxu0 0.0
        %1200 = vmatprep.subr.mxu0 0.0
        %1201 = vmatpush1.xpose.msra.mxu0 0.0
        %1202 = vmatprep.subr.mxu0 0.0
        %1203 = vmatpush1.xpose.msra.mxu0 0.0
        %1204 = vmatprep.subr.mxu0 0.0
        %1205 = vmatpush1.xpose.msra.mxu0 0.0
        %1206 = vmatprep.subr.mxu0 0.0
        %1207 = vmatpush1.xpose.msra.mxu0 0.0
        %1208 = vmatprep.subr.mxu0 0.0
        %1209 = vmatpush1.xpose.msra.mxu0 0.0
        %1210 = vmatprep.subr.mxu0 0.0
        %1211 = vmatpush1.xpose.msra.mxu0 0.0
        %1212 = vmatprep.subr.mxu0 0.0
        %1213 = vmatpush1.xpose.msra.mxu0 0.0
        %1214 = vmatprep.subr.mxu0 0.0
        %1215 = vmatpush1.xpose.msra.mxu0 0.0
        %1216 = vmatprep.subr.mxu0 0.0
        %1217 = vmatpush1.xpose.msra.mxu0 0.0
        %1218 = vmatprep.subr.mxu0 0.0
        %1219 = vmatpush1.xpose.msra.mxu0 0.0
        %1220 = vmatprep.subr.mxu0 0.0
        %1221 = vmatpush1.xpose.msra.mxu0 0.0
        %1222 = vmatprep.subr.mxu0 0.0
        %1223 = vmatpush1.xpose.msra.mxu0 0.0
        %1224 = vmatprep.subr.mxu0 0.0
        %1225 = vmatpush1.xpose.msra.mxu0 0.0
        %1226 = vmatprep.subr.mxu0 0.0
        %1227 = vmatpush1.xpose.msra.mxu0 0.0
        %1228 = vmatprep.subr.mxu0 0.0
        %1229 = vmatpush1.xpose.msra.mxu0 0.0
        %1230 = vmatprep.subr.mxu0 0.0
        %1231 = vmatpush1.xpose.msra.mxu0 0.0
        %1232 = vmatprep.subr.mxu0 0.0
        %1233 = vmatpush1.xpose.msra.mxu0 0.0
        %1234 = vmatprep.subr.mxu0 0.0
        %1235 = vmatpush1.xpose.msra.mxu0 0.0
        %1236 = vmatprep.subr.mxu0 0.0
        %1237 = vmatpush1.xpose.msra.mxu0 0.0
        %1238 = vmatprep.subr.mxu0 0.0
        %1239 = vmatpush1.xpose.msra.mxu0 0.0
        %1240 = vmatprep.subr.mxu0 0.0
        %1241 = vmatpush1.xpose.msra.mxu0 0.0
        %1242 = vmatprep.subr.mxu0 0.0
        %1243 = vmatpush1.xpose.msra.mxu0 0.0
        %1244 = vmatprep.subr.mxu0 0.0
        %1245 = vmatpush1.xpose.msra.mxu0 0.0
        %1246 = vmatprep.subr.mxu0 0.0
        %1247 = vmatpush1.xpose.msra.mxu0 0.0
        %1248 = vmatprep.subr.mxu0 0.0
        %1249 = vmatpush1.xpose.msra.mxu0 0.0
        %1250 = vmatprep.subr.mxu0 0.0
        %1251 = vmatpush1.xpose.msra.mxu0 0.0
        %1252 = vmatprep.mubr.f32.mxu0 0.0
        %1253 = vmatmul.mubr.f32.gmra.mrb[0].mxu0 %v676
        %v1254 = vpop.f32.mrb[0].mxu0
        %v1255 = vadd.f32 0.0, %v1254
        %v1256 = vpop.f32.mrb[0].mxu0
        %1257 = vdwg.mxu0
        %v1258 = vsel %vm1103, %v1255, -inf
        %1259 = vmax.xlane.f32.xlu0 %v1258
        %v1260 = vpop.xlane.xlu0 %1259
        %v1261 = vsub.f32 %v1255, %v1260
        %v1262 = vmul.f32 %v1261, 1.442695
        %v1263 = vpow.pop %v1262
        %v1264 = vsel %vm1103, %v1263, 0.0
        %1265 = vadd.xlane.f32.xlu0 %v1264
        %v1266 = vpop.xlane.xlu0 %1265
        %v1267 = vrcp.pop %v1266
        %v1268 = vmul.f32 %v1263, %v1267
        %v1270 = vsel %vm1103, %v1268, 0
        %1272 = vmatprep.subr.mxu0 0.0
        %1273 = vmatpush1.msra.mxu0 %v960
        %1274 = vmatprep.subr.mxu0 0.0
        %1275 = vmatpush1.msra.mxu0 0.0
        %1276 = vmatprep.subr.mxu0 0.0
        %1277 = vmatpush1.msra.mxu0 0.0
        %1278 = vmatprep.subr.mxu0 0.0
        %1279 = vmatpush1.msra.mxu0 0.0
        %1280 = vmatprep.subr.mxu0 0.0
        %1281 = vmatpush1.msra.mxu0 0.0
        %1282 = vmatprep.subr.mxu0 0.0
        %1283 = vmatpush1.msra.mxu0 0.0
        %1284 = vmatprep.subr.mxu0 0.0
        %1285 = vmatpush1.msra.mxu0 0.0
        %1286 = vmatprep.subr.mxu0 0.0
        %1287 = vmatpush1.msra.mxu0 0.0
        %1288 = vmatprep.subr.mxu0 0.0
        %1289 = vmatpush1.msra.mxu0 0.0
        %1290 = vmatprep.subr.mxu0 0.0
        %1291 = vmatpush1.msra.mxu0 0.0
        %1292 = vmatprep.subr.mxu0 0.0
        %1293 = vmatpush1.msra.mxu0 0.0
        %1294 = vmatprep.subr.mxu0 0.0
        %1295 = vmatpush1.msra.mxu0 0.0
        %1296 = vmatprep.subr.mxu0 0.0
        %1297 = vmatpush1.msra.mxu0 0.0
        %1298 = vmatprep.subr.mxu0 0.0
        %1299 = vmatpush1.msra.mxu0 0.0
        %1300 = vmatprep.subr.mxu0 0.0
        %1301 = vmatpush1.msra.mxu0 0.0
        %1302 = vmatprep.subr.mxu0 0.0
        %1303 = vmatpush1.msra.mxu0 0.0
        %1304 = vmatprep.subr.mxu0 0.0
        %1305 = vmatpush1.msra.mxu0 0.0
        %1306 = vmatprep.subr.mxu0 0.0
        %1307 = vmatpush1.msra.mxu0 0.0
        %1308 = vmatprep.subr.mxu0 0.0
        %1309 = vmatpush1.msra.mxu0 0.0
        %1310 = vmatprep.subr.mxu0 0.0
        %1311 = vmatpush1.msra.mxu0 0.0
        %1312 = vmatprep.subr.mxu0 0.0
        %1313 = vmatpush1.msra.mxu0 0.0
        %1314 = vmatprep.subr.mxu0 0.0
        %1315 = vmatpush1.msra.mxu0 0.0
        %1316 = vmatprep.subr.mxu0 0.0
        %1317 = vmatpush1.msra.mxu0 0.0
        %1318 = vmatprep.subr.mxu0 0.0
        %1319 = vmatpush1.msra.mxu0 0.0
        %1320 = vmatprep.subr.mxu0 0.0
        %1321 = vmatpush1.msra.mxu0 0.0
        %1322 = vmatprep.subr.mxu0 0.0
        %1323 = vmatpush1.msra.mxu0 0.0
        %1324 = vmatprep.subr.mxu0 0.0
        %1325 = vmatpush1.msra.mxu0 0.0
        %1326 = vmatprep.subr.mxu0 0.0
        %1327 = vmatpush1.msra.mxu0 0.0
        %1328 = vmatprep.subr.mxu0 0.0
        %1329 = vmatpush1.msra.mxu0 0.0
        %1330 = vmatprep.subr.mxu0 0.0
        %1331 = vmatpush1.msra.mxu0 0.0
        %1332 = vmatprep.subr.mxu0 0.0
        %1333 = vmatpush1.msra.mxu0 0.0
        %1334 = vmatprep.subr.mxu0 0.0
        %1335 = vmatpush1.msra.mxu0 0.0
        %1336 = vmatprep.mubr.f32.mxu0 0.0
        %1337 = vmatmul.mubr.f32.gmra.mrb[0].mxu0 %v1270
        %v1338 = vpop.f32.mrb[0].mxu0
        %v1339 = vadd.f32 0.0, %v1338
        %v1340 = vpop.f32.mrb[0].mxu0
        %1341 = vdwg.mxu0
        %1342 = vmatprep.subr.mxu0 0.0
        %1343 = vmatpush1.xpose.msra.mxu0 %v887
        %1344 = vmatprep.subr.mxu0 0.0
        %1345 = vmatpush1.xpose.msra.mxu0 0.0
        %1346 = vmatprep.subr.mxu0 0.0
        %1347 = vmatpush1.xpose.msra.mxu0 0.0
        %1348 = vmatprep.subr.mxu0 0.0
        %1349 = vmatpush1.xpose.msra.mxu0 0.0
        %1350 = vmatprep.subr.mxu0 0.0
        %1351 = vmatpush1.xpose.msra.mxu0 0.0
        %1352 = vmatprep.subr.mxu0 0.0
        %1353 = vmatpush1.xpose.msra.mxu0 0.0
        %1354 = vmatprep.subr.mxu0 0.0
        %1355 = vmatpush1.xpose.msra.mxu0 0.0
        %1356 = vmatprep.subr.mxu0 0.0
        %1357 = vmatpush1.xpose.msra.mxu0 0.0
        %1358 = vmatprep.subr.mxu0 0.0
        %1359 = vmatpush1.xpose.msra.mxu0 0.0
        %1360 = vmatprep.subr.mxu0 0.0
        %1361 = vmatpush1.xpose.msra.mxu0 0.0
        %1362 = vmatprep.subr.mxu0 0.0
        %1363 = vmatpush1.xpose.msra.mxu0 0.0
        %1364 = vmatprep.subr.mxu0 0.0
        %1365 = vmatpush1.xpose.msra.mxu0 0.0
        %1366 = vmatprep.subr.mxu0 0.0
        %1367 = vmatpush1.xpose.msra.mxu0 0.0
        %1368 = vmatprep.subr.mxu0 0.0
        %1369 = vmatpush1.xpose.msra.mxu0 0.0
        %1370 = vmatprep.subr.mxu0 0.0
        %1371 = vmatpush1.xpose.msra.mxu0 0.0
        %1372 = vmatprep.subr.mxu0 0.0
        %1373 = vmatpush1.xpose.msra.mxu0 0.0
        %1374 = vmatprep.subr.mxu0 0.0
        %1375 = vmatpush1.xpose.msra.mxu0 0.0
        %1376 = vmatprep.subr.mxu0 0.0
        %1377 = vmatpush1.xpose.msra.mxu0 0.0
        %1378 = vmatprep.subr.mxu0 0.0
        %1379 = vmatpush1.xpose.msra.mxu0 0.0
        %1380 = vmatprep.subr.mxu0 0.0
        %1381 = vmatpush1.xpose.msra.mxu0 0.0
        %1382 = vmatprep.subr.mxu0 0.0
        %1383 = vmatpush1.xpose.msra.mxu0 0.0
        %1384 = vmatprep.subr.mxu0 0.0
        %1385 = vmatpush1.xpose.msra.mxu0 0.0
        %1386 = vmatprep.subr.mxu0 0.0
        %1387 = vmatpush1.xpose.msra.mxu0 0.0
        %1388 = vmatprep.subr.mxu0 0.0
        %1389 = vmatpush1.xpose.msra.mxu0 0.0
        %1390 = vmatprep.subr.mxu0 0.0
        %1391 = vmatpush1.xpose.msra.mxu0 0.0
        %1392 = vmatprep.subr.mxu0 0.0
        %1393 = vmatpush1.xpose.msra.mxu0 0.0
        %1394 = vmatprep.subr.mxu0 0.0
        %1395 = vmatpush1.xpose.msra.mxu0 0.0
        %1396 = vmatprep.subr.mxu0 0.0
        %1397 = vmatpush1.xpose.msra.mxu0 0.0
        %1398 = vmatprep.subr.mxu0 0.0
        %1399 = vmatpush1.xpose.msra.mxu0 0.0
        %1400 = vmatprep.subr.mxu0 0.0
        %1401 = vmatpush1.xpose.msra.mxu0 0.0
        %1402 = vmatprep.subr.mxu0 0.0
        %1403 = vmatpush1.xpose.msra.mxu0 0.0
        %1404 = vmatprep.subr.mxu0 0.0
        %1405 = vmatpush1.xpose.msra.mxu0 0.0
        %1406 = vmatprep.mubr.f32.mxu0 0.0
        %1407 = vmatmul.mubr.f32.gmra.mrb[0].mxu0 %v745
        %v1408 = vpop.f32.mrb[0].mxu0
        %v1409 = vadd.f32 0.0, %v1408
        %v1410 = vpop.f32.mrb[0].mxu0
        %1411 = vdwg.mxu0
        %v1412 = vsel %vm1103, %v1409, -inf
        %1413 = vmax.xlane.f32.xlu0 %v1412
        %v1414 = vpop.xlane.xlu0 %1413
        %v1415 = vsub.f32 %v1409, %v1414
        %v1416 = vmul.f32 %v1415, 1.442695
        %v1417 = vpow.pop %v1416
        %v1418 = vsel %vm1103, %v1417, 0.0
        %1419 = vadd.xlane.f32.xlu0 %v1418
        %v1420 = vpop.xlane.xlu0 %1419
        %v1421 = vrcp.pop %v1420
        %v1422 = vmul.f32 %v1417, %v1421
        %v1424 = vsel %vm1103, %v1422, 0
        %1426 = vmatprep.subr.mxu0 0.0
        %1427 = vmatpush1.msra.mxu0 %v1029
        %1428 = vmatprep.subr.mxu0 0.0
        %1429 = vmatpush1.msra.mxu0 0.0
        %1430 = vmatprep.subr.mxu0 0.0
        %1431 = vmatpush1.msra.mxu0 0.0
        %1432 = vmatprep.subr.mxu0 0.0
        %1433 = vmatpush1.msra.mxu0 0.0
        %1434 = vmatprep.subr.mxu0 0.0
        %1435 = vmatpush1.msra.mxu0 0.0
        %1436 = vmatprep.subr.mxu0 0.0
        %1437 = vmatpush1.msra.mxu0 0.0
        %1438 = vmatprep.subr.mxu0 0.0
        %1439 = vmatpush1.msra.mxu0 0.0
        %1440 = vmatprep.subr.mxu0 0.0
        %1441 = vmatpush1.msra.mxu0 0.0
        %1442 = vmatprep.subr.mxu0 0.0
        %1443 = vmatpush1.msra.mxu0 0.0
        %1444 = vmatprep.subr.mxu0 0.0
        %1445 = vmatpush1.msra.mxu0 0.0
        %1446 = vmatprep.subr.mxu0 0.0
        %1447 = vmatpush1.msra.mxu0 0.0
        %1448 = vmatprep.subr.mxu0 0.0
        %1449 = vmatpush1.msra.mxu0 0.0
        %1450 = vmatprep.subr.mxu0 0.0
        %1451 = vmatpush1.msra.mxu0 0.0
        %1452 = vmatprep.subr.mxu0 0.0
        %1453 = vmatpush1.msra.mxu0 0.0
        %1454 = vmatprep.subr.mxu0 0.0
        %1455 = vmatpush1.msra.mxu0 0.0
        %1456 = vmatprep.subr.mxu0 0.0
        %1457 = vmatpush1.msra.mxu0 0.0
        %1458 = vmatprep.subr.mxu0 0.0
        %1459 = vmatpush1.msra.mxu0 0.0
        %1460 = vmatprep.subr.mxu0 0.0
        %1461 = vmatpush1.msra.mxu0 0.0
        %1462 = vmatprep.subr.mxu0 0.0
        %1463 = vmatpush1.msra.mxu0 0.0
        %1464 = vmatprep.subr.mxu0 0.0
        %1465 = vmatpush1.msra.mxu0 0.0
        %1466 = vmatprep.subr.mxu0 0.0
        %1467 = vmatpush1.msra.mxu0 0.0
        %1468 = vmatprep.subr.mxu0 0.0
        %1469 = vmatpush1.msra.mxu0 0.0
        %1470 = vmatprep.subr.mxu0 0.0
        %1471 = vmatpush1.msra.mxu0 0.0
        %1472 = vmatprep.subr.mxu0 0.0
        %1473 = vmatpush1.msra.mxu0 0.0
        %1474 = vmatprep.subr.mxu0 0.0
        %1475 = vmatpush1.msra.mxu0 0.0
        %1476 = vmatprep.subr.mxu0 0.0
        %1477 = vmatpush1.msra.mxu0 0.0
        %1478 = vmatprep.subr.mxu0 0.0
        %1479 = vmatpush1.msra.mxu0 0.0
        %1480 = vmatprep.subr.mxu0 0.0
        %1481 = vmatpush1.msra.mxu0 0.0
        %1482 = vmatprep.subr.mxu0 0.0
        %1483 = vmatpush1.msra.mxu0 0.0
        %1484 = vmatprep.subr.mxu0 0.0
        %1485 = vmatpush1.msra.mxu0 0.0
        %1486 = vmatprep.subr.mxu0 0.0
        %1487 = vmatpush1.msra.mxu0 0.0
        %1488 = vmatprep.subr.mxu0 0.0
        %1489 = vmatpush1.msra.mxu0 0.0
        %1490 = vmatprep.mubr.f32.mxu0 0.0
        %1491 = vmatmul.mubr.f32.gmra.mrb[0].mxu0 %v1424
        %v1492 = vpop.f32.mrb[0].mxu0
        %v1493 = vadd.f32 0.0, %v1492
        %v1494 = vpop.f32.mrb[0].mxu0
        %1495 = vdwg.mxu0
        %1496 = vmatprep.subr.mxu0 0.0
        %1497 = vmatpush1.xpose.msra.mxu0 %v889
        %1498 = vmatprep.subr.mxu0 0.0
        %1499 = vmatpush1.xpose.msra.mxu0 0.0
        %1500 = vmatprep.subr.mxu0 0.0
        %1501 = vmatpush1.xpose.msra.mxu0 0.0
        %1502 = vmatprep.subr.mxu0 0.0
        %1503 = vmatpush1.xpose.msra.mxu0 0.0
        %1504 = vmatprep.subr.mxu0 0.0
        %1505 = vmatpush1.xpose.msra.mxu0 0.0
        %1506 = vmatprep.subr.mxu0 0.0
        %1507 = vmatpush1.xpose.msra.mxu0 0.0
        %1508 = vmatprep.subr.mxu0 0.0
        %1509 = vmatpush1.xpose.msra.mxu0 0.0
        %1510 = vmatprep.subr.mxu0 0.0
        %1511 = vmatpush1.xpose.msra.mxu0 0.0
        %1512 = vmatprep.subr.mxu0 0.0
        %1513 = vmatpush1.xpose.msra.mxu0 0.0
        %1514 = vmatprep.subr.mxu0 0.0
        %1515 = vmatpush1.xpose.msra.mxu0 0.0
        %1516 = vmatprep.subr.mxu0 0.0
        %1517 = vmatpush1.xpose.msra.mxu0 0.0
        %1518 = vmatprep.subr.mxu0 0.0
        %1519 = vmatpush1.xpose.msra.mxu0 0.0
        %1520 = vmatprep.subr.mxu0 0.0
        %1521 = vmatpush1.xpose.msra.mxu0 0.0
        %1522 = vmatprep.subr.mxu0 0.0
        %1523 = vmatpush1.xpose.msra.mxu0 0.0
        %1524 = vmatprep.subr.mxu0 0.0
        %1525 = vmatpush1.xpose.msra.mxu0 0.0
        %1526 = vmatprep.subr.mxu0 0.0
        %1527 = vmatpush1.xpose.msra.mxu0 0.0
        %1528 = vmatprep.subr.mxu0 0.0
        %1529 = vmatpush1.xpose.msra.mxu0 0.0
        %1530 = vmatprep.subr.mxu0 0.0
        %1531 = vmatpush1.xpose.msra.mxu0 0.0
        %1532 = vmatprep.subr.mxu0 0.0
        %1533 = vmatpush1.xpose.msra.mxu0 0.0
        %1534 = vmatprep.subr.mxu0 0.0
        %1535 = vmatpush1.xpose.msra.mxu0 0.0
        %1536 = vmatprep.subr.mxu0 0.0
        %1537 = vmatpush1.xpose.msra.mxu0 0.0
        %1538 = vmatprep.subr.mxu0 0.0
        %1539 = vmatpush1.xpose.msra.mxu0 0.0
        %1540 = vmatprep.subr.mxu0 0.0
        %1541 = vmatpush1.xpose.msra.mxu0 0.0
        %1542 = vmatprep.subr.mxu0 0.0
        %1543 = vmatpush1.xpose.msra.mxu0 0.0
        %1544 = vmatprep.subr.mxu0 0.0
        %1545 = vmatpush1.xpose.msra.mxu0 0.0
        %1546 = vmatprep.subr.mxu0 0.0
        %1547 = vmatpush1.xpose.msra.mxu0 0.0
        %1548 = vmatprep.subr.mxu0 0.0
        %1549 = vmatpush1.xpose.msra.mxu0 0.0
        %1550 = vmatprep.subr.mxu0 0.0
        %1551 = vmatpush1.xpose.msra.mxu0 0.0
        %1552 = vmatprep.subr.mxu0 0.0
        %1553 = vmatpush1.xpose.msra.mxu0 0.0
        %1554 = vmatprep.subr.mxu0 0.0
        %1555 = vmatpush1.xpose.msra.mxu0 0.0
        %1556 = vmatprep.subr.mxu0 0.0
        %1557 = vmatpush1.xpose.msra.mxu0 0.0
        %1558 = vmatprep.subr.mxu0 0.0
        %1559 = vmatpush1.xpose.msra.mxu0 0.0
        %1560 = vmatprep.mubr.f32.mxu0 0.0
        %1561 = vmatmul.mubr.f32.gmra.mrb[0].mxu0 %v747
        %v1562 = vpop.f32.mrb[0].mxu0
        %v1563 = vadd.f32 0.0, %v1562
        %v1564 = vpop.f32.mrb[0].mxu0
        %1565 = vdwg.mxu0
        %v1566 = vsel %vm1103, %v1563, -inf
        %1567 = vmax.xlane.f32.xlu0 %v1566
        %v1568 = vpop.xlane.xlu0 %1567
        %v1569 = vsub.f32 %v1563, %v1568
        %v1570 = vmul.f32 %v1569, 1.442695
        %v1571 = vpow.pop %v1570
        %v1572 = vsel %vm1103, %v1571, 0.0
        %1573 = vadd.xlane.f32.xlu0 %v1572
        %v1574 = vpop.xlane.xlu0 %1573
        %v1575 = vrcp.pop %v1574
        %v1576 = vmul.f32 %v1571, %v1575
        %v1578 = vsel %vm1103, %v1576, 0
        %1580 = vmatprep.subr.mxu0 0.0
        %1581 = vmatpush1.msra.mxu0 %v1031
        %1582 = vmatprep.subr.mxu0 0.0
        %1583 = vmatpush1.msra.mxu0 0.0
        %1584 = vmatprep.subr.mxu0 0.0
        %1585 = vmatpush1.msra.mxu0 0.0
        %1586 = vmatprep.subr.mxu0 0.0
        %1587 = vmatpush1.msra.mxu0 0.0
        %1588 = vmatprep.subr.mxu0 0.0
        %1589 = vmatpush1.msra.mxu0 0.0
        %1590 = vmatprep.subr.mxu0 0.0
        %1591 = vmatpush1.msra.mxu0 0.0
        %1592 = vmatprep.subr.mxu0 0.0
        %1593 = vmatpush1.msra.mxu0 0.0
        %1594 = vmatprep.subr.mxu0 0.0
        %1595 = vmatpush1.msra.mxu0 0.0
        %1596 = vmatprep.subr.mxu0 0.0
        %1597 = vmatpush1.msra.mxu0 0.0
        %1598 = vmatprep.subr.mxu0 0.0
        %1599 = vmatpush1.msra.mxu0 0.0
        %1600 = vmatprep.subr.mxu0 0.0
        %1601 = vmatpush1.msra.mxu0 0.0
        %1602 = vmatprep.subr.mxu0 0.0
        %1603 = vmatpush1.msra.mxu0 0.0
        %1604 = vmatprep.subr.mxu0 0.0
        %1605 = vmatpush1.msra.mxu0 0.0
        %1606 = vmatprep.subr.mxu0 0.0
        %1607 = vmatpush1.msra.mxu0 0.0
        %1608 = vmatprep.subr.mxu0 0.0
        %1609 = vmatpush1.msra.mxu0 0.0
        %1610 = vmatprep.subr.mxu0 0.0
        %1611 = vmatpush1.msra.mxu0 0.0
        %1612 = vmatprep.subr.mxu0 0.0
        %1613 = vmatpush1.msra.mxu0 0.0
        %1614 = vmatprep.subr.mxu0 0.0
        %1615 = vmatpush1.msra.mxu0 0.0
        %1616 = vmatprep.subr.mxu0 0.0
        %1617 = vmatpush1.msra.mxu0 0.0
        %1618 = vmatprep.subr.mxu0 0.0
        %1619 = vmatpush1.msra.mxu0 0.0
        %1620 = vmatprep.subr.mxu0 0.0
        %1621 = vmatpush1.msra.mxu0 0.0
        %1622 = vmatprep.subr.mxu0 0.0
        %1623 = vmatpush1.msra.mxu0 0.0
        %1624 = vmatprep.subr.mxu0 0.0
        %1625 = vmatpush1.msra.mxu0 0.0
        %1626 = vmatprep.subr.mxu0 0.0
        %1627 = vmatpush1.msra.mxu0 0.0
        %1628 = vmatprep.subr.mxu0 0.0
        %1629 = vmatpush1.msra.mxu0 0.0
        %1630 = vmatprep.subr.mxu0 0.0
        %1631 = vmatpush1.msra.mxu0 0.0
        %1632 = vmatprep.subr.mxu0 0.0
        %1633 = vmatpush1.msra.mxu0 0.0
        %1634 = vmatprep.subr.mxu0 0.0
        %1635 = vmatpush1.msra.mxu0 0.0
        %1636 = vmatprep.subr.mxu0 0.0
        %1637 = vmatpush1.msra.mxu0 0.0
        %1638 = vmatprep.subr.mxu0 0.0
        %1639 = vmatpush1.msra.mxu0 0.0
        %1640 = vmatprep.subr.mxu0 0.0
        %1641 = vmatpush1.msra.mxu0 0.0
        %1642 = vmatprep.subr.mxu0 0.0
        %1643 = vmatpush1.msra.mxu0 0.0
        %1644 = vmatprep.mubr.f32.mxu0 0.0
        %1645 = vmatmul.mubr.f32.gmra.mrb[0].mxu0 %v1578
        %v1646 = vpop.f32.mrb[0].mxu0
        %v1647 = vadd.f32 0.0, %v1646
        %v1648 = vpop.f32.mrb[0].mxu0
        %1649 = vdwg.mxu0
        %v1650 = vld [vmem:[%s2] sm:$0xff]
        %v1651 = vld [vmem:[%s2 + $0x8] sm:$0xff]
        %v1652 = vld [vmem:[%s2 + $0x10] sm:$0xff]
        %v1653 = vld [vmem:[%s2 + $0x18] sm:$0xff]
        %v1654 = vld [vmem:[%s2 + $0x20] sm:$0xff]
        %v1655 = vld [vmem:[%s2 + $0x28] sm:$0xff]
        %v1656 = vld [vmem:[%s2 + $0x30] sm:$0xff]
        %v1657 = vld [vmem:[%s2 + $0x38] sm:$0xff]
        %v1658 = vld [vmem:[%s2 + $0x40] sm:$0xff]
        %v1659 = vld [vmem:[%s2 + $0x48] sm:$0xff]
        %v1660 = vld [vmem:[%s2 + $0x50] sm:$0xff]
        %v1661 = vld [vmem:[%s2 + $0x58] sm:$0xff]
        %v1662 = vld [vmem:[%s2 + $0x60] sm:$0xff]
        %v1663 = vld [vmem:[%s2 + $0x68] sm:$0xff]
        %v1664 = vld [vmem:[%s2 + $0x70] sm:$0xff]
        %v1665 = vld [vmem:[%s2 + $0x78] sm:$0xff]
        %v1666 = vld [vmem:[%s2 + $0x80] sm:$0xff]
        %v1667 = vld [vmem:[%s2 + $0x88] sm:$0xff]
        %v1668 = vld [vmem:[%s2 + $0x90] sm:$0xff]
        %v1669 = vld [vmem:[%s2 + $0x98] sm:$0xff]
        %v1670 = vld [vmem:[%s2 + $0xa0] sm:$0xff]
        %v1671 = vld [vmem:[%s2 + $0xa8] sm:$0xff]
        %v1672 = vld [vmem:[%s2 + $0xb0] sm:$0xff]
        %v1673 = vld [vmem:[%s2 + $0xb8] sm:$0xff]
        %v1674 = vld [vmem:[%s2 + $0xc0] sm:$0xff]
        %v1675 = vld [vmem:[%s2 + $0xc8] sm:$0xff]
        %v1676 = vld [vmem:[%s2 + $0xd0] sm:$0xff]
        %v1677 = vld [vmem:[%s2 + $0xd8] sm:$0xff]
        %v1678 = vld [vmem:[%s2 + $0xe0] sm:$0xff]
        %v1679 = vld [vmem:[%s2 + $0xe8] sm:$0xff]
        %v1680 = vld [vmem:[%s2 + $0xf0] sm:$0xff]
        %v1681 = vld [vmem:[%s2 + $0xf8] sm:$0xff]
        %v1682 = vld [vmem:[%s2 + $0x100] sm:$0xff]
        %v1683 = vld [vmem:[%s2 + $0x108] sm:$0xff]
        %v1684 = vld [vmem:[%s2 + $0x110] sm:$0xff]
        %v1685 = vld [vmem:[%s2 + $0x118] sm:$0xff]
        %v1686 = vld [vmem:[%s2 + $0x120] sm:$0xff]
        %v1687 = vld [vmem:[%s2 + $0x128] sm:$0xff]
        %v1688 = vld [vmem:[%s2 + $0x130] sm:$0xff]
        %v1689 = vld [vmem:[%s2 + $0x138] sm:$0xff]
        %v1690 = vld [vmem:[%s2 + $0x140] sm:$0xff]
        %v1691 = vld [vmem:[%s2 + $0x148] sm:$0xff]
        %v1692 = vld [vmem:[%s2 + $0x150] sm:$0xff]
        %v1693 = vld [vmem:[%s2 + $0x158] sm:$0xff]
        %v1694 = vld [vmem:[%s2 + $0x160] sm:$0xff]
        %v1695 = vld [vmem:[%s2 + $0x168] sm:$0xff]
        %v1696 = vld [vmem:[%s2 + $0x170] sm:$0xff]
        %v1697 = vld [vmem:[%s2 + $0x178] sm:$0xff]
        %v1698 = vld [vmem:[%s2 + $0x180] sm:$0xff]
        %v1699 = vld [vmem:[%s2 + $0x188] sm:$0xff]
        %v1700 = vld [vmem:[%s2 + $0x190] sm:$0xff]
        %v1701 = vld [vmem:[%s2 + $0x198] sm:$0xff]
        %v1702 = vld [vmem:[%s2 + $0x1a0] sm:$0xff]
        %v1703 = vld [vmem:[%s2 + $0x1a8] sm:$0xff]
        %v1704 = vld [vmem:[%s2 + $0x1b0] sm:$0xff]
        %v1705 = vld [vmem:[%s2 + $0x1b8] sm:$0xff]
        %v1706 = vld [vmem:[%s2 + $0x1c0] sm:$0xff]
        %v1707 = vld [vmem:[%s2 + $0x1c8] sm:$0xff]
        %v1708 = vld [vmem:[%s2 + $0x1d0] sm:$0xff]
        %v1709 = vld [vmem:[%s2 + $0x1d8] sm:$0xff]
        %v1710 = vld [vmem:[%s2 + $0x1e0] sm:$0xff]
        %v1711 = vld [vmem:[%s2 + $0x1e8] sm:$0xff]
        %v1712 = vld [vmem:[%s2 + $0x1f0] sm:$0xff]
        %v1713 = vld [vmem:[%s2 + $0x1f8] sm:$0xff]
        %v1714 = vld [vmem:[%s3] sm:$0x1]
        %v1716 = vlaneseq
        %v1717 = vshrl.u32 %v1716, 7
        %v1718 = vsub.s32 0, %v1717
        %v1719 = vrot.slane %v1714, %v1718
        %1721 = vmatprep.subr.mxu0 0.0
        %1722 = vmatpush1.msra.mxu0 %v1650
        %1723 = vmatprep.subr.mxu0 0.0
        %1724 = vmatpush1.msra.mxu0 %v1651
        %1725 = vmatprep.subr.mxu0 0.0
        %1726 = vmatpush1.msra.mxu0 %v1652
        %1727 = vmatprep.subr.mxu0 0.0
        %1728 = vmatpush1.msra.mxu0 %v1653
        %1729 = vmatprep.subr.mxu0 0.0
        %1730 = vmatpush1.msra.mxu0 %v1654
        %1731 = vmatprep.subr.mxu0 0.0
        %1732 = vmatpush1.msra.mxu0 %v1655
        %1733 = vmatprep.subr.mxu0 0.0
        %1734 = vmatpush1.msra.mxu0 %v1656
        %1735 = vmatprep.subr.mxu0 0.0
        %1736 = vmatpush1.msra.mxu0 %v1657
        %1737 = vmatprep.subr.mxu0 0.0
        %1738 = vmatpush1.msra.mxu0 %v1658
        %1739 = vmatprep.subr.mxu0 0.0
        %1740 = vmatpush1.msra.mxu0 %v1659
        %1741 = vmatprep.subr.mxu0 0.0
        %1742 = vmatpush1.msra.mxu0 %v1660
        %1743 = vmatprep.subr.mxu0 0.0
        %1744 = vmatpush1.msra.mxu0 %v1661
        %1745 = vmatprep.subr.mxu0 0.0
        %1746 = vmatpush1.msra.mxu0 %v1662
        %1747 = vmatprep.subr.mxu0 0.0
        %1748 = vmatpush1.msra.mxu0 %v1663
        %1749 = vmatprep.subr.mxu0 0.0
        %1750 = vmatpush1.msra.mxu0 %v1664
        %1751 = vmatprep.subr.mxu0 0.0
        %1752 = vmatpush1.msra.mxu0 %v1665
        %1753 = vmatprep.subr.mxu0 0.0
        %1754 = vmatpush1.msra.mxu0 %v1666
        %1755 = vmatprep.subr.mxu0 0.0
        %1756 = vmatpush1.msra.mxu0 %v1667
        %1757 = vmatprep.subr.mxu0 0.0
        %1758 = vmatpush1.msra.mxu0 %v1668
        %1759 = vmatprep.subr.mxu0 0.0
        %1760 = vmatpush1.msra.mxu0 %v1669
        %1761 = vmatprep.subr.mxu0 0.0
        %1762 = vmatpush1.msra.mxu0 %v1670
        %1763 = vmatprep.subr.mxu0 0.0
        %1764 = vmatpush1.msra.mxu0 %v1671
        %1765 = vmatprep.subr.mxu0 0.0
        %1766 = vmatpush1.msra.mxu0 %v1672
        %1767 = vmatprep.subr.mxu0 0.0
        %1768 = vmatpush1.msra.mxu0 %v1673
        %1769 = vmatprep.subr.mxu0 0.0
        %1770 = vmatpush1.msra.mxu0 %v1674
        %1771 = vmatprep.subr.mxu0 0.0
        %1772 = vmatpush1.msra.mxu0 %v1675
        %1773 = vmatprep.subr.mxu0 0.0
        %1774 = vmatpush1.msra.mxu0 %v1676
        %1775 = vmatprep.subr.mxu0 0.0
        %1776 = vmatpush1.msra.mxu0 %v1677
        %1777 = vmatprep.subr.mxu0 0.0
        %1778 = vmatpush1.msra.mxu0 %v1678
        %1779 = vmatprep.subr.mxu0 0.0
        %1780 = vmatpush1.msra.mxu0 %v1679
        %1781 = vmatprep.subr.mxu0 0.0
        %1782 = vmatpush1.msra.mxu0 %v1680
        %1783 = vmatprep.subr.mxu0 0.0
        %1784 = vmatpush1.msra.mxu0 %v1681
        %1785 = vmatprep.mubr.f32.mxu0 %v1339
        %1786 = vmatmul.mubr.f32.gmra.mrb[0].mxu0 %v1185
        %v1787 = vpop.f32.mrb[0].mxu0
        %v1788 = vadd.f32 %v1719, %v1787
        %v1789 = vpop.f32.mrb[0].mxu0
        %1790 = vdwg.mxu0
        %1791 = vmatprep.subr.mxu0 0.0
        %1792 = vmatpush1.msra.mxu0 %v1682
        %1793 = vmatprep.subr.mxu0 0.0
        %1794 = vmatpush1.msra.mxu0 %v1683
        %1795 = vmatprep.subr.mxu0 0.0
        %1796 = vmatpush1.msra.mxu0 %v1684
        %1797 = vmatprep.subr.mxu0 0.0
        %1798 = vmatpush1.msra.mxu0 %v1685
        %1799 = vmatprep.subr.mxu0 0.0
        %1800 = vmatpush1.msra.mxu0 %v1686
        %1801 = vmatprep.subr.mxu0 0.0
        %1802 = vmatpush1.msra.mxu0 %v1687
        %1803 = vmatprep.subr.mxu0 0.0
        %1804 = vmatpush1.msra.mxu0 %v1688
        %1805 = vmatprep.subr.mxu0 0.0
        %1806 = vmatpush1.msra.mxu0 %v1689
        %1807 = vmatprep.subr.mxu0 0.0
        %1808 = vmatpush1.msra.mxu0 %v1690
        %1809 = vmatprep.subr.mxu0 0.0
        %1810 = vmatpush1.msra.mxu0 %v1691
        %1811 = vmatprep.subr.mxu0 0.0
        %1812 = vmatpush1.msra.mxu0 %v1692
        %1813 = vmatprep.subr.mxu0 0.0
        %1814 = vmatpush1.msra.mxu0 %v1693
        %1815 = vmatprep.subr.mxu0 0.0
        %1816 = vmatpush1.msra.mxu0 %v1694
        %1817 = vmatprep.subr.mxu0 0.0
        %1818 = vmatpush1.msra.mxu0 %v1695
        %1819 = vmatprep.subr.mxu0 0.0
        %1820 = vmatpush1.msra.mxu0 %v1696
        %1821 = vmatprep.subr.mxu0 0.0
        %1822 = vmatpush1.msra.mxu0 %v1697
        %1823 = vmatprep.subr.mxu0 0.0
        %1824 = vmatpush1.msra.mxu0 %v1698
        %1825 = vmatprep.subr.mxu0 0.0
        %1826 = vmatpush1.msra.mxu0 %v1699
        %1827 = vmatprep.subr.mxu0 0.0
        %1828 = vmatpush1.msra.mxu0 %v1700
        %1829 = vmatprep.subr.mxu0 0.0
        %1830 = vmatpush1.msra.mxu0 %v1701
        %1831 = vmatprep.subr.mxu0 0.0
        %1832 = vmatpush1.msra.mxu0 %v1702
        %1833 = vmatprep.subr.mxu0 0.0
        %1834 = vmatpush1.msra.mxu0 %v1703
        %1835 = vmatprep.subr.mxu0 0.0
        %1836 = vmatpush1.msra.mxu0 %v1704
        %1837 = vmatprep.subr.mxu0 0.0
        %1838 = vmatpush1.msra.mxu0 %v1705
        %1839 = vmatprep.subr.mxu0 0.0
        %1840 = vmatpush1.msra.mxu0 %v1706
        %1841 = vmatprep.subr.mxu0 0.0
        %1842 = vmatpush1.msra.mxu0 %v1707
        %1843 = vmatprep.subr.mxu0 0.0
        %1844 = vmatpush1.msra.mxu0 %v1708
        %1845 = vmatprep.subr.mxu0 0.0
        %1846 = vmatpush1.msra.mxu0 %v1709
        %1847 = vmatprep.subr.mxu0 0.0
        %1848 = vmatpush1.msra.mxu0 %v1710
        %1849 = vmatprep.subr.mxu0 0.0
        %1850 = vmatpush1.msra.mxu0 %v1711
        %1851 = vmatprep.subr.mxu0 0.0
        %1852 = vmatpush1.msra.mxu0 %v1712
        %1853 = vmatprep.subr.mxu0 0.0
        %1854 = vmatpush1.msra.mxu0 %v1713
        %1855 = vmatprep.mubr.f32.mxu0 %v1647
        %1856 = vmatmul.mubr.f32.gmra.mrb[0].mxu0 %v1493
        %v1857 = vpop.f32.mrb[0].mxu0
        %v1858 = vadd.f32 %v1788, %v1857
        %v1859 = vpop.f32.mrb[0].mxu0
        %1860 = vdwg.mxu0
        %v1861 = vadd.f32 %v1858, %v409
        %v1862 = vld [vmem:[%s4] sm:$0x1]
        %v1863 = vld [vmem:[%s5] sm:$0x1]
        %1864 = vadd.xlane.f32.xlu0 %v1861
        %v1865 = vpop.xlane.xlu0 %1864
        %v1866 = vmul.f32 %v1865, 0.03125
        %v1867 = vsub.f32 %v1861, %v1866
        %v1868 = vmul.f32 %v1867, %v414
        %v1869 = vmul.f32 %v1868, %v1868
        %1870 = vadd.xlane.f32.xlu0 %v1869
        %v1871 = vpop.xlane.xlu0 %1870
        %v1872 = vmul.f32 %v1871, 0.03125
        %v1873 = vadd.f32 %v1872, 1e-05
        %v1874 = vrsqrt.pop %v1873
        %v1875 = vmul.f32 %v1868, %v1874
        %v1877 = vlaneseq
        %v1878 = vshrl.u32 %v1877, 7
        %v1879 = vsub.s32 0, %v1878
        %v1880 = vrot.slane %v1862, %v1879
        %v1882 = vmul.f32 %v1875, %v1880
        %v1884 = vlaneseq
        %v1885 = vshrl.u32 %v1884, 7
        %v1886 = vsub.s32 0, %v1885
        %v1887 = vrot.slane %v1863, %v1886
        %v1889 = vadd.f32 %v1882, %v1887
        %v1890 = vld [vmem:[%s6] sm:$0xff]
        %v1891 = vld [vmem:[%s6 + $0x8] sm:$0xff]
        %v1892 = vld [vmem:[%s6 + $0x10] sm:$0xff]
        %v1893 = vld [vmem:[%s6 + $0x18] sm:$0xff]
        %v1894 = vld [vmem:[%s6 + $0x20] sm:$0xff]
        %v1895 = vld [vmem:[%s6 + $0x28] sm:$0xff]
        %v1896 = vld [vmem:[%s6 + $0x30] sm:$0xff]
        %v1897 = vld [vmem:[%s6 + $0x38] sm:$0xff]
        %v1898 = vld [vmem:[%s6 + $0x40] sm:$0xff]
        %v1899 = vld [vmem:[%s6 + $0x48] sm:$0xff]
        %v1900 = vld [vmem:[%s6 + $0x50] sm:$0xff]
        %v1901 = vld [vmem:[%s6 + $0x58] sm:$0xff]
        %v1902 = vld [vmem:[%s6 + $0x60] sm:$0xff]
        %v1903 = vld [vmem:[%s6 + $0x68] sm:$0xff]
        %v1904 = vld [vmem:[%s6 + $0x70] sm:$0xff]
        %v1905 = vld [vmem:[%s6 + $0x78] sm:$0xff]
        %v1906 = vld [vmem:[%s7] sm:$0x1]
        %v1908 = vlaneseq
        %v1909 = vshrl.u32 %v1908, 7
        %v1910 = vsub.s32 0, %v1909
        %v1911 = vrot.slane %v1906, %v1910
        %1913 = vmatprep.subr.mxu0 0.0
        %1914 = vmatpush1.msra.mxu0 %v1890
        %1915 = vmatprep.subr.mxu0 0.0
        %1916 = vmatpush1.msra.mxu0 %v1891
        %1917 = vmatprep.subr.mxu0 0.0
        %1918 = vmatpush1.msra.mxu0 %v1892
        %1919 = vmatprep.subr.mxu0 0.0
        %1920 = vmatpush1.msra.mxu0 %v1893
        %1921 = vmatprep.subr.mxu0 0.0
        %1922 = vmatpush1.msra.mxu0 %v1894
        %1923 = vmatprep.subr.mxu0 0.0
        %1924 = vmatpush1.msra.mxu0 %v1895
        %1925 = vmatprep.subr.mxu0 0.0
        %1926 = vmatpush1.msra.mxu0 %v1896
        %1927 = vmatprep.subr.mxu0 0.0
        %1928 = vmatpush1.msra.mxu0 %v1897
        %1929 = vmatprep.subr.mxu0 0.0
        %1930 = vmatpush1.msra.mxu0 %v1898
        %1931 = vmatprep.subr.mxu0 0.0
        %1932 = vmatpush1.msra.mxu0 %v1899
        %1933 = vmatprep.subr.mxu0 0.0
        %1934 = vmatpush1.msra.mxu0 %v1900
        %1935 = vmatprep.subr.mxu0 0.0
        %1936 = vmatpush1.msra.mxu0 %v1901
        %1937 = vmatprep.subr.mxu0 0.0
        %1938 = vmatpush1.msra.mxu0 %v1902
        %1939 = vmatprep.subr.mxu0 0.0
        %1940 = vmatpush1.msra.mxu0 %v1903
        %1941 = vmatprep.subr.mxu0 0.0
        %1942 = vmatpush1.msra.mxu0 %v1904
        %1943 = vmatprep.subr.mxu0 0.0
        %1944 = vmatpush1.msra.mxu0 %v1905
        %1945 = vmatprep.subr.mxu0 0.0
        %1946 = vmatpush1.msra.mxu0 0.0
        %1947 = vmatprep.subr.mxu0 0.0
        %1948 = vmatpush1.msra.mxu0 0.0
        %1949 = vmatprep.subr.mxu0 0.0
        %1950 = vmatpush1.msra.mxu0 0.0
        %1951 = vmatprep.subr.mxu0 0.0
        %1952 = vmatpush1.msra.mxu0 0.0
        %1953 = vmatprep.subr.mxu0 0.0
        %1954 = vmatpush1.msra.mxu0 0.0
        %1955 = vmatprep.subr.mxu0 0.0
        %1956 = vmatpush1.msra.mxu0 0.0
        %1957 = vmatprep.subr.mxu0 0.0
        %1958 = vmatpush1.msra.mxu0 0.0
        %1959 = vmatprep.subr.mxu0 0.0
        %1960 = vmatpush1.msra.mxu0 0.0
        %1961 = vmatprep.subr.mxu0 0.0
        %1962 = vmatpush1.msra.mxu0 0.0
        %1963 = vmatprep.subr.mxu0 0.0
        %1964 = vmatpush1.msra.mxu0 0.0
        %1965 = vmatprep.subr.mxu0 0.0
        %1966 = vmatpush1.msra.mxu0 0.0
        %1967 = vmatprep.subr.mxu0 0.0
        %1968 = vmatpush1.msra.mxu0 0.0
        %1969 = vmatprep.subr.mxu0 0.0
        %1970 = vmatpush1.msra.mxu0 0.0
        %1971 = vmatprep.subr.mxu0 0.0
        %1972 = vmatpush1.msra.mxu0 0.0
        %1973 = vmatprep.subr.mxu0 0.0
        %1974 = vmatpush1.msra.mxu0 0.0
        %1975 = vmatprep.subr.mxu0 0.0
        %1976 = vmatpush1.msra.mxu0 0.0
        %1977 = vmatprep.mubr.f32.mxu0 0.0
        %1978 = vmatmul.mubr.f32.gmra.mrb[0].mxu0 %v1889
        %v1979 = vpop.f32.mrb[0].mxu0
        %v1980 = vadd.f32 %v1911, %v1979
        %v1981 = vpop.f32.mrb[0].mxu0
        %1982 = vdwg.mxu0
        %v1983 = vmax.f32 %v1980, 0.0
        %v1984 = vld [vmem:[%s8] sm:$0xff]
        %v1985 = vld [vmem:[%s8 + $0x8] sm:$0xff]
        %v1986 = vld [vmem:[%s8 + $0x10] sm:$0xff]
        %v1987 = vld [vmem:[%s8 + $0x18] sm:$0xff]
        %v1988 = vld [vmem:[%s8 + $0x20] sm:$0xff]
        %v1989 = vld [vmem:[%s8 + $0x28] sm:$0xff]
        %v1990 = vld [vmem:[%s8 + $0x30] sm:$0xff]
        %v1991 = vld [vmem:[%s8 + $0x38] sm:$0xff]
        %v1992 = vld [vmem:[%s8 + $0x40] sm:$0xff]
        %v1993 = vld [vmem:[%s8 + $0x48] sm:$0xff]
        %v1994 = vld [vmem:[%s8 + $0x50] sm:$0xff]
        %v1995 = vld [vmem:[%s8 + $0x58] sm:$0xff]
        %v1996 = vld [vmem:[%s8 + $0x60] sm:$0xff]
        %v1997 = vld [vmem:[%s8 + $0x68] sm:$0xff]
        %v1998 = vld [vmem:[%s8 + $0x70] sm:$0xff]
        %v1999 = vld [vmem:[%s8 + $0x78] sm:$0xff]
        %v2000 = vld [vmem:[%s9] sm:$0x1]
        %v2002 = vlaneseq
        %v2003 = vshrl.u32 %v2002, 7
        %v2004 = vsub.s32 0, %v2003
        %v2005 = vrot.slane %v2000, %v2004
        %2007 = vmatprep.subr.mxu0 0.0
        %2008 = vmatpush1.msra.mxu0 %v1984
        %2009 = vmatprep.subr.mxu0 0.0
        %2010 = vmatpush1.msra.mxu0 %v1985
        %2011 = vmatprep.subr.mxu0 0.0
        %2012 = vmatpush1.msra.mxu0 %v1986
        %2013 = vmatprep.subr.mxu0 0.0
        %2014 = vmatpush1.msra.mxu0 %v1987
        %2015 = vmatprep.subr.mxu0 0.0
        %2016 = vmatpush1.msra.mxu0 %v1988
        %2017 = vmatprep.subr.mxu0 0.0
        %2018 = vmatpush1.msra.mxu0 %v1989
        %2019 = vmatprep.subr.mxu0 0.0
        %2020 = vmatpush1.msra.mxu0 %v1990
        %2021 = vmatprep.subr.mxu0 0.0
        %2022 = vmatpush1.msra.mxu0 %v1991
        %2023 = vmatprep.subr.mxu0 0.0
        %2024 = vmatpush1.msra.mxu0 %v1992
        %2025 = vmatprep.subr.mxu0 0.0
        %2026 = vmatpush1.msra.mxu0 %v1993
        %2027 = vmatprep.subr.mxu0 0.0
        %2028 = vmatpush1.msra.mxu0 %v1994
        %2029 = vmatprep.subr.mxu0 0.0
        %2030 = vmatpush1.msra.mxu0 %v1995
        %2031 = vmatprep.subr.mxu0 0.0
        %2032 = vmatpush1.msra.mxu0 %v1996
        %2033 = vmatprep.subr.mxu0 0.0
        %2034 = vmatpush1.msra.mxu0 %v1997
        %2035 = vmatprep.subr.mxu0 0.0
        %2036 = vmatpush1.msra.mxu0 %v1998
        %2037 = vmatprep.subr.mxu0 0.0
        %2038 = vmatpush1.msra.mxu0 %v1999
        %2039 = vmatprep.subr.mxu0 0.0
        %2040 = vmatpush1.msra.mxu0 0.0
        %2041 = vmatprep.subr.mxu0 0.0
        %2042 = vmatpush1.msra.mxu0 0.0
        %2043 = vmatprep.subr.mxu0 0.0
        %2044 = vmatpush1.msra.mxu0 0.0
        %2045 = vmatprep.subr.mxu0 0.0
        %2046 = vmatpush1.msra.mxu0 0.0
        %2047 = vmatprep.subr.mxu0 0.0
        %2048 = vmatpush1.msra.mxu0 0.0
        %2049 = vmatprep.subr.mxu0 0.0
        %2050 = vmatpush1.msra.mxu0 0.0
        %2051 = vmatprep.subr.mxu0 0.0
        %2052 = vmatpush1.msra.mxu0 0.0
        %2053 = vmatprep.subr.mxu0 0.0
        %2054 = vmatpush1.msra.mxu0 0.0
        %2055 = vmatprep.subr.mxu0 0.0
        %2056 = vmatpush1.msra.mxu0 0.0
        %2057 = vmatprep.subr.mxu0 0.0
        %2058 = vmatpush1.msra.mxu0 0.0
        %2059 = vmatprep.subr.mxu0 0.0
        %2060 = vmatpush1.msra.mxu0 0.0
        %2061 = vmatprep.subr.mxu0 0.0
        %2062 = vmatpush1.msra.mxu0 0.0
        %2063 = vmatprep.subr.mxu0 0.0
        %2064 = vmatpush1.msra.mxu0 0.0
        %2065 = vmatprep.subr.mxu0 0.0
        %2066 = vmatpush1.msra.mxu0 0.0
        %2067 = vmatprep.subr.mxu0 0.0
        %2068 = vmatpush1.msra.mxu0 0.0
        %2069 = vmatprep.subr.mxu0 0.0
        %2070 = vmatpush1.msra.mxu0 0.0
        %2071 = vmatprep.mubr.f32.mxu0 0.0
        %2072 = vmatmul.mubr.f32.gmra.mrb[0].mxu0 %v1983
        %v2073 = vpop.f32.mrb[0].mxu0
        %v2074 = vadd.f32 %v2005, %v2073
        %v2075 = vpop.f32.mrb[0].mxu0
        %2076 = vdwg.mxu0
        %v2077 = vadd.f32 %v1889, %v2074
        %v2078 = vld [vmem:[%s10] sm:$0x1]
        %v2079 = vld [vmem:[%s11] sm:$0x1]
        %2080 = vadd.xlane.f32.xlu0 %v2077
        %v2081 = vpop.xlane.xlu0 %2080
        %v2082 = vmul.f32 %v2081, 0.03125
        %v2083 = vsub.f32 %v2077, %v2082
        %v2084 = vmul.f32 %v2083, %v414
        %v2085 = vmul.f32 %v2084, %v2084
        %2086 = vadd.xlane.f32.xlu0 %v2085
        %v2087 = vpop.xlane.xlu0 %2086
        %v2088 = vmul.f32 %v2087, 0.03125
        %v2089 = vadd.f32 %v2088, 1e-05
        %v2090 = vrsqrt.pop %v2089
        %v2091 = vmul.f32 %v2084, %v2090
        %v2093 = vlaneseq
        %v2094 = vshrl.u32 %v2093, 7
        %v2095 = vsub.s32 0, %v2094
        %v2096 = vrot.slane %v2078, %v2095
        %v2098 = vmul.f32 %v2091, %v2096
        %v2100 = vlaneseq
        %v2101 = vshrl.u32 %v2100, 7
        %v2102 = vsub.s32 0, %v2101
        %v2103 = vrot.slane %v2079, %v2102
        %v2105 = vadd.f32 %v2098, %v2103
        %2106 = vst [vmem:[%s404] sm:$0xff] %v2105
        %s2107 = sand.u32 %s291, 1
        %s2108 = scalar_lea.sflag [#allocation3], %s2107
        %s2109 = sand.u32 %s291, 1
        %s2110 = smul.addr %s2109, 8
        %s2111 = scalar_lea.vmem [#allocation2], %s2110
        // Predicated region
        $region69: #{_lambda_.3} parent=67 // pred_check
          %p2112 = pneg %p301
        $region70: #{_lambda_.3} parent=67 // pred_check_branch
          %2114 = sbr.rel (%p2112) target = $region72
        $region71: #{_lambda_.3} parent=67 // pred_region
          %s2116 = ssub.s32 128, 128
          %2117 = vsyncadd %s2108, %s2116
          %s2118 = smul.addr %s26, 128
          %s2119 = scalar_lea.hbm %s12, %s2118
          %s2121 = sshll.u32 %s2111, 4
          %s2122 = int_to_ptr.vmem [resolvable:$true] %s2121
          %2124 = dma.vmem_to_hbm [thread:$0]  %s2122, 128, %s2119, %s2108
        $region72: #{_lambda_.3} parent=67 // pred_fallthru
          _
      $region68: #{_lambda_.3} parent=5 // pred_fallthru
        _
      %p2125 = scmp.le.s32.totalorder 2, %s21
      // Predicated region
      $region73: #{_lambda_.3} parent=5 // pred_check
        %p2126 = pneg %p2125
      $region74: #{_lambda_.3} parent=5 // pred_check_branch
        %2128 = sbr.rel (%p2126) target = $region76
      $region75: #{_lambda_.3} parent=5 // pred_region
        %s2129 = ssub.s32 %s21, 2
        // Predicated region
        $region77: #{_lambda_.3} parent=75 // pred_check
          %p2130 = pneg %p307
        $region78: #{_lambda_.3} parent=75 // pred_check_branch
          %2132 = sbr.rel (%p2130) target = $region80
        $region79: #{_lambda_.3} parent=75 // pred_region
          %s2133 = sand.u32 %s292, 1
          %s2134 = scalar_lea.sflag [#allocation3], %s2133
          %s2135 = sand.u32 %s292, 1
          %s2136 = smul.addr %s2135, 8
          %s2137 = scalar_lea.vmem [#allocation2], %s2136
          %2138 = dma.done %s2134, 128
        $region80: #{_lambda_.3} parent=75 // pred_fallthru
          _
      $region76: #{_lambda_.3} parent=5 // pred_fallthru
        _
    $region6: #{_lambda_.3} parent=1 // loop_footer
      %s25 = sadd.s32 1, %s21
    $region7: #{_lambda_.3} parent=1 // loop_footer_branch
      %20 = sbr.rel target = $region3
    $region8: #{_lambda_.3} parent=1 // loop_exit
      _
    %2139 = vsyncpa [#allocation3], 1
    %s2140 = scalar_lea.sflag [#allocation3], 1
    %2141 = vsyncpa %s2140, 1

// kernel: _lambda_.2
$region0: #{_lambda_.2}
  #allocation0 [shape = 'u32[]', space=smem, size = 0x4, offset = 0x4, fixed_abs, tag = 'smem constant byte address 0x4 - core index']
  #allocation1 [shape = 'u32[144,128]{1,0:T(1,128)}', space=vmem, size = 0x12000, scoped, tag = 'internal scratch']
  %s0 = inlined_call_operand.vmem [shape: f32[2,8,128], index: 0, kind: input, shape index: {}]
  %s1 = inlined_call_operand.hbm [shape: f32[128,1536], index: 1, kind: input, shape index: {}]
  %s2 = inlined_call_operand.hbm [shape: f32[512,128], index: 2, kind: input, shape index: {}]
  %s3 = inlined_call_operand.vmem [shape: f32[1,128], index: 3, kind: input, shape index: {}]
  %s4 = inlined_call_operand.vmem [shape: f32[1,128], index: 4, kind: input, shape index: {}]
  %s5 = inlined_call_operand.vmem [shape: f32[1,128], index: 5, kind: input, shape index: {}]
  %s6 = inlined_call_operand.vmem [shape: f32[128,128], index: 6, kind: input, shape index: {}]
  %s7 = inlined_call_operand.vmem [shape: f32[1,128], index: 7, kind: input, shape index: {}]
  %s8 = inlined_call_operand.vmem [shape: f32[128,128], index: 8, kind: input, shape index: {}]
  %s9 = inlined_call_operand.vmem [shape: f32[1,128], index: 9, kind: input, shape index: {}]
  %s10 = inlined_call_operand.vmem [shape: f32[1,128], index: 10, kind: input, shape index: {}]
  %s11 = inlined_call_operand.vmem [shape: f32[1,128], index: 11, kind: input, shape index: {}]
  %s12 = inlined_call_operand.vmem [shape: f32[2,8,128], index: 12, kind: output, shape index: {}]
  %s13 = sld [smem:[#allocation0]]
  $region89: #{_lambda_.2} parent=0
    _
  %s15 = ssub.s32 1, %s13
  %s16 = scalar_select 0, %s15, %s13
  $region1: #{_lambda_.2} parent=0
    #allocation2 [shape = 'u8[786432]{0}', space=vmem, size = 0xc0000, scoped, tag = 'input window, operand 1, single buffered']
    #allocation3 [shape = 's32[2]{0}', space=sflag, size = 0x8, scoped, tag = 'scoped memory for _lambda_.2']
    #allocation4 [shape = 'u8[262144]{0}', space=vmem, size = 0x40000, scoped, tag = 'input window, operand 2, single buffered']
    #allocation5 [shape = 's32[1]{0}', space=sflag, size = 0x4, scoped, tag = 'scoped memory for _lambda_.2']
    %17 = vsyncpa [#allocation3], 0
    %18 = vsyncpa [#allocation5], 0
    loop: start=0, step=1, limit=4
    $region2: #{_lambda_.2} parent=1 // loop_pre_header
      _
    $region3: #{_lambda_.2} parent=1 // loop_header
      %s20 = sphi 0, %s24
      %p21 = scmp.ge.s32.totalorder %s20, 4
      %s30 = sphi 0, %s32
      %s33 = sphi 0, %s30
      %s34 = sphi 0, %s33
      %s50 = sphi 0, %s34
      %s54 = sphi 0, %s54
      %s56 = sphi 0, %s54
      %s57 = sphi 0, %s56
      %s71 = sphi 0, %s57
      %s75 = sphi 0, %s75
      %s77 = sphi 0, %s75
      %s78 = sphi 0, %s77
      %s92 = sphi 0, %s78
      %s96 = sphi 0, %s96
      %s98 = sphi 0, %s96
      %s99 = sphi 0, %s98
      %s113 = sphi 0, %s99
      %s117 = sphi 0, %s117
      %s119 = sphi 0, %s117
      %s120 = sphi 0, %s119
      %s134 = sphi 0, %s120
      %s138 = sphi 0, %s138
      %s140 = sphi 0, %s138
      %s141 = sphi 0, %s140
      %s155 = sphi 0, %s141
      %s159 = sphi 0, %s159
      %s161 = sphi 0, %s159
      %s162 = sphi 0, %s161
      %s176 = sphi 0, %s162
      %s180 = sphi 0, %s180
      %s182 = sphi 0, %s180
      %s183 = sphi 0, %s182
      %s197 = sphi 0, %s183
      %s201 = sphi 0, %s201
      %s203 = sphi 0, %s201
      %s204 = sphi 0, %s203
      %s218 = sphi 0, %s204
      %s222 = sphi 0, %s222
      %s224 = sphi 0, %s222
      %s225 = sphi 0, %s224
      %s239 = sphi 0, %s225
      %s243 = sphi 0, %s243
      %s245 = sphi 0, %s243
      %s246 = sphi 0, %s245
      %s260 = sphi 0, %s246
      %s264 = sphi 0, %s264
      %s266 = sphi 0, %s264
      %s267 = sphi 0, %s266
      %s281 = sphi 0, %s267
      %s287 = sphi 0, %s289
      %s290 = sphi 0, %s287
      %s291 = sphi 0, %s290
      %s307 = sphi 0, %s291
    $region4: #{_lambda_.2} parent=1 // loop_header_branch
      %23 = sbr.rel (%p21) target = $region8
    $region5: #{_lambda_.2} parent=1 // loop_body
      %s25 = ssub.s32 %s20, 1
      %s26 = ssub.s32 %s20, 2
      %s27 = sadd.s32 %s20, 1
      %s28 = ssub.s32 %s20, %s27
      %p29 = scmp.eq.s32.totalorder %s28, 0
      %s31 = sadd.s32 %s30, 1
      %s32 = scalar_select %p29, %s30, %s31
      %p35 = pneg %p29
      %p36 = scmp.eq.s32.totalorder %s20, 1
      %p37 = por %p35, %p36
      %p38 = scmp.ne.s32.totalorder %s30, %s33
      %p39 = scmp.eq.s32.totalorder %s20, 0
      %p40 = por %p38, %p39
      %p41 = scmp.ne.s32.totalorder %s30, %s33
      %p42 = scmp.eq.s32.totalorder %s25, 1
      %p43 = por %p41, %p42
      %p44 = scmp.ne.s32.totalorder %s33, %s34
      %p45 = scmp.eq.s32.totalorder %s25, 0
      %p46 = por %p44, %p45
      %p47 = scmp.ne.s32.totalorder %s33, %s34
      %p48 = scmp.eq.s32.totalorder %s26, 1
      %p49 = por %p47, %p48
      %p51 = scmp.ne.s32.totalorder %s34, %s50
      %p52 = scmp.eq.s32.totalorder %s26, 0
      %p53 = por %p51, %p52
      %s55 = sadd.s32 %s54, 1
      %p58 = scmp.eq.s32.totalorder %s20, 1
      %p59 = scmp.ne.s32.totalorder %s54, %s56
      %p60 = scmp.eq.s32.totalorder %s20, 0
      %p61 = por %p59, %p60
      %p62 = scmp.ne.s32.totalorder %s54, %s56
      %p63 = scmp.eq.s32.totalorder %s25, 1
      %p64 = por %p62, %p63
      %p65 = scmp.ne.s32.totalorder %s56, %s57
      %p66 = scmp.eq.s32.totalorder %s25, 0
      %p67 = por %p65, %p66
      %p68 = scmp.ne.s32.totalorder %s56, %s57
      %p69 = scmp.eq.s32.totalorder %s26, 1
      %p70 = por %p68, %p69
      %p72 = scmp.ne.s32.totalorder %s57, %s71
      %p73 = scmp.eq.s32.totalorder %s26, 0
      %p74 = por %p72, %p73
      %s76 = sadd.s32 %s75, 1
      %p79 = scmp.eq.s32.totalorder %s20, 1
      %p80 = scmp.ne.s32.totalorder %s75, %s77
      %p81 = scmp.eq.s32.totalorder %s20, 0
      %p82 = por %p80, %p81
      %p83 = scmp.ne.s32.totalorder %s75, %s77
      %p84 = scmp.eq.s32.totalorder %s25, 1
      %p85 = por %p83, %p84
      %p86 = scmp.ne.s32.totalorder %s77, %s78
      %p87 = scmp.eq.s32.totalorder %s25, 0
      %p88 = por %p86, %p87
      %p89 = scmp.ne.s32.totalorder %s77, %s78
      %p90 = scmp.eq.s32.totalorder %s26, 1
      %p91 = por %p89, %p90
      %p93 = scmp.ne.s32.totalorder %s78, %s92
      %p94 = scmp.eq.s32.totalorder %s26, 0
      %p95 = por %p93, %p94
      %s97 = sadd.s32 %s96, 1
      %p100 = scmp.eq.s32.totalorder %s20, 1
      %p101 = scmp.ne.s32.totalorder %s96, %s98
      %p102 = scmp.eq.s32.totalorder %s20, 0
      %p103 = por %p101, %p102
      %p104 = scmp.ne.s32.totalorder %s96, %s98
      %p105 = scmp.eq.s32.totalorder %s25, 1
      %p106 = por %p104, %p105
      %p107 = scmp.ne.s32.totalorder %s98, %s99
      %p108 = scmp.eq.s32.totalorder %s25, 0
      %p109 = por %p107, %p108
      %p110 = scmp.ne.s32.totalorder %s98, %s99
      %p111 = scmp.eq.s32.totalorder %s26, 1
      %p112 = por %p110, %p111
      %p114 = scmp.ne.s32.totalorder %s99, %s113
      %p115 = scmp.eq.s32.totalorder %s26, 0
      %p116 = por %p114, %p115
      %s118 = sadd.s32 %s117, 1
      %p121 = scmp.eq.s32.totalorder %s20, 1
      %p122 = scmp.ne.s32.totalorder %s117, %s119
      %p123 = scmp.eq.s32.totalorder %s20, 0
      %p124 = por %p122, %p123
      %p125 = scmp.ne.s32.totalorder %s117, %s119
      %p126 = scmp.eq.s32.totalorder %s25, 1
      %p127 = por %p125, %p126
      %p128 = scmp.ne.s32.totalorder %s119, %s120
      %p129 = scmp.eq.s32.totalorder %s25, 0
      %p130 = por %p128, %p129
      %p131 = scmp.ne.s32.totalorder %s119, %s120
      %p132 = scmp.eq.s32.totalorder %s26, 1
      %p133 = por %p131, %p132
      %p135 = scmp.ne.s32.totalorder %s120, %s134
      %p136 = scmp.eq.s32.totalorder %s26, 0
      %p137 = por %p135, %p136
      %s139 = sadd.s32 %s138, 1
      %p142 = scmp.eq.s32.totalorder %s20, 1
      %p143 = scmp.ne.s32.totalorder %s138, %s140
      %p144 = scmp.eq.s32.totalorder %s20, 0
      %p145 = por %p143, %p144
      %p146 = scmp.ne.s32.totalorder %s138, %s140
      %p147 = scmp.eq.s32.totalorder %s25, 1
      %p148 = por %p146, %p147
      %p149 = scmp.ne.s32.totalorder %s140, %s141
      %p150 = scmp.eq.s32.totalorder %s25, 0
      %p151 = por %p149, %p150
      %p152 = scmp.ne.s32.totalorder %s140, %s141
      %p153 = scmp.eq.s32.totalorder %s26, 1
      %p154 = por %p152, %p153
      %p156 = scmp.ne.s32.totalorder %s141, %s155
      %p157 = scmp.eq.s32.totalorder %s26, 0
      %p158 = por %p156, %p157
      %s160 = sadd.s32 %s159, 1
      %p163 = scmp.eq.s32.totalorder %s20, 1
      %p164 = scmp.ne.s32.totalorder %s159, %s161
      %p165 = scmp.eq.s32.totalorder %s20, 0
      %p166 = por %p164, %p165
      %p167 = scmp.ne.s32.totalorder %s159, %s161
      %p168 = scmp.eq.s32.totalorder %s25, 1
      %p169 = por %p167, %p168
      %p170 = scmp.ne.s32.totalorder %s161, %s162
      %p171 = scmp.eq.s32.totalorder %s25, 0
      %p172 = por %p170, %p171
      %p173 = scmp.ne.s32.totalorder %s161, %s162
      %p174 = scmp.eq.s32.totalorder %s26, 1
      %p175 = por %p173, %p174
      %p177 = scmp.ne.s32.totalorder %s162, %s176
      %p178 = scmp.eq.s32.totalorder %s26, 0
      %p179 = por %p177, %p178
      %s181 = sadd.s32 %s180, 1
      %p184 = scmp.eq.s32.totalorder %s20, 1
      %p185 = scmp.ne.s32.totalorder %s180, %s182
      %p186 = scmp.eq.s32.totalorder %s20, 0
      %p187 = por %p185, %p186
      %p188 = scmp.ne.s32.totalorder %s180, %s182
      %p189 = scmp.eq.s32.totalorder %s25, 1
      %p190 = por %p188, %p189
      %p191 = scmp.ne.s32.totalorder %s182, %s183
      %p192 = scmp.eq.s32.totalorder %s25, 0
      %p193 = por %p191, %p192
      %p194 = scmp.ne.s32.totalorder %s182, %s183
      %p195 = scmp.eq.s32.totalorder %s26, 1
      %p196 = por %p194, %p195
      %p198 = scmp.ne.s32.totalorder %s183, %s197
      %p199 = scmp.eq.s32.totalorder %s26, 0
      %p200 = por %p198, %p199
      %s202 = sadd.s32 %s201, 1
      %p205 = scmp.eq.s32.totalorder %s20, 1
      %p206 = scmp.ne.s32.totalorder %s201, %s203
      %p207 = scmp.eq.s32.totalorder %s20, 0
      %p208 = por %p206, %p207
      %p209 = scmp.ne.s32.totalorder %s201, %s203
      %p210 = scmp.eq.s32.totalorder %s25, 1
      %p211 = por %p209, %p210
      %p212 = scmp.ne.s32.totalorder %s203, %s204
      %p213 = scmp.eq.s32.totalorder %s25, 0
      %p214 = por %p212, %p213
      %p215 = scmp.ne.s32.totalorder %s203, %s204
      %p216 = scmp.eq.s32.totalorder %s26, 1
      %p217 = por %p215, %p216
      %p219 = scmp.ne.s32.totalorder %s204, %s218
      %p220 = scmp.eq.s32.totalorder %s26, 0
      %p221 = por %p219, %p220
      %s223 = sadd.s32 %s222, 1
      %p226 = scmp.eq.s32.totalorder %s20, 1
      %p227 = scmp.ne.s32.totalorder %s222, %s224
      %p228 = scmp.eq.s32.totalorder %s20, 0
      %p229 = por %p227, %p228
      %p230 = scmp.ne.s32.totalorder %s222, %s224
      %p231 = scmp.eq.s32.totalorder %s25, 1
      %p232 = por %p230, %p231
      %p233 = scmp.ne.s32.totalorder %s224, %s225
      %p234 = scmp.eq.s32.totalorder %s25, 0
      %p235 = por %p233, %p234
      %p236 = scmp.ne.s32.totalorder %s224, %s225
      %p237 = scmp.eq.s32.totalorder %s26, 1
      %p238 = por %p236, %p237
      %p240 = scmp.ne.s32.totalorder %s225, %s239
      %p241 = scmp.eq.s32.totalorder %s26, 0
      %p242 = por %p240, %p241
      %s244 = sadd.s32 %s243, 1
      %p247 = scmp.eq.s32.totalorder %s20, 1
      %p248 = scmp.ne.s32.totalorder %s243, %s245
      %p249 = scmp.eq.s32.totalorder %s20, 0
      %p250 = por %p248, %p249
      %p251 = scmp.ne.s32.totalorder %s243, %s245
      %p252 = scmp.eq.s32.totalorder %s25, 1
      %p253 = por %p251, %p252
      %p254 = scmp.ne.s32.totalorder %s245, %s246
      %p255 = scmp.eq.s32.totalorder %s25, 0
      %p256 = por %p254, %p255
      %p257 = scmp.ne.s32.totalorder %s245, %s246
      %p258 = scmp.eq.s32.totalorder %s26, 1
      %p259 = por %p257, %p258
      %p261 = scmp.ne.s32.totalorder %s246, %s260
      %p262 = scmp.eq.s32.totalorder %s26, 0
      %p263 = por %p261, %p262
      %s265 = sadd.s32 %s264, 1
      %p268 = scmp.eq.s32.totalorder %s20, 1
      %p269 = scmp.ne.s32.totalorder %s264, %s266
      %p270 = scmp.eq.s32.totalorder %s20, 0
      %p271 = por %p269, %p270
      %p272 = scmp.ne.s32.totalorder %s264, %s266
      %p273 = scmp.eq.s32.totalorder %s25, 1
      %p274 = por %p272, %p273
      %p275 = scmp.ne.s32.totalorder %s266, %s267
      %p276 = scmp.eq.s32.totalorder %s25, 0
      %p277 = por %p275, %p276
      %p278 = scmp.ne.s32.totalorder %s266, %s267
      %p279 = scmp.eq.s32.totalorder %s26, 1
      %p280 = por %p278, %p279
      %p282 = scmp.ne.s32.totalorder %s267, %s281
      %p283 = scmp.eq.s32.totalorder %s26, 0
      %p284 = por %p282, %p283
      %s285 = ssub.s32 %s20, %s27
      %p286 = scmp.eq.s32.totalorder %s285, 0
      %s288 = sadd.s32 %s287, 1
      %s289 = scalar_select %p286, %s287, %s288
      %p292 = pneg %p286
      %p293 = scmp.eq.s32.totalorder %s20, 1
      %p294 = por %p292, %p293
      %p295 = scmp.ne.s32.totalorder %s287, %s290
      %p296 = scmp.eq.s32.totalorder %s20, 0
      %p297 = por %p295, %p296
      %p298 = scmp.ne.s32.totalorder %s287, %s290
      %p299 = scmp.eq.s32.totalorder %s25, 1
      %p300 = por %p298, %p299
      %p301 = scmp.ne.s32.totalorder %s290, %s291
      %p302 = scmp.eq.s32.totalorder %s25, 0
      %p303 = por %p301, %p302
      %p304 = scmp.ne.s32.totalorder %s290, %s291
      %p305 = scmp.eq.s32.totalorder %s26, 1
      %p306 = por %p304, %p305
      %p308 = scmp.ne.s32.totalorder %s291, %s307
      %p309 = scmp.eq.s32.totalorder %s26, 0
      %p310 = por %p308, %p309
      %p311 = scmp.le.s32.totalorder 1, %s20
      %p312 = scmp.lt.s32.totalorder %s20, 3
      %p313 = pnand %p311, %p312
      %p314 = pneg %p313
      // Predicated region
      $region9: #{_lambda_.2} parent=5 // pred_check
        _
      $region10: #{_lambda_.2} parent=5 // pred_check_branch
        %316 = sbr.rel (%p313) target = $region12
      $region11: #{_lambda_.2} parent=5 // pred_region
        %s317 = ssub.s32 %s20, 1
        // Predicated region
        $region13: #{_lambda_.2} parent=11 // pred_check
          %p318 = pneg %p67
        $region14: #{_lambda_.2} parent=11 // pred_check_branch
          %320 = sbr.rel (%p318) target = $region16
        $region15: #{_lambda_.2} parent=11 // pred_region
          %s322 = ssub.s32 24576, 24576
          %323 = vsyncadd [#allocation3], %s322
          %s324 = sshll.u32 [#allocation2], 4
          %s325 = int_to_ptr.vmem [resolvable:$true] %s324
          %330 = dma.hbm_to_vmem [thread:$0]  %s1, 24576, %s325, [#allocation3], 1536, 1536, 96
        $region16: #{_lambda_.2} parent=11 // pred_fallthru
          _
        // Predicated region
        $region17: #{_lambda_.2} parent=11 // pred_check
          %p331 = pneg %p88
        $region18: #{_lambda_.2} parent=11 // pred_check_branch
          %333 = sbr.rel (%p331) target = $region20
        $region19: #{_lambda_.2} parent=11 // pred_region
          %s335 = ssub.s32 8192, 8192
          %336 = vsyncadd [#allocation5], %s335
          %s337 = sshll.u32 [#allocation4], 4
          %s338 = int_to_ptr.vmem [resolvable:$true] %s337
          %343 = dma.hbm_to_vmem [thread:$0]  %s2, 8192, %s338, [#allocation5], 128, 128, 8
        $region20: #{_lambda_.2} parent=11 // pred_fallthru
          _
        // Predicated region
        $region21: #{_lambda_.2} parent=11 // pred_check
          %p344 = pneg %p109
        $region22: #{_lambda_.2} parent=11 // pred_check_branch
          %346 = sbr.rel (%p344) target = $region24
        $region23: #{_lambda_.2} parent=11 // pred_region
          _
        $region24: #{_lambda_.2} parent=11 // pred_fallthru
          _
        // Predicated region
        $region25: #{_lambda_.2} parent=11 // pred_check
          %p347 = pneg %p130
        $region26: #{_lambda_.2} parent=11 // pred_check_branch
          %349 = sbr.rel (%p347) target = $region28
        $region27: #{_lambda_.2} parent=11 // pred_region
          _
        $region28: #{_lambda_.2} parent=11 // pred_fallthru
          _
        // Predicated region
        $region29: #{_lambda_.2} parent=11 // pred_check
          %p350 = pneg %p151
        $region30: #{_lambda_.2} parent=11 // pred_check_branch
          %352 = sbr.rel (%p350) target = $region32
        $region31: #{_lambda_.2} parent=11 // pred_region
          _
        $region32: #{_lambda_.2} parent=11 // pred_fallthru
          _
        // Predicated region
        $region33: #{_lambda_.2} parent=11 // pred_check
          %p353 = pneg %p172
        $region34: #{_lambda_.2} parent=11 // pred_check_branch
          %355 = sbr.rel (%p353) target = $region36
        $region35: #{_lambda_.2} parent=11 // pred_region
          _
        $region36: #{_lambda_.2} parent=11 // pred_fallthru
          _
        // Predicated region
        $region37: #{_lambda_.2} parent=11 // pred_check
          %p356 = pneg %p193
        $region38: #{_lambda_.2} parent=11 // pred_check_branch
          %358 = sbr.rel (%p356) target = $region40
        $region39: #{_lambda_.2} parent=11 // pred_region
          _
        $region40: #{_lambda_.2} parent=11 // pred_fallthru
          _
        // Predicated region
        $region41: #{_lambda_.2} parent=11 // pred_check
          %p359 = pneg %p214
        $region42: #{_lambda_.2} parent=11 // pred_check_branch
          %361 = sbr.rel (%p359) target = $region44
        $region43: #{_lambda_.2} parent=11 // pred_region
          _
        $region44: #{_lambda_.2} parent=11 // pred_fallthru
          _
        // Predicated region
        $region45: #{_lambda_.2} parent=11 // pred_check
          %p362 = pneg %p235
        $region46: #{_lambda_.2} parent=11 // pred_check_branch
          %364 = sbr.rel (%p362) target = $region48
        $region47: #{_lambda_.2} parent=11 // pred_region
          _
        $region48: #{_lambda_.2} parent=11 // pred_fallthru
          _
        // Predicated region
        $region49: #{_lambda_.2} parent=11 // pred_check
          %p365 = pneg %p256
        $region50: #{_lambda_.2} parent=11 // pred_check_branch
          %367 = sbr.rel (%p365) target = $region52
        $region51: #{_lambda_.2} parent=11 // pred_region
          _
        $region52: #{_lambda_.2} parent=11 // pred_fallthru
          _
        // Predicated region
        $region53: #{_lambda_.2} parent=11 // pred_check
          %p368 = pneg %p277
        $region54: #{_lambda_.2} parent=11 // pred_check_branch
          %370 = sbr.rel (%p368) target = $region56
        $region55: #{_lambda_.2} parent=11 // pred_region
          _
        $region56: #{_lambda_.2} parent=11 // pred_fallthru
          _
      $region12: #{_lambda_.2} parent=5 // pred_fallthru
        _
      %p371 = scmp.lt.s32.totalorder %s20, 2
      // Predicated region
      $region57: #{_lambda_.2} parent=5 // pred_check
        %p372 = pneg %p371
      $region58: #{_lambda_.2} parent=5 // pred_check_branch
        %374 = sbr.rel (%p372) target = $region60
      $region59: #{_lambda_.2} parent=5 // pred_region
        // Predicated region
        $region61: #{_lambda_.2} parent=59 // pred_check
          %p375 = pneg %p40
        $region62: #{_lambda_.2} parent=59 // pred_check_branch
          %377 = sbr.rel (%p375) target = $region64
        $region63: #{_lambda_.2} parent=59 // pred_region
          %p378 = scmp.lt.s32.totalorder %s20, 1
          %s379 = scalar_select %p378, %s20, 1
          %s380 = smul.addr %s379, 8
          %s381 = scalar_lea.vmem %s0, %s380
        $region64: #{_lambda_.2} parent=59 // pred_fallthru
          _
      $region60: #{_lambda_.2} parent=5 // pred_fallthru
        _
      %p382 = scmp.le.s32.totalorder 1, %s20
      %p383 = scmp.lt.s32.totalorder %s20, 3
      %p384 = pnand %p382, %p383
      %p385 = pneg %p384
      // Predicated region
      $region65: #{_lambda_.2} parent=5 // pred_check
        _
      $region66: #{_lambda_.2} parent=5 // pred_check_branch
        %387 = sbr.rel (%p384) target = $region68
      $region67: #{_lambda_.2} parent=5 // pred_region
        %s388 = ssub.s32 %s20, 1
        // Predicated region
        $region69: #{_lambda_.2} parent=67 // pred_check
          %p389 = pneg %p67
        $region70: #{_lambda_.2} parent=67 // pred_check_branch
          %391 = sbr.rel (%p389) target = $region72
        $region71: #{_lambda_.2} parent=67 // pred_region
          %392 = dma.done [#allocation3], 24576
        $region72: #{_lambda_.2} parent=67 // pred_fallthru
          _
        // Predicated region
        $region73: #{_lambda_.2} parent=67 // pred_check
          %p393 = pneg %p88
        $region74: #{_lambda_.2} parent=67 // pred_check_branch
          %395 = sbr.rel (%p393) target = $region76
        $region75: #{_lambda_.2} parent=67 // pred_region
          %396 = dma.done [#allocation5], 8192
        $region76: #{_lambda_.2} parent=67 // pred_fallthru
          _
        %p397 = scmp.lt.s32.totalorder %s25, 1
        %s398 = scalar_select %p397, %s25, 1
        %s399 = smul.addr %s398, 8
        %s400 = scalar_lea.vmem %s0, %s399
        %p401 = pneg %p46
        %p402 = pneg %p43
        %p403 = pneg %p67
        %p404 = pneg %p64
        %p405 = pneg %p88
        %p406 = pneg %p85
        %p407 = pneg %p109
        %p408 = pneg %p106
        %p409 = pneg %p130
        %p410 = pneg %p127
        %p411 = pneg %p151
        %p412 = pneg %p148
        %p413 = pneg %p172
        %p414 = pneg %p169
        %p415 = pneg %p193
        %p416 = pneg %p190
        %p417 = pneg %p214
        %p418 = pneg %p211
        %p419 = pneg %p235
        %p420 = pneg %p232
        %p421 = pneg %p256
        %p422 = pneg %p253
        %p423 = pneg %p277
        %p424 = pneg %p274
        %p425 = pneg %p303
        %p426 = pneg %p300
        %p427 = scmp.lt.s32.totalorder %s25, 1
        %s428 = scalar_select %p427, %s25, 1
        %s429 = smul.addr %s428, 8
        %s430 = scalar_lea.vmem %s12, %s429
        %p431 = scmp.lt.s32.totalorder %s25, 1
        %s432 = scalar_select %p431, %s25, 1
        %s433 = smul.addr %s432, 8
        %s434 = scalar_lea.vmem %s0, %s433
        %p435 = scmp.lt.s32.totalorder %s25, 1
        %s436 = scalar_select %p435, %s25, 1
        %s437 = smul.addr %s436, 8
        %s438 = scalar_lea.vmem %s12, %s437
        %v439 = vld [vmem:[%s434] sm:$0xff]
        %v440 = vlaneseq
        %v441 = vand.u32 %v440, 127
        %vm442 = vcmp.lt.s32.totalorder %v441, 32
        %v443 = vsel %vm442, 1, 0
        %v444 = vcvt.s32.f32 %v443
        %v445 = vld [vmem:[#allocation2] sm:$0xff]
        %v446 = vld [vmem:[#allocation2 + $0x8] sm:$0xff]
        %v447 = vld [vmem:[#allocation2 + $0x10] sm:$0xff]
        %v448 = vld [vmem:[#allocation2 + $0x18] sm:$0xff]
        %v449 = vld [vmem:[#allocation2 + $0x20] sm:$0xff]
        %v450 = vld [vmem:[#allocation2 + $0x28] sm:$0xff]
        %v451 = vld [vmem:[#allocation2 + $0x30] sm:$0xff]
        %v452 = vld [vmem:[#allocation2 + $0x38] sm:$0xff]
        %v453 = vld [vmem:[#allocation2 + $0x40] sm:$0xff]
        %v454 = vld [vmem:[#allocation2 + $0x48] sm:$0xff]
        %v455 = vld [vmem:[#allocation2 + $0x50] sm:$0xff]
        %v456 = vld [vmem:[#allocation2 + $0x58] sm:$0xff]
        %v457 = vld [vmem:[#allocation2 + $0x60] sm:$0xff]
        %v458 = vld [vmem:[#allocation2 + $0x68] sm:$0xff]
        %v459 = vld [vmem:[#allocation2 + $0x70] sm:$0xff]
        %v460 = vld [vmem:[#allocation2 + $0x78] sm:$0xff]
        %v461 = vld [vmem:[#allocation2 + $0x80] sm:$0xff]
        %v462 = vld [vmem:[#allocation2 + $0x88] sm:$0xff]
        %v463 = vld [vmem:[#allocation2 + $0x90] sm:$0xff]
        %v464 = vld [vmem:[#allocation2 + $0x98] sm:$0xff]
        %v465 = vld [vmem:[#allocation2 + $0xa0] sm:$0xff]
        %v466 = vld [vmem:[#allocation2 + $0xa8] sm:$0xff]
        %v467 = vld [vmem:[#allocation2 + $0xb0] sm:$0xff]
        %v468 = vld [vmem:[#allocation2 + $0xb8] sm:$0xff]
        %v469 = vld [vmem:[#allocation2 + $0xc0] sm:$0xff]
        %v470 = vld [vmem:[#allocation2 + $0xc8] sm:$0xff]
        %v471 = vld [vmem:[#allocation2 + $0xd0] sm:$0xff]
        %v472 = vld [vmem:[#allocation2 + $0xd8] sm:$0xff]
        %v473 = vld [vmem:[#allocation2 + $0xe0] sm:$0xff]
        %v474 = vld [vmem:[#allocation2 + $0xe8] sm:$0xff]
        %v475 = vld [vmem:[#allocation2 + $0xf0] sm:$0xff]
        %v476 = vld [vmem:[#allocation2 + $0xf8] sm:$0xff]
        %v477 = vld [vmem:[#allocation2 + $0x100] sm:$0xff]
        %v478 = vld [vmem:[#allocation2 + $0x108] sm:$0xff]
        %v479 = vld [vmem:[#allocation2 + $0x110] sm:$0xff]
        %v480 = vld [vmem:[#allocation2 + $0x118] sm:$0xff]
        %v481 = vld [vmem:[#allocation2 + $0x120] sm:$0xff]
        %v482 = vld [vmem:[#allocation2 + $0x128] sm:$0xff]
        %v483 = vld [vmem:[#allocation2 + $0x130] sm:$0xff]
        %v484 = vld [vmem:[#allocation2 + $0x138] sm:$0xff]
        %v485 = vld [vmem:[#allocation2 + $0x140] sm:$0xff]
        %v486 = vld [vmem:[#allocation2 + $0x148] sm:$0xff]
        %v487 = vld [vmem:[#allocation2 + $0x150] sm:$0xff]
        %v488 = vld [vmem:[#allocation2 + $0x158] sm:$0xff]
        %v489 = vld [vmem:[#allocation2 + $0x160] sm:$0xff]
        %v490 = vld [vmem:[#allocation2 + $0x168] sm:$0xff]
        %v491 = vld [vmem:[#allocation2 + $0x170] sm:$0xff]
        %v492 = vld [vmem:[#allocation2 + $0x178] sm:$0xff]
        %v493 = vld [vmem:[#allocation2 + $0x180] sm:$0xff]
        %v494 = vld [vmem:[#allocation2 + $0x188] sm:$0xff]
        %v495 = vld [vmem:[#allocation2 + $0x190] sm:$0xff]
        %v496 = vld [vmem:[#allocation2 + $0x198] sm:$0xff]
        %v497 = vld [vmem:[#allocation2 + $0x1a0] sm:$0xff]
        %v498 = vld [vmem:[#allocation2 + $0x1a8] sm:$0xff]
        %v499 = vld [vmem:[#allocation2 + $0x1b0] sm:$0xff]
        %v500 = vld [vmem:[#allocation2 + $0x1b8] sm:$0xff]
        %v501 = vld [vmem:[#allocation2 + $0x1c0] sm:$0xff]
        %v502 = vld [vmem:[#allocation2 + $0x1c8] sm:$0xff]
        %v503 = vld [vmem:[#allocation2 + $0x1d0] sm:$0xff]
        %v504 = vld [vmem:[#allocation2 + $0x1d8] sm:$0xff]
        %v505 = vld [vmem:[#allocation2 + $0x1e0] sm:$0xff]
        %v506 = vld [vmem:[#allocation2 + $0x1e8] sm:$0xff]
        %v507 = vld [vmem:[#allocation2 + $0x1f0] sm:$0xff]
        %v508 = vld [vmem:[#allocation2 + $0x1f8] sm:$0xff]
        %v509 = vld [vmem:[#allocation2 + $0x200] sm:$0xff]
        %v510 = vld [vmem:[#allocation2 + $0x208] sm:$0xff]
        %v511 = vld [vmem:[#allocation2 + $0x210] sm:$0xff]
        %v512 = vld [vmem:[#allocation2 + $0x218] sm:$0xff]
        %v513 = vld [vmem:[#allocation2 + $0x220] sm:$0xff]
        %v514 = vld [vmem:[#allocation2 + $0x228] sm:$0xff]
        %v515 = vld [vmem:[#allocation2 + $0x230] sm:$0xff]
        %v516 = vld [vmem:[#allocation2 + $0x238] sm:$0xff]
        %v517 = vld [vmem:[#allocation2 + $0x240] sm:$0xff]
        %v518 = vld [vmem:[#allocation2 + $0x248] sm:$0xff]
        %v519 = vld [vmem:[#allocation2 + $0x250] sm:$0xff]
        %v520 = vld [vmem:[#allocation2 + $0x258] sm:$0xff]
        %v521 = vld [vmem:[#allocation2 + $0x260] sm:$0xff]
        %v522 = vld [vmem:[#allocation2 + $0x268] sm:$0xff]
        %v523 = vld [vmem:[#allocation2 + $0x270] sm:$0xff]
        %v524 = vld [vmem:[#allocation2 + $0x278] sm:$0xff]
        %v525 = vld [vmem:[#allocation2 + $0x280] sm:$0xff]
        %v526 = vld [vmem:[#allocation2 + $0x288] sm:$0xff]
        %v527 = vld [vmem:[#allocation2 + $0x290] sm:$0xff]
        %v528 = vld [vmem:[#allocation2 + $0x298] sm:$0xff]
        %v529 = vld [vmem:[#allocation2 + $0x2a0] sm:$0xff]
        %v530 = vld [vmem:[#allocation2 + $0x2a8] sm:$0xff]
        %v531 = vld [vmem:[#allocation2 + $0x2b0] sm:$0xff]
        %v532 = vld [vmem:[#allocation2 + $0x2b8] sm:$0xff]
        %v533 = vld [vmem:[#allocation2 + $0x2c0] sm:$0xff]
        %v534 = vld [vmem:[#allocation2 + $0x2c8] sm:$0xff]
        %v535 = vld [vmem:[#allocation2 + $0x2d0] sm:$0xff]
        %v536 = vld [vmem:[#allocation2 + $0x2d8] sm:$0xff]
        %v537 = vld [vmem:[#allocation2 + $0x2e0] sm:$0xff]
        %v538 = vld [vmem:[#allocation2 + $0x2e8] sm:$0xff]
        %v539 = vld [vmem:[#allocation2 + $0x2f0] sm:$0xff]
        %v540 = vld [vmem:[#allocation2 + $0x2f8] sm:$0xff]
        %v541 = vld [vmem:[#allocation2 + $0x300] sm:$0xff]
        %v542 = vld [vmem:[#allocation2 + $0x308] sm:$0xff]
        %v543 = vld [vmem:[#allocation2 + $0x310] sm:$0xff]
        %v544 = vld [vmem:[#allocation2 + $0x318] sm:$0xff]
        %v545 = vld [vmem:[#allocation2 + $0x320] sm:$0xff]
        %v546 = vld [vmem:[#allocation2 + $0x328] sm:$0xff]
        %v547 = vld [vmem:[#allocation2 + $0x330] sm:$0xff]
        %v548 = vld [vmem:[#allocation2 + $0x338] sm:$0xff]
        %v549 = vld [vmem:[#allocation2 + $0x340] sm:$0xff]
        %v550 = vld [vmem:[#allocation2 + $0x348] sm:$0xff]
        %v551 = vld [vmem:[#allocation2 + $0x350] sm:$0xff]
        %v552 = vld [vmem:[#allocation2 + $0x358] sm:$0xff]
        %v553 = vld [vmem:[#allocation2 + $0x360] sm:$0xff]
        %v554 = vld [vmem:[#allocation2 + $0x368] sm:$0xff]
        %v555 = vld [vmem:[#allocation2 + $0x370] sm:$0xff]
        %v556 = vld [vmem:[#allocation2 + $0x378] sm:$0xff]
        %v557 = vld [vmem:[#allocation2 + $0x380] sm:$0xff]
        %v558 = vld [vmem:[#allocation2 + $0x388] sm:$0xff]
        %v559 = vld [vmem:[#allocation2 + $0x390] sm:$0xff]
        %v560 = vld [vmem:[#allocation2 + $0x398] sm:$0xff]
        %v561 = vld [vmem:[#allocation2 + $0x3a0] sm:$0xff]
        %v562 = vld [vmem:[#allocation2 + $0x3a8] sm:$0xff]
        %v563 = vld [vmem:[#allocation2 + $0x3b0] sm:$0xff]
        %v564 = vld [vmem:[#allocation2 + $0x3b8] sm:$0xff]
        %v565 = vld [vmem:[#allocation2 + $0x3c0] sm:$0xff]
        %v566 = vld [vmem:[#allocation2 + $0x3c8] sm:$0xff]
        %v567 = vld [vmem:[#allocation2 + $0x3d0] sm:$0xff]
        %v568 = vld [vmem:[#allocation2 + $0x3d8] sm:$0xff]
        %v569 = vld [vmem:[#allocation2 + $0x3e0] sm:$0xff]
        %v570 = vld [vmem:[#allocation2 + $0x3e8] sm:$0xff]
        %v571 = vld [vmem:[#allocation2 + $0x3f0] sm:$0xff]
        %v572 = vld [vmem:[#allocation2 + $0x3f8] sm:$0xff]
        %v573 = vld [vmem:[#allocation2 + $0x400] sm:$0xff]
        %v574 = vld [vmem:[#allocation2 + $0x408] sm:$0xff]
        %v575 = vld [vmem:[#allocation2 + $0x410] sm:$0xff]
        %v576 = vld [vmem:[#allocation2 + $0x418] sm:$0xff]
        %v577 = vld [vmem:[#allocation2 + $0x420] sm:$0xff]
        %v578 = vld [vmem:[#allocation2 + $0x428] sm:$0xff]
        %v579 = vld [vmem:[#allocation2 + $0x430] sm:$0xff]
        %v580 = vld [vmem:[#allocation2 + $0x438] sm:$0xff]
        %v581 = vld [vmem:[#allocation2 + $0x440] sm:$0xff]
        %v582 = vld [vmem:[#allocation2 + $0x448] sm:$0xff]
        %v583 = vld [vmem:[#allocation2 + $0x450] sm:$0xff]
        %v584 = vld [vmem:[#allocation2 + $0x458] sm:$0xff]
        %v585 = vld [vmem:[#allocation2 + $0x460] sm:$0xff]
        %v586 = vld [vmem:[#allocation2 + $0x468] sm:$0xff]
        %v587 = vld [vmem:[#allocation2 + $0x470] sm:$0xff]
        %v588 = vld [vmem:[#allocation2 + $0x478] sm:$0xff]
        %v589 = vld [vmem:[#allocation2 + $0x480] sm:$0xff]
        %v590 = vld [vmem:[#allocation2 + $0x488] sm:$0xff]
        %v591 = vld [vmem:[#allocation2 + $0x490] sm:$0xff]
        %v592 = vld [vmem:[#allocation2 + $0x498] sm:$0xff]
        %v593 = vld [vmem:[#allocation2 + $0x4a0] sm:$0xff]
        %v594 = vld [vmem:[#allocation2 + $0x4a8] sm:$0xff]
        %v595 = vld [vmem:[#allocation2 + $0x4b0] sm:$0xff]
        %v596 = vld [vmem:[#allocation2 + $0x4b8] sm:$0xff]
        %v597 = vld [vmem:[#allocation2 + $0x4c0] sm:$0xff]
        %v598 = vld [vmem:[#allocation2 + $0x4c8] sm:$0xff]
        %v599 = vld [vmem:[#allocation2 + $0x4d0] sm:$0xff]
        %v600 = vld [vmem:[#allocation2 + $0x4d8] sm:$0xff]
        %v601 = vld [vmem:[#allocation2 + $0x4e0] sm:$0xff]
        %v602 = vld [vmem:[#allocation2 + $0x4e8] sm:$0xff]
        %v603 = vld [vmem:[#allocation2 + $0x4f0] sm:$0xff]
        %v604 = vld [vmem:[#allocation2 + $0x4f8] sm:$0xff]
        %v605 = vld [vmem:[#allocation2 + $0x500] sm:$0xff]
        %v606 = vld [vmem:[#allocation2 + $0x508] sm:$0xff]
        %v607 = vld [vmem:[#allocation2 + $0x510] sm:$0xff]
        %v608 = vld [vmem:[#allocation2 + $0x518] sm:$0xff]
        %v609 = vld [vmem:[#allocation2 + $0x520] sm:$0xff]
        %v610 = vld [vmem:[#allocation2 + $0x528] sm:$0xff]
        %v611 = vld [vmem:[#allocation2 + $0x530] sm:$0xff]
        %v612 = vld [vmem:[#allocation2 + $0x538] sm:$0xff]
        %v613 = vld [vmem:[#allocation2 + $0x540] sm:$0xff]
        %v614 = vld [vmem:[#allocation2 + $0x548] sm:$0xff]
        %v615 = vld [vmem:[#allocation2 + $0x550] sm:$0xff]
        %v616 = vld [vmem:[#allocation2 + $0x558] sm:$0xff]
        %v617 = vld [vmem:[#allocation2 + $0x560] sm:$0xff]
        %v618 = vld [vmem:[#allocation2 + $0x568] sm:$0xff]
        %v619 = vld [vmem:[#allocation2 + $0x570] sm:$0xff]
        %v620 = vld [vmem:[#allocation2 + $0x578] sm:$0xff]
        %v621 = vld [vmem:[#allocation2 + $0x580] sm:$0xff]
        %v622 = vld [vmem:[#allocation2 + $0x588] sm:$0xff]
        %v623 = vld [vmem:[#allocation2 + $0x590] sm:$0xff]
        %v624 = vld [vmem:[#allocation2 + $0x598] sm:$0xff]
        %v625 = vld [vmem:[#allocation2 + $0x5a0] sm:$0xff]
        %v626 = vld [vmem:[#allocation2 + $0x5a8] sm:$0xff]
        %v627 = vld [vmem:[#allocation2 + $0x5b0] sm:$0xff]
        %v628 = vld [vmem:[#allocation2 + $0x5b8] sm:$0xff]
        %v629 = vld [vmem:[#allocation2 + $0x5c0] sm:$0xff]
        %v630 = vld [vmem:[#allocation2 + $0x5c8] sm:$0xff]
        %v631 = vld [vmem:[#allocation2 + $0x5d0] sm:$0xff]
        %v632 = vld [vmem:[#allocation2 + $0x5d8] sm:$0xff]
        %v633 = vld [vmem:[#allocation2 + $0x5e0] sm:$0xff]
        %v634 = vld [vmem:[#allocation2 + $0x5e8] sm:$0xff]
        %v635 = vld [vmem:[#allocation2 + $0x5f0] sm:$0xff]
        %v636 = vld [vmem:[#allocation2 + $0x5f8] sm:$0xff]
        %637 = vmatprep.subr.mxu0 %v446
        %638 = vmatpush1.msra.mxu0 %v445
        %639 = vmatprep.subr.mxu0 %v458
        %640 = vmatpush1.msra.mxu0 %v457
        %641 = vmatprep.subr.mxu0 %v470
        %642 = vmatpush1.msra.mxu0 %v469
        %643 = vmatprep.subr.mxu0 %v482
        %644 = vmatpush1.msra.mxu0 %v481
        %645 = vmatprep.subr.mxu0 %v494
        %646 = vmatpush1.msra.mxu0 %v493
        %647 = vmatprep.subr.mxu0 %v506
        %648 = vmatpush1.msra.mxu0 %v505
        %649 = vmatprep.subr.mxu0 %v518
        %650 = vmatpush1.msra.mxu0 %v517
        %651 = vmatprep.subr.mxu0 %v530
        %652 = vmatpush1.msra.mxu0 %v529
        %653 = vmatprep.subr.mxu0 %v542
        %654 = vmatpush1.msra.mxu0 %v541
        %655 = vmatprep.subr.mxu0 %v554
        %656 = vmatpush1.msra.mxu0 %v553
        %657 = vmatprep.subr.mxu0 %v566
        %658 = vmatpush1.msra.mxu0 %v565
        %659 = vmatprep.subr.mxu0 %v578
        %660 = vmatpush1.msra.mxu0 %v577
        %661 = vmatprep.subr.mxu0 %v590
        %662 = vmatpush1.msra.mxu0 %v589
        %663 = vmatprep.subr.mxu0 %v602
        %664 = vmatpush1.msra.mxu0 %v601
        %665 = vmatprep.subr.mxu0 %v614
        %666 = vmatpush1.msra.mxu0 %v613
        %667 = vmatprep.subr.mxu0 %v626
        %668 = vmatpush1.msra.mxu0 %v625
        %669 = vmatprep.subr.mxu0 0.0
        %670 = vmatpush1.msra.mxu0 0.0
        %671 = vmatprep.subr.mxu0 0.0
        %672 = vmatpush1.msra.mxu0 0.0
        %673 = vmatprep.subr.mxu0 0.0
        %674 = vmatpush1.msra.mxu0 0.0
        %675 = vmatprep.subr.mxu0 0.0
        %676 = vmatpush1.msra.mxu0 0.0
        %677 = vmatprep.subr.mxu0 0.0
        %678 = vmatpush1.msra.mxu0 0.0
        %679 = vmatprep.subr.mxu0 0.0
        %680 = vmatpush1.msra.mxu0 0.0
        %681 = vmatprep.subr.mxu0 0.0
        %682 = vmatpush1.msra.mxu0 0.0
        %683 = vmatprep.subr.mxu0 0.0
        %684 = vmatpush1.msra.mxu0 0.0
        %685 = vmatprep.subr.mxu0 0.0
        %686 = vmatpush1.msra.mxu0 0.0
        %687 = vmatprep.subr.mxu0 0.0
        %688 = vmatpush1.msra.mxu0 0.0
        %689 = vmatprep.subr.mxu0 0.0
        %690 = vmatpush1.msra.mxu0 0.0
        %691 = vmatprep.subr.mxu0 0.0
        %692 = vmatpush1.msra.mxu0 0.0
        %693 = vmatprep.subr.mxu0 0.0
        %694 = vmatpush1.msra.mxu0 0.0
        %695 = vmatprep.subr.mxu0 0.0
        %696 = vmatpush1.msra.mxu0 0.0
        %697 = vmatprep.subr.mxu0 0.0
        %698 = vmatpush1.msra.mxu0 0.0
        %699 = vmatprep.subr.mxu0 0.0
        %700 = vmatpush1.msra.mxu0 0.0
        %701 = vmatprep.mubr.f32.mxu0 0.0
        %702 = vmatmul.mubr.f32.gmra.mrb[0].mxu0 %v439
        %v703 = vpop.f32.mrb[0].mxu0
        %v704 = vadd.f32 0.0, %v703
        %v705 = vpop.f32.mrb[0].mxu0
        %v706 = vadd.f32 0.0, %v705
        %707 = vdwg.mxu0
        %708 = vmatprep.subr.mxu0 %v448
        %709 = vmatpush1.msra.mxu0 %v447
        %710 = vmatprep.subr.mxu0 %v460
        %711 = vmatpush1.msra.mxu0 %v459
        %712 = vmatprep.subr.mxu0 %v472
        %713 = vmatpush1.msra.mxu0 %v471
        %714 = vmatprep.subr.mxu0 %v484
        %715 = vmatpush1.msra.mxu0 %v483
        %716 = vmatprep.subr.mxu0 %v496
        %717 = vmatpush1.msra.mxu0 %v495
        %718 = vmatprep.subr.mxu0 %v508
        %719 = vmatpush1.msra.mxu0 %v507
        %720 = vmatprep.subr.mxu0 %v520
        %721 = vmatpush1.msra.mxu0 %v519
        %722 = vmatprep.subr.mxu0 %v532
        %723 = vmatpush1.msra.mxu0 %v531
        %724 = vmatprep.subr.mxu0 %v544
        %725 = vmatpush1.msra.mxu0 %v543
        %726 = vmatprep.subr.mxu0 %v556
        %727 = vmatpush1.msra.mxu0 %v555
        %728 = vmatprep.subr.mxu0 %v568
        %729 = vmatpush1.msra.mxu0 %v567
        %730 = vmatprep.subr.mxu0 %v580
        %731 = vmatpush1.msra.mxu0 %v579
        %732 = vmatprep.subr.mxu0 %v592
        %733 = vmatpush1.msra.mxu0 %v591
        %734 = vmatprep.subr.mxu0 %v604
        %735 = vmatpush1.msra.mxu0 %v603
        %736 = vmatprep.subr.mxu0 %v616
        %737 = vmatpush1.msra.mxu0 %v615
        %738 = vmatprep.subr.mxu0 %v628
        %739 = vmatpush1.msra.mxu0 %v627
        %740 = vmatprep.subr.mxu0 0.0
        %741 = vmatpush1.msra.mxu0 0.0
        %742 = vmatprep.subr.mxu0 0.0
        %743 = vmatpush1.msra.mxu0 0.0
        %744 = vmatprep.subr.mxu0 0.0
        %745 = vmatpush1.msra.mxu0 0.0
        %746 = vmatprep.subr.mxu0 0.0
        %747 = vmatpush1.msra.mxu0 0.0
        %748 = vmatprep.subr.mxu0 0.0
        %749 = vmatpush1.msra.mxu0 0.0
        %750 = vmatprep.subr.mxu0 0.0
        %751 = vmatpush1.msra.mxu0 0.0
        %752 = vmatprep.subr.mxu0 0.0
        %753 = vmatpush1.msra.mxu0 0.0
        %754 = vmatprep.subr.mxu0 0.0
        %755 = vmatpush1.msra.mxu0 0.0
        %756 = vmatprep.subr.mxu0 0.0
        %757 = vmatpush1.msra.mxu0 0.0
        %758 = vmatprep.subr.mxu0 0.0
        %759 = vmatpush1.msra.mxu0 0.0
        %760 = vmatprep.subr.mxu0 0.0
        %761 = vmatpush1.msra.mxu0 0.0
        %762 = vmatprep.subr.mxu0 0.0
        %763 = vmatpush1.msra.mxu0 0.0
        %764 = vmatprep.subr.mxu0 0.0
        %765 = vmatpush1.msra.mxu0 0.0
        %766 = vmatprep.subr.mxu0 0.0
        %767 = vmatpush1.msra.mxu0 0.0
        %768 = vmatprep.subr.mxu0 0.0
        %769 = vmatpush1.msra.mxu0 0.0
        %770 = vmatprep.subr.mxu0 0.0
        %771 = vmatpush1.msra.mxu0 0.0
        %772 = vmatprep.mubr.f32.mxu0 0.0
        %773 = vmatmul.mubr.f32.gmra.mrb[0].mxu0 %v439
        %v774 = vpop.f32.mrb[0].mxu0
        %v775 = vadd.f32 0.0, %v774
        %v776 = vpop.f32.mrb[0].mxu0
        %v777 = vadd.f32 0.0, %v776
        %778 = vdwg.mxu0
        %779 = vmatprep.subr.mxu0 %v450
        %780 = vmatpush1.msra.mxu0 %v449
        %781 = vmatprep.subr.mxu0 %v462
        %782 = vmatpush1.msra.mxu0 %v461
        %783 = vmatprep.subr.mxu0 %v474
        %784 = vmatpush1.msra.mxu0 %v473
        %785 = vmatprep.subr.mxu0 %v486
        %786 = vmatpush1.msra.mxu0 %v485
        %787 = vmatprep.subr.mxu0 %v498
        %788 = vmatpush1.msra.mxu0 %v497
        %789 = vmatprep.subr.mxu0 %v510
        %790 = vmatpush1.msra.mxu0 %v509
        %791 = vmatprep.subr.mxu0 %v522
        %792 = vmatpush1.msra.mxu0 %v521
        %793 = vmatprep.subr.mxu0 %v534
        %794 = vmatpush1.msra.mxu0 %v533
        %795 = vmatprep.subr.mxu0 %v546
        %796 = vmatpush1.msra.mxu0 %v545
        %797 = vmatprep.subr.mxu0 %v558
        %798 = vmatpush1.msra.mxu0 %v557
        %799 = vmatprep.subr.mxu0 %v570
        %800 = vmatpush1.msra.mxu0 %v569
        %801 = vmatprep.subr.mxu0 %v582
        %802 = vmatpush1.msra.mxu0 %v581
        %803 = vmatprep.subr.mxu0 %v594
        %804 = vmatpush1.msra.mxu0 %v593
        %805 = vmatprep.subr.mxu0 %v606
        %806 = vmatpush1.msra.mxu0 %v605
        %807 = vmatprep.subr.mxu0 %v618
        %808 = vmatpush1.msra.mxu0 %v617
        %809 = vmatprep.subr.mxu0 %v630
        %810 = vmatpush1.msra.mxu0 %v629
        %811 = vmatprep.subr.mxu0 0.0
        %812 = vmatpush1.msra.mxu0 0.0
        %813 = vmatprep.subr.mxu0 0.0
        %814 = vmatpush1.msra.mxu0 0.0
        %815 = vmatprep.subr.mxu0 0.0
        %816 = vmatpush1.msra.mxu0 0.0
        %817 = vmatprep.subr.mxu0 0.0
        %818 = vmatpush1.msra.mxu0 0.0
        %819 = vmatprep.subr.mxu0 0.0
        %820 = vmatpush1.msra.mxu0 0.0
        %821 = vmatprep.subr.mxu0 0.0
        %822 = vmatpush1.msra.mxu0 0.0
        %823 = vmatprep.subr.mxu0 0.0
        %824 = vmatpush1.msra.mxu0 0.0
        %825 = vmatprep.subr.mxu0 0.0
        %826 = vmatpush1.msra.mxu0 0.0
        %827 = vmatprep.subr.mxu0 0.0
        %828 = vmatpush1.msra.mxu0 0.0
        %829 = vmatprep.subr.mxu0 0.0
        %830 = vmatpush1.msra.mxu0 0.0
        %831 = vmatprep.subr.mxu0 0.0
        %832 = vmatpush1.msra.mxu0 0.0
        %833 = vmatprep.subr.mxu0 0.0
        %834 = vmatpush1.msra.mxu0 0.0
        %835 = vmatprep.subr.mxu0 0.0
        %836 = vmatpush1.msra.mxu0 0.0
        %837 = vmatprep.subr.mxu0 0.0
        %838 = vmatpush1.msra.mxu0 0.0
        %839 = vmatprep.subr.mxu0 0.0
        %840 = vmatpush1.msra.mxu0 0.0
        %841 = vmatprep.subr.mxu0 0.0
        %842 = vmatpush1.msra.mxu0 0.0
        %843 = vmatprep.mubr.f32.mxu0 0.0
        %844 = vmatmul.mubr.f32.gmra.mrb[0].mxu0 %v439
        %v845 = vpop.f32.mrb[0].mxu0
        %v846 = vadd.f32 0.0, %v845
        %v847 = vpop.f32.mrb[0].mxu0
        %v848 = vadd.f32 0.0, %v847
        %849 = vdwg.mxu0
        %850 = vmatprep.subr.mxu0 %v452
        %851 = vmatpush1.msra.mxu0 %v451
        %852 = vmatprep.subr.mxu0 %v464
        %853 = vmatpush1.msra.mxu0 %v463
        %854 = vmatprep.subr.mxu0 %v476
        %855 = vmatpush1.msra.mxu0 %v475
        %856 = vmatprep.subr.mxu0 %v488
        %857 = vmatpush1.msra.mxu0 %v487
        %858 = vmatprep.subr.mxu0 %v500
        %859 = vmatpush1.msra.mxu0 %v499
        %860 = vmatprep.subr.mxu0 %v512
        %861 = vmatpush1.msra.mxu0 %v511
        %862 = vmatprep.subr.mxu0 %v524
        %863 = vmatpush1.msra.mxu0 %v523
        %864 = vmatprep.subr.mxu0 %v536
        %865 = vmatpush1.msra.mxu0 %v535
        %866 = vmatprep.subr.mxu0 %v548
        %867 = vmatpush1.msra.mxu0 %v547
        %868 = vmatprep.subr.mxu0 %v560
        %869 = vmatpush1.msra.mxu0 %v559
        %870 = vmatprep.subr.mxu0 %v572
        %871 = vmatpush1.msra.mxu0 %v571
        %872 = vmatprep.subr.mxu0 %v584
        %873 = vmatpush1.msra.mxu0 %v583
        %874 = vmatprep.subr.mxu0 %v596
        %875 = vmatpush1.msra.mxu0 %v595
        %876 = vmatprep.subr.mxu0 %v608
        %877 = vmatpush1.msra.mxu0 %v607
        %878 = vmatprep.subr.mxu0 %v620
        %879 = vmatpush1.msra.mxu0 %v619
        %880 = vmatprep.subr.mxu0 %v632
        %881 = vmatpush1.msra.mxu0 %v631
        %882 = vmatprep.subr.mxu0 0.0
        %883 = vmatpush1.msra.mxu0 0.0
        %884 = vmatprep.subr.mxu0 0.0
        %885 = vmatpush1.msra.mxu0 0.0
        %886 = vmatprep.subr.mxu0 0.0
        %887 = vmatpush1.msra.mxu0 0.0
        %888 = vmatprep.subr.mxu0 0.0
        %889 = vmatpush1.msra.mxu0 0.0
        %890 = vmatprep.subr.mxu0 0.0
        %891 = vmatpush1.msra.mxu0 0.0
        %892 = vmatprep.subr.mxu0 0.0
        %893 = vmatpush1.msra.mxu0 0.0
        %894 = vmatprep.subr.mxu0 0.0
        %895 = vmatpush1.msra.mxu0 0.0
        %896 = vmatprep.subr.mxu0 0.0
        %897 = vmatpush1.msra.mxu0 0.0
        %898 = vmatprep.subr.mxu0 0.0
        %899 = vmatpush1.msra.mxu0 0.0
        %900 = vmatprep.subr.mxu0 0.0
        %901 = vmatpush1.msra.mxu0 0.0
        %902 = vmatprep.subr.mxu0 0.0
        %903 = vmatpush1.msra.mxu0 0.0
        %904 = vmatprep.subr.mxu0 0.0
        %905 = vmatpush1.msra.mxu0 0.0
        %906 = vmatprep.subr.mxu0 0.0
        %907 = vmatpush1.msra.mxu0 0.0
        %908 = vmatprep.subr.mxu0 0.0
        %909 = vmatpush1.msra.mxu0 0.0
        %910 = vmatprep.subr.mxu0 0.0
        %911 = vmatpush1.msra.mxu0 0.0
        %912 = vmatprep.subr.mxu0 0.0
        %913 = vmatpush1.msra.mxu0 0.0
        %914 = vmatprep.mubr.f32.mxu0 0.0
        %915 = vmatmul.mubr.f32.gmra.mrb[0].mxu0 %v439
        %v916 = vpop.f32.mrb[0].mxu0
        %v917 = vadd.f32 0.0, %v916
        %v918 = vpop.f32.mrb[0].mxu0
        %v919 = vadd.f32 0.0, %v918
        %920 = vdwg.mxu0
        %921 = vmatprep.subr.mxu0 %v454
        %922 = vmatpush1.msra.mxu0 %v453
        %923 = vmatprep.subr.mxu0 %v466
        %924 = vmatpush1.msra.mxu0 %v465
        %925 = vmatprep.subr.mxu0 %v478
        %926 = vmatpush1.msra.mxu0 %v477
        %927 = vmatprep.subr.mxu0 %v490
        %928 = vmatpush1.msra.mxu0 %v489
        %929 = vmatprep.subr.mxu0 %v502
        %930 = vmatpush1.msra.mxu0 %v501
        %931 = vmatprep.subr.mxu0 %v514
        %932 = vmatpush1.msra.mxu0 %v513
        %933 = vmatprep.subr.mxu0 %v526
        %934 = vmatpush1.msra.mxu0 %v525
        %935 = vmatprep.subr.mxu0 %v538
        %936 = vmatpush1.msra.mxu0 %v537
        %937 = vmatprep.subr.mxu0 %v550
        %938 = vmatpush1.msra.mxu0 %v549
        %939 = vmatprep.subr.mxu0 %v562
        %940 = vmatpush1.msra.mxu0 %v561
        %941 = vmatprep.subr.mxu0 %v574
        %942 = vmatpush1.msra.mxu0 %v573
        %943 = vmatprep.subr.mxu0 %v586
        %944 = vmatpush1.msra.mxu0 %v585
        %945 = vmatprep.subr.mxu0 %v598
        %946 = vmatpush1.msra.mxu0 %v597
        %947 = vmatprep.subr.mxu0 %v610
        %948 = vmatpush1.msra.mxu0 %v609
        %949 = vmatprep.subr.mxu0 %v622
        %950 = vmatpush1.msra.mxu0 %v621
        %951 = vmatprep.subr.mxu0 %v634
        %952 = vmatpush1.msra.mxu0 %v633
        %953 = vmatprep.subr.mxu0 0.0
        %954 = vmatpush1.msra.mxu0 0.0
        %955 = vmatprep.subr.mxu0 0.0
        %956 = vmatpush1.msra.mxu0 0.0
        %957 = vmatprep.subr.mxu0 0.0
        %958 = vmatpush1.msra.mxu0 0.0
        %959 = vmatprep.subr.mxu0 0.0
        %960 = vmatpush1.msra.mxu0 0.0
        %961 = vmatprep.subr.mxu0 0.0
        %962 = vmatpush1.msra.mxu0 0.0
        %963 = vmatprep.subr.mxu0 0.0
        %964 = vmatpush1.msra.mxu0 0.0
        %965 = vmatprep.subr.mxu0 0.0
        %966 = vmatpush1.msra.mxu0 0.0
        %967 = vmatprep.subr.mxu0 0.0
        %968 = vmatpush1.msra.mxu0 0.0
        %969 = vmatprep.subr.mxu0 0.0
        %970 = vmatpush1.msra.mxu0 0.0
        %971 = vmatprep.subr.mxu0 0.0
        %972 = vmatpush1.msra.mxu0 0.0
        %973 = vmatprep.subr.mxu0 0.0
        %974 = vmatpush1.msra.mxu0 0.0
        %975 = vmatprep.subr.mxu0 0.0
        %976 = vmatpush1.msra.mxu0 0.0
        %977 = vmatprep.subr.mxu0 0.0
        %978 = vmatpush1.msra.mxu0 0.0
        %979 = vmatprep.subr.mxu0 0.0
        %980 = vmatpush1.msra.mxu0 0.0
        %981 = vmatprep.subr.mxu0 0.0
        %982 = vmatpush1.msra.mxu0 0.0
        %983 = vmatprep.subr.mxu0 0.0
        %984 = vmatpush1.msra.mxu0 0.0
        %985 = vmatprep.mubr.f32.mxu0 0.0
        %986 = vmatmul.mubr.f32.gmra.mrb[0].mxu0 %v439
        %v987 = vpop.f32.mrb[0].mxu0
        %v988 = vadd.f32 0.0, %v987
        %v989 = vpop.f32.mrb[0].mxu0
        %v990 = vadd.f32 0.0, %v989
        %991 = vdwg.mxu0
        %992 = vmatprep.subr.mxu0 %v456
        %993 = vmatpush1.msra.mxu0 %v455
        %994 = vmatprep.subr.mxu0 %v468
        %995 = vmatpush1.msra.mxu0 %v467
        %996 = vmatprep.subr.mxu0 %v480
        %997 = vmatpush1.msra.mxu0 %v479
        %998 = vmatprep.subr.mxu0 %v492
        %999 = vmatpush1.msra.mxu0 %v491
        %1000 = vmatprep.subr.mxu0 %v504
        %1001 = vmatpush1.msra.mxu0 %v503
        %1002 = vmatprep.subr.mxu0 %v516
        %1003 = vmatpush1.msra.mxu0 %v515
        %1004 = vmatprep.subr.mxu0 %v528
        %1005 = vmatpush1.msra.mxu0 %v527
        %1006 = vmatprep.subr.mxu0 %v540
        %1007 = vmatpush1.msra.mxu0 %v539
        %1008 = vmatprep.subr.mxu0 %v552
        %1009 = vmatpush1.msra.mxu0 %v551
        %1010 = vmatprep.subr.mxu0 %v564
        %1011 = vmatpush1.msra.mxu0 %v563
        %1012 = vmatprep.subr.mxu0 %v576
        %1013 = vmatpush1.msra.mxu0 %v575
        %1014 = vmatprep.subr.mxu0 %v588
        %1015 = vmatpush1.msra.mxu0 %v587
        %1016 = vmatprep.subr.mxu0 %v600
        %1017 = vmatpush1.msra.mxu0 %v599
        %1018 = vmatprep.subr.mxu0 %v612
        %1019 = vmatpush1.msra.mxu0 %v611
        %1020 = vmatprep.subr.mxu0 %v624
        %1021 = vmatpush1.msra.mxu0 %v623
        %1022 = vmatprep.subr.mxu0 %v636
        %1023 = vmatpush1.msra.mxu0 %v635
        %1024 = vmatprep.subr.mxu0 0.0
        %1025 = vmatpush1.msra.mxu0 0.0
        %1026 = vmatprep.subr.mxu0 0.0
        %1027 = vmatpush1.msra.mxu0 0.0
        %1028 = vmatprep.subr.mxu0 0.0
        %1029 = vmatpush1.msra.mxu0 0.0
        %1030 = vmatprep.subr.mxu0 0.0
        %1031 = vmatpush1.msra.mxu0 0.0
        %1032 = vmatprep.subr.mxu0 0.0
        %1033 = vmatpush1.msra.mxu0 0.0
        %1034 = vmatprep.subr.mxu0 0.0
        %1035 = vmatpush1.msra.mxu0 0.0
        %1036 = vmatprep.subr.mxu0 0.0
        %1037 = vmatpush1.msra.mxu0 0.0
        %1038 = vmatprep.subr.mxu0 0.0
        %1039 = vmatpush1.msra.mxu0 0.0
        %1040 = vmatprep.subr.mxu0 0.0
        %1041 = vmatpush1.msra.mxu0 0.0
        %1042 = vmatprep.subr.mxu0 0.0
        %1043 = vmatpush1.msra.mxu0 0.0
        %1044 = vmatprep.subr.mxu0 0.0
        %1045 = vmatpush1.msra.mxu0 0.0
        %1046 = vmatprep.subr.mxu0 0.0
        %1047 = vmatpush1.msra.mxu0 0.0
        %1048 = vmatprep.subr.mxu0 0.0
        %1049 = vmatpush1.msra.mxu0 0.0
        %1050 = vmatprep.subr.mxu0 0.0
        %1051 = vmatpush1.msra.mxu0 0.0
        %1052 = vmatprep.subr.mxu0 0.0
        %1053 = vmatpush1.msra.mxu0 0.0
        %1054 = vmatprep.subr.mxu0 0.0
        %1055 = vmatpush1.msra.mxu0 0.0
        %1056 = vmatprep.mubr.f32.mxu0 0.0
        %1057 = vmatmul.mubr.f32.gmra.mrb[0].mxu0 %v439
        %v1058 = vpop.f32.mrb[0].mxu0
        %v1059 = vadd.f32 0.0, %v1058
        %v1060 = vpop.f32.mrb[0].mxu0
        %v1061 = vadd.f32 0.0, %v1060
        %1062 = vdwg.mxu0
        %1063 = vmatprep.subr.mxu0 0.0
        %1064 = vmatpush1.xpose.msra.mxu0 %v846
        %1065 = vmatprep.subr.mxu0 0.0
        %1066 = vmatpush1.xpose.msra.mxu0 0.0
        %1067 = vmatprep.subr.mxu0 0.0
        %1068 = vmatpush1.xpose.msra.mxu0 0.0
        %1069 = vmatprep.subr.mxu0 0.0
        %1070 = vmatpush1.xpose.msra.mxu0 0.0
        %1071 = vmatprep.subr.mxu0 0.0
        %1072 = vmatpush1.xpose.msra.mxu0 0.0
        %1073 = vmatprep.subr.mxu0 0.0
        %1074 = vmatpush1.xpose.msra.mxu0 0.0
        %1075 = vmatprep.subr.mxu0 0.0
        %1076 = vmatpush1.xpose.msra.mxu0 0.0
        %1077 = vmatprep.subr.mxu0 0.0
        %1078 = vmatpush1.xpose.msra.mxu0 0.0
        %1079 = vmatprep.subr.mxu0 0.0
        %1080 = vmatpush1.xpose.msra.mxu0 0.0
        %1081 = vmatprep.subr.mxu0 0.0
        %1082 = vmatpush1.xpose.msra.mxu0 0.0
        %1083 = vmatprep.subr.mxu0 0.0
        %1084 = vmatpush1.xpose.msra.mxu0 0.0
        %1085 = vmatprep.subr.mxu0 0.0
        %1086 = vmatpush1.xpose.msra.mxu0 0.0
        %1087 = vmatprep.subr.mxu0 0.0
        %1088 = vmatpush1.xpose.msra.mxu0 0.0
        %1089 = vmatprep.subr.mxu0 0.0
        %1090 = vmatpush1.xpose.msra.mxu0 0.0
        %1091 = vmatprep.subr.mxu0 0.0
        %1092 = vmatpush1.xpose.msra.mxu0 0.0
        %1093 = vmatprep.subr.mxu0 0.0
        %1094 = vmatpush1.xpose.msra.mxu0 0.0
        %1095 = vmatprep.subr.mxu0 0.0
        %1096 = vmatpush1.xpose.msra.mxu0 0.0
        %1097 = vmatprep.subr.mxu0 0.0
        %1098 = vmatpush1.xpose.msra.mxu0 0.0
        %1099 = vmatprep.subr.mxu0 0.0
        %1100 = vmatpush1.xpose.msra.mxu0 0.0
        %1101 = vmatprep.subr.mxu0 0.0
        %1102 = vmatpush1.xpose.msra.mxu0 0.0
        %1103 = vmatprep.subr.mxu0 0.0
        %1104 = vmatpush1.xpose.msra.mxu0 0.0
        %1105 = vmatprep.subr.mxu0 0.0
        %1106 = vmatpush1.xpose.msra.mxu0 0.0
        %1107 = vmatprep.subr.mxu0 0.0
        %1108 = vmatpush1.xpose.msra.mxu0 0.0
        %1109 = vmatprep.subr.mxu0 0.0
        %1110 = vmatpush1.xpose.msra.mxu0 0.0
        %1111 = vmatprep.subr.mxu0 0.0
        %1112 = vmatpush1.xpose.msra.mxu0 0.0
        %1113 = vmatprep.subr.mxu0 0.0
        %1114 = vmatpush1.xpose.msra.mxu0 0.0
        %1115 = vmatprep.subr.mxu0 0.0
        %1116 = vmatpush1.xpose.msra.mxu0 0.0
        %1117 = vmatprep.subr.mxu0 0.0
        %1118 = vmatpush1.xpose.msra.mxu0 0.0
        %1119 = vmatprep.subr.mxu0 0.0
        %1120 = vmatpush1.xpose.msra.mxu0 0.0
        %1121 = vmatprep.subr.mxu0 0.0
        %1122 = vmatpush1.xpose.msra.mxu0 0.0
        %1123 = vmatprep.subr.mxu0 0.0
        %1124 = vmatpush1.xpose.msra.mxu0 0.0
        %1125 = vmatprep.subr.mxu0 0.0
        %1126 = vmatpush1.xpose.msra.mxu0 0.0
        %1127 = vmatprep.mubr.f32.mxu0 0.0
        %1128 = vmatmul.mubr.f32.gmra.mrb[0].mxu0 %v704
        %v1129 = vpop.f32.mrb[0].mxu0
        %v1130 = vadd.f32 0.0, %v1129
        %v1131 = vpop.f32.mrb[0].mxu0
        %1132 = vdwg.mxu0
        %vm1133 = vcmask 64512
        %v1134 = vsel %vm1133, %v1130, -inf
        %1135 = vmax.xlane.f32.xlu0 %v1134
        %v1136 = vpop.xlane.xlu0 %1135
        %v1137 = vsub.f32 %v1130, %v1136
        %v1138 = vmul.f32 %v1137, 1.442695
        %v1139 = vpow.pop %v1138
        %v1140 = vsel %vm1133, %v1139, 0.0
        %1141 = vadd.xlane.f32.xlu0 %v1140
        %v1142 = vpop.xlane.xlu0 %1141
        %v1143 = vrcp.pop %v1142
        %v1144 = vmul.f32 %v1139, %v1143
        %v1146 = vsel %vm1133, %v1144, 0
        %1148 = vmatprep.subr.mxu0 0.0
        %1149 = vmatpush1.msra.mxu0 %v988
        %1150 = vmatprep.subr.mxu0 0.0
        %1151 = vmatpush1.msra.mxu0 0.0
        %1152 = vmatprep.subr.mxu0 0.0
        %1153 = vmatpush1.msra.mxu0 0.0
        %1154 = vmatprep.subr.mxu0 0.0
        %1155 = vmatpush1.msra.mxu0 0.0
        %1156 = vmatprep.subr.mxu0 0.0
        %1157 = vmatpush1.msra.mxu0 0.0
        %1158 = vmatprep.subr.mxu0 0.0
        %1159 = vmatpush1.msra.mxu0 0.0
        %1160 = vmatprep.subr.mxu0 0.0
        %1161 = vmatpush1.msra.mxu0 0.0
        %1162 = vmatprep.subr.mxu0 0.0
        %1163 = vmatpush1.msra.mxu0 0.0
        %1164 = vmatprep.subr.mxu0 0.0
        %1165 = vmatpush1.msra.mxu0 0.0
        %1166 = vmatprep.subr.mxu0 0.0
        %1167 = vmatpush1.msra.mxu0 0.0
        %1168 = vmatprep.subr.mxu0 0.0
        %1169 = vmatpush1.msra.mxu0 0.0
        %1170 = vmatprep.subr.mxu0 0.0
        %1171 = vmatpush1.msra.mxu0 0.0
        %1172 = vmatprep.subr.mxu0 0.0
        %1173 = vmatpush1.msra.mxu0 0.0
        %1174 = vmatprep.subr.mxu0 0.0
        %1175 = vmatpush1.msra.mxu0 0.0
        %1176 = vmatprep.subr.mxu0 0.0
        %1177 = vmatpush1.msra.mxu0 0.0
        %1178 = vmatprep.subr.mxu0 0.0
        %1179 = vmatpush1.msra.mxu0 0.0
        %1180 = vmatprep.subr.mxu0 0.0
        %1181 = vmatpush1.msra.mxu0 0.0
        %1182 = vmatprep.subr.mxu0 0.0
        %1183 = vmatpush1.msra.mxu0 0.0
        %1184 = vmatprep.subr.mxu0 0.0
        %1185 = vmatpush1.msra.mxu0 0.0
        %1186 = vmatprep.subr.mxu0 0.0
        %1187 = vmatpush1.msra.mxu0 0.0
        %1188 = vmatprep.subr.mxu0 0.0
        %1189 = vmatpush1.msra.mxu0 0.0
        %1190 = vmatprep.subr.mxu0 0.0
        %1191 = vmatpush1.msra.mxu0 0.0
        %1192 = vmatprep.subr.mxu0 0.0
        %1193 = vmatpush1.msra.mxu0 0.0
        %1194 = vmatprep.subr.mxu0 0.0
        %1195 = vmatpush1.msra.mxu0 0.0
        %1196 = vmatprep.subr.mxu0 0.0
        %1197 = vmatpush1.msra.mxu0 0.0
        %1198 = vmatprep.subr.mxu0 0.0
        %1199 = vmatpush1.msra.mxu0 0.0
        %1200 = vmatprep.subr.mxu0 0.0
        %1201 = vmatpush1.msra.mxu0 0.0
        %1202 = vmatprep.subr.mxu0 0.0
        %1203 = vmatpush1.msra.mxu0 0.0
        %1204 = vmatprep.subr.mxu0 0.0
        %1205 = vmatpush1.msra.mxu0 0.0
        %1206 = vmatprep.subr.mxu0 0.0
        %1207 = vmatpush1.msra.mxu0 0.0
        %1208 = vmatprep.subr.mxu0 0.0
        %1209 = vmatpush1.msra.mxu0 0.0
        %1210 = vmatprep.subr.mxu0 0.0
        %1211 = vmatpush1.msra.mxu0 0.0
        %1212 = vmatprep.mubr.f32.mxu0 0.0
        %1213 = vmatmul.mubr.f32.gmra.mrb[0].mxu0 %v1146
        %v1214 = vpop.f32.mrb[0].mxu0
        %v1215 = vadd.f32 0.0, %v1214
        %v1216 = vpop.f32.mrb[0].mxu0
        %1217 = vdwg.mxu0
        %1218 = vmatprep.subr.mxu0 0.0
        %1219 = vmatpush1.xpose.msra.mxu0 %v848
        %1220 = vmatprep.subr.mxu0 0.0
        %1221 = vmatpush1.xpose.msra.mxu0 0.0
        %1222 = vmatprep.subr.mxu0 0.0
        %1223 = vmatpush1.xpose.msra.mxu0 0.0
        %1224 = vmatprep.subr.mxu0 0.0
        %1225 = vmatpush1.xpose.msra.mxu0 0.0
        %1226 = vmatprep.subr.mxu0 0.0
        %1227 = vmatpush1.xpose.msra.mxu0 0.0
        %1228 = vmatprep.subr.mxu0 0.0
        %1229 = vmatpush1.xpose.msra.mxu0 0.0
        %1230 = vmatprep.subr.mxu0 0.0
        %1231 = vmatpush1.xpose.msra.mxu0 0.0
        %1232 = vmatprep.subr.mxu0 0.0
        %1233 = vmatpush1.xpose.msra.mxu0 0.0
        %1234 = vmatprep.subr.mxu0 0.0
        %1235 = vmatpush1.xpose.msra.mxu0 0.0
        %1236 = vmatprep.subr.mxu0 0.0
        %1237 = vmatpush1.xpose.msra.mxu0 0.0
        %1238 = vmatprep.subr.mxu0 0.0
        %1239 = vmatpush1.xpose.msra.mxu0 0.0
        %1240 = vmatprep.subr.mxu0 0.0
        %1241 = vmatpush1.xpose.msra.mxu0 0.0
        %1242 = vmatprep.subr.mxu0 0.0
        %1243 = vmatpush1.xpose.msra.mxu0 0.0
        %1244 = vmatprep.subr.mxu0 0.0
        %1245 = vmatpush1.xpose.msra.mxu0 0.0
        %1246 = vmatprep.subr.mxu0 0.0
        %1247 = vmatpush1.xpose.msra.mxu0 0.0
        %1248 = vmatprep.subr.mxu0 0.0
        %1249 = vmatpush1.xpose.msra.mxu0 0.0
        %1250 = vmatprep.subr.mxu0 0.0
        %1251 = vmatpush1.xpose.msra.mxu0 0.0
        %1252 = vmatprep.subr.mxu0 0.0
        %1253 = vmatpush1.xpose.msra.mxu0 0.0
        %1254 = vmatprep.subr.mxu0 0.0
        %1255 = vmatpush1.xpose.msra.mxu0 0.0
        %1256 = vmatprep.subr.mxu0 0.0
        %1257 = vmatpush1.xpose.msra.mxu0 0.0
        %1258 = vmatprep.subr.mxu0 0.0
        %1259 = vmatpush1.xpose.msra.mxu0 0.0
        %1260 = vmatprep.subr.mxu0 0.0
        %1261 = vmatpush1.xpose.msra.mxu0 0.0
        %1262 = vmatprep.subr.mxu0 0.0
        %1263 = vmatpush1.xpose.msra.mxu0 0.0
        %1264 = vmatprep.subr.mxu0 0.0
        %1265 = vmatpush1.xpose.msra.mxu0 0.0
        %1266 = vmatprep.subr.mxu0 0.0
        %1267 = vmatpush1.xpose.msra.mxu0 0.0
        %1268 = vmatprep.subr.mxu0 0.0
        %1269 = vmatpush1.xpose.msra.mxu0 0.0
        %1270 = vmatprep.subr.mxu0 0.0
        %1271 = vmatpush1.xpose.msra.mxu0 0.0
        %1272 = vmatprep.subr.mxu0 0.0
        %1273 = vmatpush1.xpose.msra.mxu0 0.0
        %1274 = vmatprep.subr.mxu0 0.0
        %1275 = vmatpush1.xpose.msra.mxu0 0.0
        %1276 = vmatprep.subr.mxu0 0.0
        %1277 = vmatpush1.xpose.msra.mxu0 0.0
        %1278 = vmatprep.subr.mxu0 0.0
        %1279 = vmatpush1.xpose.msra.mxu0 0.0
        %1280 = vmatprep.subr.mxu0 0.0
        %1281 = vmatpush1.xpose.msra.mxu0 0.0
        %1282 = vmatprep.mubr.f32.mxu0 0.0
        %1283 = vmatmul.mubr.f32.gmra.mrb[0].mxu0 %v706
        %v1284 = vpop.f32.mrb[0].mxu0
        %v1285 = vadd.f32 0.0, %v1284
        %v1286 = vpop.f32.mrb[0].mxu0
        %1287 = vdwg.mxu0
        %v1288 = vsel %vm1133, %v1285, -inf
        %1289 = vmax.xlane.f32.xlu0 %v1288
        %v1290 = vpop.xlane.xlu0 %1289
        %v1291 = vsub.f32 %v1285, %v1290
        %v1292 = vmul.f32 %v1291, 1.442695
        %v1293 = vpow.pop %v1292
        %v1294 = vsel %vm1133, %v1293, 0.0
        %1295 = vadd.xlane.f32.xlu0 %v1294
        %v1296 = vpop.xlane.xlu0 %1295
        %v1297 = vrcp.pop %v1296
        %v1298 = vmul.f32 %v1293, %v1297
        %v1300 = vsel %vm1133, %v1298, 0
        %1302 = vmatprep.subr.mxu0 0.0
        %1303 = vmatpush1.msra.mxu0 %v990
        %1304 = vmatprep.subr.mxu0 0.0
        %1305 = vmatpush1.msra.mxu0 0.0
        %1306 = vmatprep.subr.mxu0 0.0
        %1307 = vmatpush1.msra.mxu0 0.0
        %1308 = vmatprep.subr.mxu0 0.0
        %1309 = vmatpush1.msra.mxu0 0.0
        %1310 = vmatprep.subr.mxu0 0.0
        %1311 = vmatpush1.msra.mxu0 0.0
        %1312 = vmatprep.subr.mxu0 0.0
        %1313 = vmatpush1.msra.mxu0 0.0
        %1314 = vmatprep.subr.mxu0 0.0
        %1315 = vmatpush1.msra.mxu0 0.0
        %1316 = vmatprep.subr.mxu0 0.0
        %1317 = vmatpush1.msra.mxu0 0.0
        %1318 = vmatprep.subr.mxu0 0.0
        %1319 = vmatpush1.msra.mxu0 0.0
        %1320 = vmatprep.subr.mxu0 0.0
        %1321 = vmatpush1.msra.mxu0 0.0
        %1322 = vmatprep.subr.mxu0 0.0
        %1323 = vmatpush1.msra.mxu0 0.0
        %1324 = vmatprep.subr.mxu0 0.0
        %1325 = vmatpush1.msra.mxu0 0.0
        %1326 = vmatprep.subr.mxu0 0.0
        %1327 = vmatpush1.msra.mxu0 0.0
        %1328 = vmatprep.subr.mxu0 0.0
        %1329 = vmatpush1.msra.mxu0 0.0
        %1330 = vmatprep.subr.mxu0 0.0
        %1331 = vmatpush1.msra.mxu0 0.0
        %1332 = vmatprep.subr.mxu0 0.0
        %1333 = vmatpush1.msra.mxu0 0.0
        %1334 = vmatprep.subr.mxu0 0.0
        %1335 = vmatpush1.msra.mxu0 0.0
        %1336 = vmatprep.subr.mxu0 0.0
        %1337 = vmatpush1.msra.mxu0 0.0
        %1338 = vmatprep.subr.mxu0 0.0
        %1339 = vmatpush1.msra.mxu0 0.0
        %1340 = vmatprep.subr.mxu0 0.0
        %1341 = vmatpush1.msra.mxu0 0.0
        %1342 = vmatprep.subr.mxu0 0.0
        %1343 = vmatpush1.msra.mxu0 0.0
        %1344 = vmatprep.subr.mxu0 0.0
        %1345 = vmatpush1.msra.mxu0 0.0
        %1346 = vmatprep.subr.mxu0 0.0
        %1347 = vmatpush1.msra.mxu0 0.0
        %1348 = vmatprep.subr.mxu0 0.0
        %1349 = vmatpush1.msra.mxu0 0.0
        %1350 = vmatprep.subr.mxu0 0.0
        %1351 = vmatpush1.msra.mxu0 0.0
        %1352 = vmatprep.subr.mxu0 0.0
        %1353 = vmatpush1.msra.mxu0 0.0
        %1354 = vmatprep.subr.mxu0 0.0
        %1355 = vmatpush1.msra.mxu0 0.0
        %1356 = vmatprep.subr.mxu0 0.0
        %1357 = vmatpush1.msra.mxu0 0.0
        %1358 = vmatprep.subr.mxu0 0.0
        %1359 = vmatpush1.msra.mxu0 0.0
        %1360 = vmatprep.subr.mxu0 0.0
        %1361 = vmatpush1.msra.mxu0 0.0
        %1362 = vmatprep.subr.mxu0 0.0
        %1363 = vmatpush1.msra.mxu0 0.0
        %1364 = vmatprep.subr.mxu0 0.0
        %1365 = vmatpush1.msra.mxu0 0.0
        %1366 = vmatprep.mubr.f32.mxu0 0.0
        %1367 = vmatmul.mubr.f32.gmra.mrb[0].mxu0 %v1300
        %v1368 = vpop.f32.mrb[0].mxu0
        %v1369 = vadd.f32 0.0, %v1368
        %v1370 = vpop.f32.mrb[0].mxu0
        %1371 = vdwg.mxu0
        %1372 = vmatprep.subr.mxu0 0.0
        %1373 = vmatpush1.xpose.msra.mxu0 %v917
        %1374 = vmatprep.subr.mxu0 0.0
        %1375 = vmatpush1.xpose.msra.mxu0 0.0
        %1376 = vmatprep.subr.mxu0 0.0
        %1377 = vmatpush1.xpose.msra.mxu0 0.0
        %1378 = vmatprep.subr.mxu0 0.0
        %1379 = vmatpush1.xpose.msra.mxu0 0.0
        %1380 = vmatprep.subr.mxu0 0.0
        %1381 = vmatpush1.xpose.msra.mxu0 0.0
        %1382 = vmatprep.subr.mxu0 0.0
        %1383 = vmatpush1.xpose.msra.mxu0 0.0
        %1384 = vmatprep.subr.mxu0 0.0
        %1385 = vmatpush1.xpose.msra.mxu0 0.0
        %1386 = vmatprep.subr.mxu0 0.0
        %1387 = vmatpush1.xpose.msra.mxu0 0.0
        %1388 = vmatprep.subr.mxu0 0.0
        %1389 = vmatpush1.xpose.msra.mxu0 0.0
        %1390 = vmatprep.subr.mxu0 0.0
        %1391 = vmatpush1.xpose.msra.mxu0 0.0
        %1392 = vmatprep.subr.mxu0 0.0
        %1393 = vmatpush1.xpose.msra.mxu0 0.0
        %1394 = vmatprep.subr.mxu0 0.0
        %1395 = vmatpush1.xpose.msra.mxu0 0.0
        %1396 = vmatprep.subr.mxu0 0.0
        %1397 = vmatpush1.xpose.msra.mxu0 0.0
        %1398 = vmatprep.subr.mxu0 0.0
        %1399 = vmatpush1.xpose.msra.mxu0 0.0
        %1400 = vmatprep.subr.mxu0 0.0
        %1401 = vmatpush1.xpose.msra.mxu0 0.0
        %1402 = vmatprep.subr.mxu0 0.0
        %1403 = vmatpush1.xpose.msra.mxu0 0.0
        %1404 = vmatprep.subr.mxu0 0.0
        %1405 = vmatpush1.xpose.msra.mxu0 0.0
        %1406 = vmatprep.subr.mxu0 0.0
        %1407 = vmatpush1.xpose.msra.mxu0 0.0
        %1408 = vmatprep.subr.mxu0 0.0
        %1409 = vmatpush1.xpose.msra.mxu0 0.0
        %1410 = vmatprep.subr.mxu0 0.0
        %1411 = vmatpush1.xpose.msra.mxu0 0.0
        %1412 = vmatprep.subr.mxu0 0.0
        %1413 = vmatpush1.xpose.msra.mxu0 0.0
        %1414 = vmatprep.subr.mxu0 0.0
        %1415 = vmatpush1.xpose.msra.mxu0 0.0
        %1416 = vmatprep.subr.mxu0 0.0
        %1417 = vmatpush1.xpose.msra.mxu0 0.0
        %1418 = vmatprep.subr.mxu0 0.0
        %1419 = vmatpush1.xpose.msra.mxu0 0.0
        %1420 = vmatprep.subr.mxu0 0.0
        %1421 = vmatpush1.xpose.msra.mxu0 0.0
        %1422 = vmatprep.subr.mxu0 0.0
        %1423 = vmatpush1.xpose.msra.mxu0 0.0
        %1424 = vmatprep.subr.mxu0 0.0
        %1425 = vmatpush1.xpose.msra.mxu0 0.0
        %1426 = vmatprep.subr.mxu0 0.0
        %1427 = vmatpush1.xpose.msra.mxu0 0.0
        %1428 = vmatprep.subr.mxu0 0.0
        %1429 = vmatpush1.xpose.msra.mxu0 0.0
        %1430 = vmatprep.subr.mxu0 0.0
        %1431 = vmatpush1.xpose.msra.mxu0 0.0
        %1432 = vmatprep.subr.mxu0 0.0
        %1433 = vmatpush1.xpose.msra.mxu0 0.0
        %1434 = vmatprep.subr.mxu0 0.0
        %1435 = vmatpush1.xpose.msra.mxu0 0.0
        %1436 = vmatprep.mubr.f32.mxu0 0.0
        %1437 = vmatmul.mubr.f32.gmra.mrb[0].mxu0 %v775
        %v1438 = vpop.f32.mrb[0].mxu0
        %v1439 = vadd.f32 0.0, %v1438
        %v1440 = vpop.f32.mrb[0].mxu0
        %1441 = vdwg.mxu0
        %v1442 = vsel %vm1133, %v1439, -inf
        %1443 = vmax.xlane.f32.xlu0 %v1442
        %v1444 = vpop.xlane.xlu0 %1443
        %v1445 = vsub.f32 %v1439, %v1444
        %v1446 = vmul.f32 %v1445, 1.442695
        %v1447 = vpow.pop %v1446
        %v1448 = vsel %vm1133, %v1447, 0.0
        %1449 = vadd.xlane.f32.xlu0 %v1448
        %v1450 = vpop.xlane.xlu0 %1449
        %v1451 = vrcp.pop %v1450
        %v1452 = vmul.f32 %v1447, %v1451
        %v1454 = vsel %vm1133, %v1452, 0
        %1456 = vmatprep.subr.mxu0 0.0
        %1457 = vmatpush1.msra.mxu0 %v1059
        %1458 = vmatprep.subr.mxu0 0.0
        %1459 = vmatpush1.msra.mxu0 0.0
        %1460 = vmatprep.subr.mxu0 0.0
        %1461 = vmatpush1.msra.mxu0 0.0
        %1462 = vmatprep.subr.mxu0 0.0
        %1463 = vmatpush1.msra.mxu0 0.0
        %1464 = vmatprep.subr.mxu0 0.0
        %1465 = vmatpush1.msra.mxu0 0.0
        %1466 = vmatprep.subr.mxu0 0.0
        %1467 = vmatpush1.msra.mxu0 0.0
        %1468 = vmatprep.subr.mxu0 0.0
        %1469 = vmatpush1.msra.mxu0 0.0
        %1470 = vmatprep.subr.mxu0 0.0
        %1471 = vmatpush1.msra.mxu0 0.0
        %1472 = vmatprep.subr.mxu0 0.0
        %1473 = vmatpush1.msra.mxu0 0.0
        %1474 = vmatprep.subr.mxu0 0.0
        %1475 = vmatpush1.msra.mxu0 0.0
        %1476 = vmatprep.subr.mxu0 0.0
        %1477 = vmatpush1.msra.mxu0 0.0
        %1478 = vmatprep.subr.mxu0 0.0
        %1479 = vmatpush1.msra.mxu0 0.0
        %1480 = vmatprep.subr.mxu0 0.0
        %1481 = vmatpush1.msra.mxu0 0.0
        %1482 = vmatprep.subr.mxu0 0.0
        %1483 = vmatpush1.msra.mxu0 0.0
        %1484 = vmatprep.subr.mxu0 0.0
        %1485 = vmatpush1.msra.mxu0 0.0
        %1486 = vmatprep.subr.mxu0 0.0
        %1487 = vmatpush1.msra.mxu0 0.0
        %1488 = vmatprep.subr.mxu0 0.0
        %1489 = vmatpush1.msra.mxu0 0.0
        %1490 = vmatprep.subr.mxu0 0.0
        %1491 = vmatpush1.msra.mxu0 0.0
        %1492 = vmatprep.subr.mxu0 0.0
        %1493 = vmatpush1.msra.mxu0 0.0
        %1494 = vmatprep.subr.mxu0 0.0
        %1495 = vmatpush1.msra.mxu0 0.0
        %1496 = vmatprep.subr.mxu0 0.0
        %1497 = vmatpush1.msra.mxu0 0.0
        %1498 = vmatprep.subr.mxu0 0.0
        %1499 = vmatpush1.msra.mxu0 0.0
        %1500 = vmatprep.subr.mxu0 0.0
        %1501 = vmatpush1.msra.mxu0 0.0
        %1502 = vmatprep.subr.mxu0 0.0
        %1503 = vmatpush1.msra.mxu0 0.0
        %1504 = vmatprep.subr.mxu0 0.0
        %1505 = vmatpush1.msra.mxu0 0.0
        %1506 = vmatprep.subr.mxu0 0.0
        %1507 = vmatpush1.msra.mxu0 0.0
        %1508 = vmatprep.subr.mxu0 0.0
        %1509 = vmatpush1.msra.mxu0 0.0
        %1510 = vmatprep.subr.mxu0 0.0
        %1511 = vmatpush1.msra.mxu0 0.0
        %1512 = vmatprep.subr.mxu0 0.0
        %1513 = vmatpush1.msra.mxu0 0.0
        %1514 = vmatprep.subr.mxu0 0.0
        %1515 = vmatpush1.msra.mxu0 0.0
        %1516 = vmatprep.subr.mxu0 0.0
        %1517 = vmatpush1.msra.mxu0 0.0
        %1518 = vmatprep.subr.mxu0 0.0
        %1519 = vmatpush1.msra.mxu0 0.0
        %1520 = vmatprep.mubr.f32.mxu0 0.0
        %1521 = vmatmul.mubr.f32.gmra.mrb[0].mxu0 %v1454
        %v1522 = vpop.f32.mrb[0].mxu0
        %v1523 = vadd.f32 0.0, %v1522
        %v1524 = vpop.f32.mrb[0].mxu0
        %1525 = vdwg.mxu0
        %1526 = vmatprep.subr.mxu0 0.0
        %1527 = vmatpush1.xpose.msra.mxu0 %v919
        %1528 = vmatprep.subr.mxu0 0.0
        %1529 = vmatpush1.xpose.msra.mxu0 0.0
        %1530 = vmatprep.subr.mxu0 0.0
        %1531 = vmatpush1.xpose.msra.mxu0 0.0
        %1532 = vmatprep.subr.mxu0 0.0
        %1533 = vmatpush1.xpose.msra.mxu0 0.0
        %1534 = vmatprep.subr.mxu0 0.0
        %1535 = vmatpush1.xpose.msra.mxu0 0.0
        %1536 = vmatprep.subr.mxu0 0.0
        %1537 = vmatpush1.xpose.msra.mxu0 0.0
        %1538 = vmatprep.subr.mxu0 0.0
        %1539 = vmatpush1.xpose.msra.mxu0 0.0
        %1540 = vmatprep.subr.mxu0 0.0
        %1541 = vmatpush1.xpose.msra.mxu0 0.0
        %1542 = vmatprep.subr.mxu0 0.0
        %1543 = vmatpush1.xpose.msra.mxu0 0.0
        %1544 = vmatprep.subr.mxu0 0.0
        %1545 = vmatpush1.xpose.msra.mxu0 0.0
        %1546 = vmatprep.subr.mxu0 0.0
        %1547 = vmatpush1.xpose.msra.mxu0 0.0
        %1548 = vmatprep.subr.mxu0 0.0
        %1549 = vmatpush1.xpose.msra.mxu0 0.0
        %1550 = vmatprep.subr.mxu0 0.0
        %1551 = vmatpush1.xpose.msra.mxu0 0.0
        %1552 = vmatprep.subr.mxu0 0.0
        %1553 = vmatpush1.xpose.msra.mxu0 0.0
        %1554 = vmatprep.subr.mxu0 0.0
        %1555 = vmatpush1.xpose.msra.mxu0 0.0
        %1556 = vmatprep.subr.mxu0 0.0
        %1557 = vmatpush1.xpose.msra.mxu0 0.0
        %1558 = vmatprep.subr.mxu0 0.0
        %1559 = vmatpush1.xpose.msra.mxu0 0.0
        %1560 = vmatprep.subr.mxu0 0.0
        %1561 = vmatpush1.xpose.msra.mxu0 0.0
        %1562 = vmatprep.subr.mxu0 0.0
        %1563 = vmatpush1.xpose.msra.mxu0 0.0
        %1564 = vmatprep.subr.mxu0 0.0
        %1565 = vmatpush1.xpose.msra.mxu0 0.0
        %1566 = vmatprep.subr.mxu0 0.0
        %1567 = vmatpush1.xpose.msra.mxu0 0.0
        %1568 = vmatprep.subr.mxu0 0.0
        %1569 = vmatpush1.xpose.msra.mxu0 0.0
        %1570 = vmatprep.subr.mxu0 0.0
        %1571 = vmatpush1.xpose.msra.mxu0 0.0
        %1572 = vmatprep.subr.mxu0 0.0
        %1573 = vmatpush1.xpose.msra.mxu0 0.0
        %1574 = vmatprep.subr.mxu0 0.0
        %1575 = vmatpush1.xpose.msra.mxu0 0.0
        %1576 = vmatprep.subr.mxu0 0.0
        %1577 = vmatpush1.xpose.msra.mxu0 0.0
        %1578 = vmatprep.subr.mxu0 0.0
        %1579 = vmatpush1.xpose.msra.mxu0 0.0
        %1580 = vmatprep.subr.mxu0 0.0
        %1581 = vmatpush1.xpose.msra.mxu0 0.0
        %1582 = vmatprep.subr.mxu0 0.0
        %1583 = vmatpush1.xpose.msra.mxu0 0.0
        %1584 = vmatprep.subr.mxu0 0.0
        %1585 = vmatpush1.xpose.msra.mxu0 0.0
        %1586 = vmatprep.subr.mxu0 0.0
        %1587 = vmatpush1.xpose.msra.mxu0 0.0
        %1588 = vmatprep.subr.mxu0 0.0
        %1589 = vmatpush1.xpose.msra.mxu0 0.0
        %1590 = vmatprep.mubr.f32.mxu0 0.0
        %1591 = vmatmul.mubr.f32.gmra.mrb[0].mxu0 %v777
        %v1592 = vpop.f32.mrb[0].mxu0
        %v1593 = vadd.f32 0.0, %v1592
        %v1594 = vpop.f32.mrb[0].mxu0
        %1595 = vdwg.mxu0
        %v1596 = vsel %vm1133, %v1593, -inf
        %1597 = vmax.xlane.f32.xlu0 %v1596
        %v1598 = vpop.xlane.xlu0 %1597
        %v1599 = vsub.f32 %v1593, %v1598
        %v1600 = vmul.f32 %v1599, 1.442695
        %v1601 = vpow.pop %v1600
        %v1602 = vsel %vm1133, %v1601, 0.0
        %1603 = vadd.xlane.f32.xlu0 %v1602
        %v1604 = vpop.xlane.xlu0 %1603
        %v1605 = vrcp.pop %v1604
        %v1606 = vmul.f32 %v1601, %v1605
        %v1608 = vsel %vm1133, %v1606, 0
        %1610 = vmatprep.subr.mxu0 0.0
        %1611 = vmatpush1.msra.mxu0 %v1061
        %1612 = vmatprep.subr.mxu0 0.0
        %1613 = vmatpush1.msra.mxu0 0.0
        %1614 = vmatprep.subr.mxu0 0.0
        %1615 = vmatpush1.msra.mxu0 0.0
        %1616 = vmatprep.subr.mxu0 0.0
        %1617 = vmatpush1.msra.mxu0 0.0
        %1618 = vmatprep.subr.mxu0 0.0
        %1619 = vmatpush1.msra.mxu0 0.0
        %1620 = vmatprep.subr.mxu0 0.0
        %1621 = vmatpush1.msra.mxu0 0.0
        %1622 = vmatprep.subr.mxu0 0.0
        %1623 = vmatpush1.msra.mxu0 0.0
        %1624 = vmatprep.subr.mxu0 0.0
        %1625 = vmatpush1.msra.mxu0 0.0
        %1626 = vmatprep.subr.mxu0 0.0
        %1627 = vmatpush1.msra.mxu0 0.0
        %1628 = vmatprep.subr.mxu0 0.0
        %1629 = vmatpush1.msra.mxu0 0.0
        %1630 = vmatprep.subr.mxu0 0.0
        %1631 = vmatpush1.msra.mxu0 0.0
        %1632 = vmatprep.subr.mxu0 0.0
        %1633 = vmatpush1.msra.mxu0 0.0
        %1634 = vmatprep.subr.mxu0 0.0
        %1635 = vmatpush1.msra.mxu0 0.0
        %1636 = vmatprep.subr.mxu0 0.0
        %1637 = vmatpush1.msra.mxu0 0.0
        %1638 = vmatprep.subr.mxu0 0.0
        %1639 = vmatpush1.msra.mxu0 0.0
        %1640 = vmatprep.subr.mxu0 0.0
        %1641 = vmatpush1.msra.mxu0 0.0
        %1642 = vmatprep.subr.mxu0 0.0
        %1643 = vmatpush1.msra.mxu0 0.0
        %1644 = vmatprep.subr.mxu0 0.0
        %1645 = vmatpush1.msra.mxu0 0.0
        %1646 = vmatprep.subr.mxu0 0.0
        %1647 = vmatpush1.msra.mxu0 0.0
        %1648 = vmatprep.subr.mxu0 0.0
        %1649 = vmatpush1.msra.mxu0 0.0
        %1650 = vmatprep.subr.mxu0 0.0
        %1651 = vmatpush1.msra.mxu0 0.0
        %1652 = vmatprep.subr.mxu0 0.0
        %1653 = vmatpush1.msra.mxu0 0.0
        %1654 = vmatprep.subr.mxu0 0.0
        %1655 = vmatpush1.msra.mxu0 0.0
        %1656 = vmatprep.subr.mxu0 0.0
        %1657 = vmatpush1.msra.mxu0 0.0
        %1658 = vmatprep.subr.mxu0 0.0
        %1659 = vmatpush1.msra.mxu0 0.0
        %1660 = vmatprep.subr.mxu0 0.0
        %1661 = vmatpush1.msra.mxu0 0.0
        %1662 = vmatprep.subr.mxu0 0.0
        %1663 = vmatpush1.msra.mxu0 0.0
        %1664 = vmatprep.subr.mxu0 0.0
        %1665 = vmatpush1.msra.mxu0 0.0
        %1666 = vmatprep.subr.mxu0 0.0
        %1667 = vmatpush1.msra.mxu0 0.0
        %1668 = vmatprep.subr.mxu0 0.0
        %1669 = vmatpush1.msra.mxu0 0.0
        %1670 = vmatprep.subr.mxu0 0.0
        %1671 = vmatpush1.msra.mxu0 0.0
        %1672 = vmatprep.subr.mxu0 0.0
        %1673 = vmatpush1.msra.mxu0 0.0
        %1674 = vmatprep.mubr.f32.mxu0 0.0
        %1675 = vmatmul.mubr.f32.gmra.mrb[0].mxu0 %v1608
        %v1676 = vpop.f32.mrb[0].mxu0
        %v1677 = vadd.f32 0.0, %v1676
        %v1678 = vpop.f32.mrb[0].mxu0
        %1679 = vdwg.mxu0
        %v1680 = vld [vmem:[#allocation4] sm:$0xff]
        %v1681 = vld [vmem:[#allocation4 + $0x8] sm:$0xff]
        %v1682 = vld [vmem:[#allocation4 + $0x10] sm:$0xff]
        %v1683 = vld [vmem:[#allocation4 + $0x18] sm:$0xff]
        %v1684 = vld [vmem:[#allocation4 + $0x20] sm:$0xff]
        %v1685 = vld [vmem:[#allocation4 + $0x28] sm:$0xff]
        %v1686 = vld [vmem:[#allocation4 + $0x30] sm:$0xff]
        %v1687 = vld [vmem:[#allocation4 + $0x38] sm:$0xff]
        %v1688 = vld [vmem:[#allocation4 + $0x40] sm:$0xff]
        %v1689 = vld [vmem:[#allocation4 + $0x48] sm:$0xff]
        %v1690 = vld [vmem:[#allocation4 + $0x50] sm:$0xff]
        %v1691 = vld [vmem:[#allocation4 + $0x58] sm:$0xff]
        %v1692 = vld [vmem:[#allocation4 + $0x60] sm:$0xff]
        %v1693 = vld [vmem:[#allocation4 + $0x68] sm:$0xff]
        %v1694 = vld [vmem:[#allocation4 + $0x70] sm:$0xff]
        %v1695 = vld [vmem:[#allocation4 + $0x78] sm:$0xff]
        %v1696 = vld [vmem:[#allocation4 + $0x80] sm:$0xff]
        %v1697 = vld [vmem:[#allocation4 + $0x88] sm:$0xff]
        %v1698 = vld [vmem:[#allocation4 + $0x90] sm:$0xff]
        %v1699 = vld [vmem:[#allocation4 + $0x98] sm:$0xff]
        %v1700 = vld [vmem:[#allocation4 + $0xa0] sm:$0xff]
        %v1701 = vld [vmem:[#allocation4 + $0xa8] sm:$0xff]
        %v1702 = vld [vmem:[#allocation4 + $0xb0] sm:$0xff]
        %v1703 = vld [vmem:[#allocation4 + $0xb8] sm:$0xff]
        %v1704 = vld [vmem:[#allocation4 + $0xc0] sm:$0xff]
        %v1705 = vld [vmem:[#allocation4 + $0xc8] sm:$0xff]
        %v1706 = vld [vmem:[#allocation4 + $0xd0] sm:$0xff]
        %v1707 = vld [vmem:[#allocation4 + $0xd8] sm:$0xff]
        %v1708 = vld [vmem:[#allocation4 + $0xe0] sm:$0xff]
        %v1709 = vld [vmem:[#allocation4 + $0xe8] sm:$0xff]
        %v1710 = vld [vmem:[#allocation4 + $0xf0] sm:$0xff]
        %v1711 = vld [vmem:[#allocation4 + $0xf8] sm:$0xff]
        %v1712 = vld [vmem:[#allocation4 + $0x100] sm:$0xff]
        %v1713 = vld [vmem:[#allocation4 + $0x108] sm:$0xff]
        %v1714 = vld [vmem:[#allocation4 + $0x110] sm:$0xff]
        %v1715 = vld [vmem:[#allocation4 + $0x118] sm:$0xff]
        %v1716 = vld [vmem:[#allocation4 + $0x120] sm:$0xff]
        %v1717 = vld [vmem:[#allocation4 + $0x128] sm:$0xff]
        %v1718 = vld [vmem:[#allocation4 + $0x130] sm:$0xff]
        %v1719 = vld [vmem:[#allocation4 + $0x138] sm:$0xff]
        %v1720 = vld [vmem:[#allocation4 + $0x140] sm:$0xff]
        %v1721 = vld [vmem:[#allocation4 + $0x148] sm:$0xff]
        %v1722 = vld [vmem:[#allocation4 + $0x150] sm:$0xff]
        %v1723 = vld [vmem:[#allocation4 + $0x158] sm:$0xff]
        %v1724 = vld [vmem:[#allocation4 + $0x160] sm:$0xff]
        %v1725 = vld [vmem:[#allocation4 + $0x168] sm:$0xff]
        %v1726 = vld [vmem:[#allocation4 + $0x170] sm:$0xff]
        %v1727 = vld [vmem:[#allocation4 + $0x178] sm:$0xff]
        %v1728 = vld [vmem:[#allocation4 + $0x180] sm:$0xff]
        %v1729 = vld [vmem:[#allocation4 + $0x188] sm:$0xff]
        %v1730 = vld [vmem:[#allocation4 + $0x190] sm:$0xff]
        %v1731 = vld [vmem:[#allocation4 + $0x198] sm:$0xff]
        %v1732 = vld [vmem:[#allocation4 + $0x1a0] sm:$0xff]
        %v1733 = vld [vmem:[#allocation4 + $0x1a8] sm:$0xff]
        %v1734 = vld [vmem:[#allocation4 + $0x1b0] sm:$0xff]
        %v1735 = vld [vmem:[#allocation4 + $0x1b8] sm:$0xff]
        %v1736 = vld [vmem:[#allocation4 + $0x1c0] sm:$0xff]
        %v1737 = vld [vmem:[#allocation4 + $0x1c8] sm:$0xff]
        %v1738 = vld [vmem:[#allocation4 + $0x1d0] sm:$0xff]
        %v1739 = vld [vmem:[#allocation4 + $0x1d8] sm:$0xff]
        %v1740 = vld [vmem:[#allocation4 + $0x1e0] sm:$0xff]
        %v1741 = vld [vmem:[#allocation4 + $0x1e8] sm:$0xff]
        %v1742 = vld [vmem:[#allocation4 + $0x1f0] sm:$0xff]
        %v1743 = vld [vmem:[#allocation4 + $0x1f8] sm:$0xff]
        %v1744 = vld [vmem:[%s3] sm:$0x1]
        %v1746 = vlaneseq
        %v1747 = vshrl.u32 %v1746, 7
        %v1748 = vsub.s32 0, %v1747
        %v1749 = vrot.slane %v1744, %v1748
        %1751 = vmatprep.subr.mxu0 0.0
        %1752 = vmatpush1.msra.mxu0 %v1680
        %1753 = vmatprep.subr.mxu0 0.0
        %1754 = vmatpush1.msra.mxu0 %v1681
        %1755 = vmatprep.subr.mxu0 0.0
        %1756 = vmatpush1.msra.mxu0 %v1682
        %1757 = vmatprep.subr.mxu0 0.0
        %1758 = vmatpush1.msra.mxu0 %v1683
        %1759 = vmatprep.subr.mxu0 0.0
        %1760 = vmatpush1.msra.mxu0 %v1684
        %1761 = vmatprep.subr.mxu0 0.0
        %1762 = vmatpush1.msra.mxu0 %v1685
        %1763 = vmatprep.subr.mxu0 0.0
        %1764 = vmatpush1.msra.mxu0 %v1686
        %1765 = vmatprep.subr.mxu0 0.0
        %1766 = vmatpush1.msra.mxu0 %v1687
        %1767 = vmatprep.subr.mxu0 0.0
        %1768 = vmatpush1.msra.mxu0 %v1688
        %1769 = vmatprep.subr.mxu0 0.0
        %1770 = vmatpush1.msra.mxu0 %v1689
        %1771 = vmatprep.subr.mxu0 0.0
        %1772 = vmatpush1.msra.mxu0 %v1690
        %1773 = vmatprep.subr.mxu0 0.0
        %1774 = vmatpush1.msra.mxu0 %v1691
        %1775 = vmatprep.subr.mxu0 0.0
        %1776 = vmatpush1.msra.mxu0 %v1692
        %1777 = vmatprep.subr.mxu0 0.0
        %1778 = vmatpush1.msra.mxu0 %v1693
        %1779 = vmatprep.subr.mxu0 0.0
        %1780 = vmatpush1.msra.mxu0 %v1694
        %1781 = vmatprep.subr.mxu0 0.0
        %1782 = vmatpush1.msra.mxu0 %v1695
        %1783 = vmatprep.subr.mxu0 0.0
        %1784 = vmatpush1.msra.mxu0 %v1696
        %1785 = vmatprep.subr.mxu0 0.0
        %1786 = vmatpush1.msra.mxu0 %v1697
        %1787 = vmatprep.subr.mxu0 0.0
        %1788 = vmatpush1.msra.mxu0 %v1698
        %1789 = vmatprep.subr.mxu0 0.0
        %1790 = vmatpush1.msra.mxu0 %v1699
        %1791 = vmatprep.subr.mxu0 0.0
        %1792 = vmatpush1.msra.mxu0 %v1700
        %1793 = vmatprep.subr.mxu0 0.0
        %1794 = vmatpush1.msra.mxu0 %v1701
        %1795 = vmatprep.subr.mxu0 0.0
        %1796 = vmatpush1.msra.mxu0 %v1702
        %1797 = vmatprep.subr.mxu0 0.0
        %1798 = vmatpush1.msra.mxu0 %v1703
        %1799 = vmatprep.subr.mxu0 0.0
        %1800 = vmatpush1.msra.mxu0 %v1704
        %1801 = vmatprep.subr.mxu0 0.0
        %1802 = vmatpush1.msra.mxu0 %v1705
        %1803 = vmatprep.subr.mxu0 0.0
        %1804 = vmatpush1.msra.mxu0 %v1706
        %1805 = vmatprep.subr.mxu0 0.0
        %1806 = vmatpush1.msra.mxu0 %v1707
        %1807 = vmatprep.subr.mxu0 0.0
        %1808 = vmatpush1.msra.mxu0 %v1708
        %1809 = vmatprep.subr.mxu0 0.0
        %1810 = vmatpush1.msra.mxu0 %v1709
        %1811 = vmatprep.subr.mxu0 0.0
        %1812 = vmatpush1.msra.mxu0 %v1710
        %1813 = vmatprep.subr.mxu0 0.0
        %1814 = vmatpush1.msra.mxu0 %v1711
        %1815 = vmatprep.mubr.f32.mxu0 %v1369
        %1816 = vmatmul.mubr.f32.gmra.mrb[0].mxu0 %v1215
        %v1817 = vpop.f32.mrb[0].mxu0
        %v1818 = vadd.f32 %v1749, %v1817
        %v1819 = vpop.f32.mrb[0].mxu0
        %1820 = vdwg.mxu0
        %1821 = vmatprep.subr.mxu0 0.0
        %1822 = vmatpush1.msra.mxu0 %v1712
        %1823 = vmatprep.subr.mxu0 0.0
        %1824 = vmatpush1.msra.mxu0 %v1713
        %1825 = vmatprep.subr.mxu0 0.0
        %1826 = vmatpush1.msra.mxu0 %v1714
        %1827 = vmatprep.subr.mxu0 0.0
        %1828 = vmatpush1.msra.mxu0 %v1715
        %1829 = vmatprep.subr.mxu0 0.0
        %1830 = vmatpush1.msra.mxu0 %v1716
        %1831 = vmatprep.subr.mxu0 0.0
        %1832 = vmatpush1.msra.mxu0 %v1717
        %1833 = vmatprep.subr.mxu0 0.0
        %1834 = vmatpush1.msra.mxu0 %v1718
        %1835 = vmatprep.subr.mxu0 0.0
        %1836 = vmatpush1.msra.mxu0 %v1719
        %1837 = vmatprep.subr.mxu0 0.0
        %1838 = vmatpush1.msra.mxu0 %v1720
        %1839 = vmatprep.subr.mxu0 0.0
        %1840 = vmatpush1.msra.mxu0 %v1721
        %1841 = vmatprep.subr.mxu0 0.0
        %1842 = vmatpush1.msra.mxu0 %v1722
        %1843 = vmatprep.subr.mxu0 0.0
        %1844 = vmatpush1.msra.mxu0 %v1723
        %1845 = vmatprep.subr.mxu0 0.0
        %1846 = vmatpush1.msra.mxu0 %v1724
        %1847 = vmatprep.subr.mxu0 0.0
        %1848 = vmatpush1.msra.mxu0 %v1725
        %1849 = vmatprep.subr.mxu0 0.0
        %1850 = vmatpush1.msra.mxu0 %v1726
        %1851 = vmatprep.subr.mxu0 0.0
        %1852 = vmatpush1.msra.mxu0 %v1727
        %1853 = vmatprep.subr.mxu0 0.0
        %1854 = vmatpush1.msra.mxu0 %v1728
        %1855 = vmatprep.subr.mxu0 0.0
        %1856 = vmatpush1.msra.mxu0 %v1729
        %1857 = vmatprep.subr.mxu0 0.0
        %1858 = vmatpush1.msra.mxu0 %v1730
        %1859 = vmatprep.subr.mxu0 0.0
        %1860 = vmatpush1.msra.mxu0 %v1731
        %1861 = vmatprep.subr.mxu0 0.0
        %1862 = vmatpush1.msra.mxu0 %v1732
        %1863 = vmatprep.subr.mxu0 0.0
        %1864 = vmatpush1.msra.mxu0 %v1733
        %1865 = vmatprep.subr.mxu0 0.0
        %1866 = vmatpush1.msra.mxu0 %v1734
        %1867 = vmatprep.subr.mxu0 0.0
        %1868 = vmatpush1.msra.mxu0 %v1735
        %1869 = vmatprep.subr.mxu0 0.0
        %1870 = vmatpush1.msra.mxu0 %v1736
        %1871 = vmatprep.subr.mxu0 0.0
        %1872 = vmatpush1.msra.mxu0 %v1737
        %1873 = vmatprep.subr.mxu0 0.0
        %1874 = vmatpush1.msra.mxu0 %v1738
        %1875 = vmatprep.subr.mxu0 0.0
        %1876 = vmatpush1.msra.mxu0 %v1739
        %1877 = vmatprep.subr.mxu0 0.0
        %1878 = vmatpush1.msra.mxu0 %v1740
        %1879 = vmatprep.subr.mxu0 0.0
        %1880 = vmatpush1.msra.mxu0 %v1741
        %1881 = vmatprep.subr.mxu0 0.0
        %1882 = vmatpush1.msra.mxu0 %v1742
        %1883 = vmatprep.subr.mxu0 0.0
        %1884 = vmatpush1.msra.mxu0 %v1743
        %1885 = vmatprep.mubr.f32.mxu0 %v1677
        %1886 = vmatmul.mubr.f32.gmra.mrb[0].mxu0 %v1523
        %v1887 = vpop.f32.mrb[0].mxu0
        %v1888 = vadd.f32 %v1818, %v1887
        %v1889 = vpop.f32.mrb[0].mxu0
        %1890 = vdwg.mxu0
        %v1891 = vadd.f32 %v1888, %v439
        %v1892 = vld [vmem:[%s4] sm:$0x1]
        %v1893 = vld [vmem:[%s5] sm:$0x1]
        %1894 = vadd.xlane.f32.xlu0 %v1891
        %v1895 = vpop.xlane.xlu0 %1894
        %v1896 = vmul.f32 %v1895, 0.03125
        %v1897 = vsub.f32 %v1891, %v1896
        %v1898 = vmul.f32 %v1897, %v444
        %v1899 = vmul.f32 %v1898, %v1898
        %1900 = vadd.xlane.f32.xlu0 %v1899
        %v1901 = vpop.xlane.xlu0 %1900
        %v1902 = vmul.f32 %v1901, 0.03125
        %v1903 = vadd.f32 %v1902, 1e-05
        %v1904 = vrsqrt.pop %v1903
        %v1905 = vmul.f32 %v1898, %v1904
        %v1907 = vlaneseq
        %v1908 = vshrl.u32 %v1907, 7
        %v1909 = vsub.s32 0, %v1908
        %v1910 = vrot.slane %v1892, %v1909
        %v1912 = vmul.f32 %v1905, %v1910
        %v1914 = vlaneseq
        %v1915 = vshrl.u32 %v1914, 7
        %v1916 = vsub.s32 0, %v1915
        %v1917 = vrot.slane %v1893, %v1916
        %v1919 = vadd.f32 %v1912, %v1917
        %v1920 = vld [vmem:[%s6] sm:$0xff]
        %v1921 = vld [vmem:[%s6 + $0x8] sm:$0xff]
        %v1922 = vld [vmem:[%s6 + $0x10] sm:$0xff]
        %v1923 = vld [vmem:[%s6 + $0x18] sm:$0xff]
        %v1924 = vld [vmem:[%s6 + $0x20] sm:$0xff]
        %v1925 = vld [vmem:[%s6 + $0x28] sm:$0xff]
        %v1926 = vld [vmem:[%s6 + $0x30] sm:$0xff]
        %v1927 = vld [vmem:[%s6 + $0x38] sm:$0xff]
        %v1928 = vld [vmem:[%s6 + $0x40] sm:$0xff]
        %v1929 = vld [vmem:[%s6 + $0x48] sm:$0xff]
        %v1930 = vld [vmem:[%s6 + $0x50] sm:$0xff]
        %v1931 = vld [vmem:[%s6 + $0x58] sm:$0xff]
        %v1932 = vld [vmem:[%s6 + $0x60] sm:$0xff]
        %v1933 = vld [vmem:[%s6 + $0x68] sm:$0xff]
        %v1934 = vld [vmem:[%s6 + $0x70] sm:$0xff]
        %v1935 = vld [vmem:[%s6 + $0x78] sm:$0xff]
        %v1936 = vld [vmem:[%s7] sm:$0x1]
        %v1938 = vlaneseq
        %v1939 = vshrl.u32 %v1938, 7
        %v1940 = vsub.s32 0, %v1939
        %v1941 = vrot.slane %v1936, %v1940
        %1943 = vmatprep.subr.mxu0 0.0
        %1944 = vmatpush1.msra.mxu0 %v1920
        %1945 = vmatprep.subr.mxu0 0.0
        %1946 = vmatpush1.msra.mxu0 %v1921
        %1947 = vmatprep.subr.mxu0 0.0
        %1948 = vmatpush1.msra.mxu0 %v1922
        %1949 = vmatprep.subr.mxu0 0.0
        %1950 = vmatpush1.msra.mxu0 %v1923
        %1951 = vmatprep.subr.mxu0 0.0
        %1952 = vmatpush1.msra.mxu0 %v1924
        %1953 = vmatprep.subr.mxu0 0.0
        %1954 = vmatpush1.msra.mxu0 %v1925
        %1955 = vmatprep.subr.mxu0 0.0
        %1956 = vmatpush1.msra.mxu0 %v1926
        %1957 = vmatprep.subr.mxu0 0.0
        %1958 = vmatpush1.msra.mxu0 %v1927
        %1959 = vmatprep.subr.mxu0 0.0
        %1960 = vmatpush1.msra.mxu0 %v1928
        %1961 = vmatprep.subr.mxu0 0.0
        %1962 = vmatpush1.msra.mxu0 %v1929
        %1963 = vmatprep.subr.mxu0 0.0
        %1964 = vmatpush1.msra.mxu0 %v1930
        %1965 = vmatprep.subr.mxu0 0.0
        %1966 = vmatpush1.msra.mxu0 %v1931
        %1967 = vmatprep.subr.mxu0 0.0
        %1968 = vmatpush1.msra.mxu0 %v1932
        %1969 = vmatprep.subr.mxu0 0.0
        %1970 = vmatpush1.msra.mxu0 %v1933
        %1971 = vmatprep.subr.mxu0 0.0
        %1972 = vmatpush1.msra.mxu0 %v1934
        %1973 = vmatprep.subr.mxu0 0.0
        %1974 = vmatpush1.msra.mxu0 %v1935
        %1975 = vmatprep.subr.mxu0 0.0
        %1976 = vmatpush1.msra.mxu0 0.0
        %1977 = vmatprep.subr.mxu0 0.0
        %1978 = vmatpush1.msra.mxu0 0.0
        %1979 = vmatprep.subr.mxu0 0.0
        %1980 = vmatpush1.msra.mxu0 0.0
        %1981 = vmatprep.subr.mxu0 0.0
        %1982 = vmatpush1.msra.mxu0 0.0
        %1983 = vmatprep.subr.mxu0 0.0
        %1984 = vmatpush1.msra.mxu0 0.0
        %1985 = vmatprep.subr.mxu0 0.0
        %1986 = vmatpush1.msra.mxu0 0.0
        %1987 = vmatprep.subr.mxu0 0.0
        %1988 = vmatpush1.msra.mxu0 0.0
        %1989 = vmatprep.subr.mxu0 0.0
        %1990 = vmatpush1.msra.mxu0 0.0
        %1991 = vmatprep.subr.mxu0 0.0
        %1992 = vmatpush1.msra.mxu0 0.0
        %1993 = vmatprep.subr.mxu0 0.0
        %1994 = vmatpush1.msra.mxu0 0.0
        %1995 = vmatprep.subr.mxu0 0.0
        %1996 = vmatpush1.msra.mxu0 0.0
        %1997 = vmatprep.subr.mxu0 0.0
        %1998 = vmatpush1.msra.mxu0 0.0
        %1999 = vmatprep.subr.mxu0 0.0
        %2000 = vmatpush1.msra.mxu0 0.0
        %2001 = vmatprep.subr.mxu0 0.0
        %2002 = vmatpush1.msra.mxu0 0.0
        %2003 = vmatprep.subr.mxu0 0.0
        %2004 = vmatpush1.msra.mxu0 0.0
        %2005 = vmatprep.subr.mxu0 0.0
        %2006 = vmatpush1.msra.mxu0 0.0
        %2007 = vmatprep.mubr.f32.mxu0 0.0
        %2008 = vmatmul.mubr.f32.gmra.mrb[0].mxu0 %v1919
        %v2009 = vpop.f32.mrb[0].mxu0
        %v2010 = vadd.f32 %v1941, %v2009
        %v2011 = vpop.f32.mrb[0].mxu0
        %2012 = vdwg.mxu0
        %v2013 = vmax.f32 %v2010, 0.0
        %v2014 = vld [vmem:[%s8] sm:$0xff]
        %v2015 = vld [vmem:[%s8 + $0x8] sm:$0xff]
        %v2016 = vld [vmem:[%s8 + $0x10] sm:$0xff]
        %v2017 = vld [vmem:[%s8 + $0x18] sm:$0xff]
        %v2018 = vld [vmem:[%s8 + $0x20] sm:$0xff]
        %v2019 = vld [vmem:[%s8 + $0x28] sm:$0xff]
        %v2020 = vld [vmem:[%s8 + $0x30] sm:$0xff]
        %v2021 = vld [vmem:[%s8 + $0x38] sm:$0xff]
        %v2022 = vld [vmem:[%s8 + $0x40] sm:$0xff]
        %v2023 = vld [vmem:[%s8 + $0x48] sm:$0xff]
        %v2024 = vld [vmem:[%s8 + $0x50] sm:$0xff]
        %v2025 = vld [vmem:[%s8 + $0x58] sm:$0xff]
        %v2026 = vld [vmem:[%s8 + $0x60] sm:$0xff]
        %v2027 = vld [vmem:[%s8 + $0x68] sm:$0xff]
        %v2028 = vld [vmem:[%s8 + $0x70] sm:$0xff]
        %v2029 = vld [vmem:[%s8 + $0x78] sm:$0xff]
        %v2030 = vld [vmem:[%s9] sm:$0x1]
        %v2032 = vlaneseq
        %v2033 = vshrl.u32 %v2032, 7
        %v2034 = vsub.s32 0, %v2033
        %v2035 = vrot.slane %v2030, %v2034
        %2037 = vmatprep.subr.mxu0 0.0
        %2038 = vmatpush1.msra.mxu0 %v2014
        %2039 = vmatprep.subr.mxu0 0.0
        %2040 = vmatpush1.msra.mxu0 %v2015
        %2041 = vmatprep.subr.mxu0 0.0
        %2042 = vmatpush1.msra.mxu0 %v2016
        %2043 = vmatprep.subr.mxu0 0.0
        %2044 = vmatpush1.msra.mxu0 %v2017
        %2045 = vmatprep.subr.mxu0 0.0
        %2046 = vmatpush1.msra.mxu0 %v2018
        %2047 = vmatprep.subr.mxu0 0.0
        %2048 = vmatpush1.msra.mxu0 %v2019
        %2049 = vmatprep.subr.mxu0 0.0
        %2050 = vmatpush1.msra.mxu0 %v2020
        %2051 = vmatprep.subr.mxu0 0.0
        %2052 = vmatpush1.msra.mxu0 %v2021
        %2053 = vmatprep.subr.mxu0 0.0
        %2054 = vmatpush1.msra.mxu0 %v2022
        %2055 = vmatprep.subr.mxu0 0.0
        %2056 = vmatpush1.msra.mxu0 %v2023
        %2057 = vmatprep.subr.mxu0 0.0
        %2058 = vmatpush1.msra.mxu0 %v2024
        %2059 = vmatprep.subr.mxu0 0.0
        %2060 = vmatpush1.msra.mxu0 %v2025
        %2061 = vmatprep.subr.mxu0 0.0
        %2062 = vmatpush1.msra.mxu0 %v2026
        %2063 = vmatprep.subr.mxu0 0.0
        %2064 = vmatpush1.msra.mxu0 %v2027
        %2065 = vmatprep.subr.mxu0 0.0
        %2066 = vmatpush1.msra.mxu0 %v2028
        %2067 = vmatprep.subr.mxu0 0.0
        %2068 = vmatpush1.msra.mxu0 %v2029
        %2069 = vmatprep.subr.mxu0 0.0
        %2070 = vmatpush1.msra.mxu0 0.0
        %2071 = vmatprep.subr.mxu0 0.0
        %2072 = vmatpush1.msra.mxu0 0.0
        %2073 = vmatprep.subr.mxu0 0.0
        %2074 = vmatpush1.msra.mxu0 0.0
        %2075 = vmatprep.subr.mxu0 0.0
        %2076 = vmatpush1.msra.mxu0 0.0
        %2077 = vmatprep.subr.mxu0 0.0
        %2078 = vmatpush1.msra.mxu0 0.0
        %2079 = vmatprep.subr.mxu0 0.0
        %2080 = vmatpush1.msra.mxu0 0.0
        %2081 = vmatprep.subr.mxu0 0.0
        %2082 = vmatpush1.msra.mxu0 0.0
        %2083 = vmatprep.subr.mxu0 0.0
        %2084 = vmatpush1.msra.mxu0 0.0
        %2085 = vmatprep.subr.mxu0 0.0
        %2086 = vmatpush1.msra.mxu0 0.0
        %2087 = vmatprep.subr.mxu0 0.0
        %2088 = vmatpush1.msra.mxu0 0.0
        %2089 = vmatprep.subr.mxu0 0.0
        %2090 = vmatpush1.msra.mxu0 0.0
        %2091 = vmatprep.subr.mxu0 0.0
        %2092 = vmatpush1.msra.mxu0 0.0
        %2093 = vmatprep.subr.mxu0 0.0
        %2094 = vmatpush1.msra.mxu0 0.0
        %2095 = vmatprep.subr.mxu0 0.0
        %2096 = vmatpush1.msra.mxu0 0.0
        %2097 = vmatprep.subr.mxu0 0.0
        %2098 = vmatpush1.msra.mxu0 0.0
        %2099 = vmatprep.subr.mxu0 0.0
        %2100 = vmatpush1.msra.mxu0 0.0
        %2101 = vmatprep.mubr.f32.mxu0 0.0
        %2102 = vmatmul.mubr.f32.gmra.mrb[0].mxu0 %v2013
        %v2103 = vpop.f32.mrb[0].mxu0
        %v2104 = vadd.f32 %v2035, %v2103
        %v2105 = vpop.f32.mrb[0].mxu0
        %2106 = vdwg.mxu0
        %v2107 = vadd.f32 %v1919, %v2104
        %v2108 = vld [vmem:[%s10] sm:$0x1]
        %v2109 = vld [vmem:[%s11] sm:$0x1]
        %2110 = vadd.xlane.f32.xlu0 %v2107
        %v2111 = vpop.xlane.xlu0 %2110
        %v2112 = vmul.f32 %v2111, 0.03125
        %v2113 = vsub.f32 %v2107, %v2112
        %v2114 = vmul.f32 %v2113, %v444
        %v2115 = vmul.f32 %v2114, %v2114
        %2116 = vadd.xlane.f32.xlu0 %v2115
        %v2117 = vpop.xlane.xlu0 %2116
        %v2118 = vmul.f32 %v2117, 0.03125
        %v2119 = vadd.f32 %v2118, 1e-05
        %v2120 = vrsqrt.pop %v2119
        %v2121 = vmul.f32 %v2114, %v2120
        %v2123 = vlaneseq
        %v2124 = vshrl.u32 %v2123, 7
        %v2125 = vsub.s32 0, %v2124
        %v2126 = vrot.slane %v2108, %v2125
        %v2128 = vmul.f32 %v2121, %v2126
        %v2130 = vlaneseq
        %v2131 = vshrl.u32 %v2130, 7
        %v2132 = vsub.s32 0, %v2131
        %v2133 = vrot.slane %v2109, %v2132
        %v2135 = vadd.f32 %v2128, %v2133
        %2136 = vst [vmem:[%s438] sm:$0xff] %v2135
        %p2137 = scmp.lt.s32.totalorder %s25, 1
        %s2138 = scalar_select %p2137, %s25, 1
        %s2139 = smul.addr %s2138, 8
        %s2140 = scalar_lea.vmem %s12, %s2139
        // Predicated region
        $region77: #{_lambda_.2} parent=67 // pred_check
          %p2141 = pneg %p300
        $region78: #{_lambda_.2} parent=67 // pred_check_branch
          %2143 = sbr.rel (%p2141) target = $region80
        $region79: #{_lambda_.2} parent=67 // pred_region
          _
        $region80: #{_lambda_.2} parent=67 // pred_fallthru
          _
      $region68: #{_lambda_.2} parent=5 // pred_fallthru
        _
      %p2144 = scmp.le.s32.totalorder 2, %s20
      // Predicated region
      $region81: #{_lambda_.2} parent=5 // pred_check
        %p2145 = pneg %p2144
      $region82: #{_lambda_.2} parent=5 // pred_check_branch
        %2147 = sbr.rel (%p2145) target = $region84
      $region83: #{_lambda_.2} parent=5 // pred_region
        %s2148 = ssub.s32 %s20, 2
        // Predicated region
        $region85: #{_lambda_.2} parent=83 // pred_check
          %p2149 = pneg %p306
        $region86: #{_lambda_.2} parent=83 // pred_check_branch
          %2151 = sbr.rel (%p2149) target = $region88
        $region87: #{_lambda_.2} parent=83 // pred_region
          %p2152 = scmp.lt.s32.totalorder %s26, 1
          %s2153 = scalar_select %p2152, %s26, 1
          %s2154 = smul.addr %s2153, 8
          %s2155 = scalar_lea.vmem %s12, %s2154
        $region88: #{_lambda_.2} parent=83 // pred_fallthru
          _
      $region84: #{_lambda_.2} parent=5 // pred_fallthru
        _
    $region6: #{_lambda_.2} parent=1 // loop_footer
      %s24 = sadd.s32 1, %s20
    $region7: #{_lambda_.2} parent=1 // loop_footer_branch
      %19 = sbr.rel target = $region3
    $region8: #{_lambda_.2} parent=1 // loop_exit
      _
    %2156 = vsyncpa [#allocation3], 1
    %s2157 = scalar_lea.sflag [#allocation3], 1
    %2158 = vsyncpa %s2157, 1
    %2159 = vsyncpa [#allocation5], 1

</llo_original>
